<compile_context>
chip_gen: v7x
topology: tpu7x:2x2x1
jax: 0.10.0
libtpu: 0.0.40
codegen_flags: <defaults>
</compile_context>

<pallas_src>
import functools

import jax
import jax.numpy as jnp
from jax.experimental import pallas as pl
from jax.experimental.pallas import tpu as pltpu

PATCH = 8       # patch size of the synthetic SAM encoder
HEADS = 4       # attention heads
EMBED = 128     # transformer width
NECK_C = 256    # SAM image-embedding channels (nc=256 in m2ms)
MLP_H = 256     # transformer MLP hidden
DEC_H = 128     # m2m decoder hidden
LANE = 128      # lane-dense padding width for narrow heads
DH = EMBED // HEADS

MXU_DTYPE = jnp.bfloat16   # MXU input dtype; accumulation is always f32


# ------------------------- in-kernel helpers -------------------------

def _layer_norm(x, g, b, eps=1e-6):
    mu = jnp.mean(x, axis=-1, keepdims=True)
    var = jnp.mean((x - mu) ** 2, axis=-1, keepdims=True)
    return (x - mu) * jax.lax.rsqrt(var + eps) * g + b


def _bf(x):
    return x.astype(MXU_DTYPE)


# ------------------------- fused encoder kernel -------------------------
# One grid step = one batch image (S = h*w tokens).  Everything from patch
# embedding through the mask head happens in VMEM in a single launch.

def _encoder_kernel(patches_ref, g_ref,
                    patch_w, patch_b, guide_w, guide_b,
                    ln1_g, ln1_b, qkv_w, qkv_b, proj_w, proj_b,
                    ln2_g, ln2_b, mlp1_w, mlp1_b, mlp2_w, mlp2_b,
                    neck_w, neck_b, mask_w, mask_b,
                    feas_ref, mask_ref):
    f32 = jnp.float32

    # patch embedding (MXU) + guidance conditioning (VPU outer product, K=1)
    x = jnp.dot(_bf(patches_ref[...]), patch_w[...], preferred_element_type=f32)
    x = x + patch_b[...]
    x = x + g_ref[...] * guide_w[...] + guide_b[...]

    # pre-norm transformer block, fully fused
    hn = _layer_norm(x, ln1_g[...], ln1_b[...])
    qkv = jnp.dot(_bf(hn), qkv_w[...], preferred_element_type=f32) + qkv_b[...]

    scale = 1.0 / (DH ** 0.5)
    head_outs = []
    for h in range(HEADS):  # static unroll; tiny per-head tiles stay in vregs
        lo = h * DH
        qh = qkv[:, lo:lo + DH] * scale                      # scale folded into q
        kh = qkv[:, EMBED + lo:EMBED + lo + DH]
        vh = qkv[:, 2 * EMBED + lo:2 * EMBED + lo + DH]
        s = jax.lax.dot_general(_bf(qh), _bf(kh),
                                (((1,), (1,)), ((), ())),
                                preferred_element_type=f32)  # (S, S)
        m = jnp.max(s, axis=-1, keepdims=True)
        p = jnp.exp(s - m)
        p = p * pl.reciprocal(jnp.sum(p, axis=-1, keepdims=True), approx=True)
        head_outs.append(jnp.dot(_bf(p), _bf(vh), preferred_element_type=f32))
    attn = jnp.concatenate(head_outs, axis=-1)               # (S, EMBED)

    x = x + jnp.dot(_bf(attn), proj_w[...], preferred_element_type=f32) + proj_b[...]

    hn = _layer_norm(x, ln2_g[...], ln2_b[...])
    mlp = jnp.dot(_bf(hn), mlp1_w[...], preferred_element_type=f32) + mlp1_b[...]
    mlp = jnp.maximum(mlp, 0.0)
    x = x + jnp.dot(_bf(mlp), mlp2_w[...], preferred_element_type=f32) + mlp2_b[...]

    # neck (image embedding `feas`) + mask head, lane-dense outputs
    feas = jnp.dot(_bf(x), neck_w[...], preferred_element_type=f32) + neck_b[...]
    feas_ref[...] = feas.astype(feas_ref.dtype)
    mask = jnp.dot(_bf(feas), mask_w[...], preferred_element_type=f32) + mask_b[...]
    mask_ref[...] = mask.astype(mask_ref.dtype)              # cols 0..2 = 3 masks


# ------------------------- fused m2m head kernel -------------------------

def _m2m_kernel(feas_ref, img_ref, mask_ref,
                w1f, w1i, w1m, b1, w2, b2, out_ref):
    f32 = jnp.float32

    d = jnp.dot(_bf(feas_ref[...]), w1f[...], preferred_element_type=f32)
    d = d + jnp.dot(_bf(mask_ref[...]), w1m[...], preferred_element_type=f32)

    # image contribution: K=3 -> VPU outer products instead of a wasted MXU pass
    img = img_ref[...]            # (tm, 3) f32
    w1i_f = w1i[...]              # (3, DEC_H) f32
    d = d + (img[:, 0:1] * w1i_f[0:1, :]
             + img[:, 1:2] * w1i_f[1:2, :]
             + img[:, 2:3] * w1i_f[2:3, :])

    d = jnp.maximum(d + b1[...], 0.0)
    a = jnp.dot(_bf(d), w2[...], preferred_element_type=f32) + b2[...]
    out_ref[...] = jax.nn.sigmoid(a).astype(out_ref.dtype)   # col 0 = alpha


# ------------------------- wrappers -------------------------

def _full_spec(shape):
    """Whole-array (weight) block, same block for every grid step."""
    nd = len(shape)
    return pl.BlockSpec(tuple(shape), lambda *_: (0,) * nd)


def _row_tile(M, cap=512):
    """Largest multiple-of-8 divisor of M that is <= cap and leaves >=2 grid
    steps (so both v7x TensorCores get work); falls back to a full block."""
    target = min(cap, max(M // 2, 8))
    for t in range((target // 8) * 8, 7, -8):
        if M % t == 0:
            return t
    return M


def _avg_pool_to_grid(x, h, w):
    """x: [B, C, H, W] -> [B*h*w, C] by PATCH x PATCH mean pooling."""
    B, C, H, W = x.shape
    x = x.reshape(B, C, h, PATCH, w, PATCH).mean(axis=(3, 5))
    return x.transpose(0, 2, 3, 1).reshape(B * h * w, C)


def encoder_call(params, patches, g, B, S):
    """Fused synthetic seg_model.forward_m2m: returns (feas_tok, mask_slab)."""
    M, Kp = patches.shape
    weights = [
        params["patch_w"], params["patch_b"], params["guide_w"], params["guide_b"],
        params["ln1_g"], params["ln1_b"], params["qkv_w"], params["qkv_b"],
        params["proj_w"], params["proj_b"], params["ln2_g"], params["ln2_b"],
        params["mlp1_w"], params["mlp1_b"], params["mlp2_w"], params["mlp2_b"],
        params["neck_w"], params["neck_b"], params["maskhead_w"], params["maskhead_b"],
    ]
    w_specs = [_full_spec(w.shape) for w in weights]
    return pl.pallas_call(
        _encoder_kernel,
        out_shape=(jax.ShapeDtypeStruct((M, NECK_C), jnp.float32),
                   jax.ShapeDtypeStruct((M, LANE), jnp.float32)),
        grid=(B,),
        in_specs=[pl.BlockSpec((S, Kp), lambda b: (b, 0)),
                  pl.BlockSpec((S, 1), lambda b: (b, 0))] + w_specs,
        out_specs=(pl.BlockSpec((S, NECK_C), lambda b: (b, 0)),
                   pl.BlockSpec((S, LANE), lambda b: (b, 0))),
        compiler_params=pltpu.CompilerParams(
            dimension_semantics=("parallel",)),
    )(patches, g, *weights)


def m2m_call(params, feas_tok, img_ds, mask_slab):
    """Fused synthetic m2ms[m2m](nc=256): returns lane-dense alpha slab [M,128]."""
    M = feas_tok.shape[0]
    tm = _row_tile(M)
    weights = [params["m2m1_feas_w"], params["m2m1_img_w"], params["m2m1_mask_w"],
               params["m2m1_b"], params["m2m2_w"], params["m2m2_b"]]
    w_specs = [_full_spec(w.shape) for w in weights]
    return pl.pallas_call(
        _m2m_kernel,
        out_shape=jax.ShapeDtypeStruct((M, LANE), jnp.float32),
        grid=(M // tm,),
        in_specs=[pl.BlockSpec((tm, NECK_C), lambda i: (i, 0)),
                  pl.BlockSpec((tm, 3), lambda i: (i, 0)),
                  pl.BlockSpec((tm, LANE), lambda i: (i, 0))] + w_specs,
        out_specs=pl.BlockSpec((tm, LANE), lambda i: (i, 0)),
        compiler_params=pltpu.CompilerParams(
            dimension_semantics=("parallel",)),
    )(feas_tok, img_ds, mask_slab, *weights)


# ------------------------- parameters -------------------------

def init_params(key):
    # TODO(synk): the frozen pretrained SAM ViT encoder / prompt encoder /
    # two-way mask decoder (checkpoint weights, eval()/no_grad()) have no Pallas
    # equivalent; they are replaced by this compact synthetic encoder with the
    # same (feas, masks) interface.
    ks = jax.random.split(key, 12)

    def w(k, shape, scale=0.02, dtype=MXU_DTYPE):
        return (scale * jax.random.normal(k, shape)).astype(dtype)

    b = lambda n: jnp.zeros((1, n), jnp.float32)
    ones = lambda n: jnp.ones((1, n), jnp.float32)

    # lane-dense padded head weights (real channels in the leading columns/rows)
    maskhead_w = jnp.zeros((NECK_C, LANE), jnp.float32)
    maskhead_w = maskhead_w.at[:, :3].set(
        0.02 * jax.random.normal(ks[7], (NECK_C, 3))).astype(MXU_DTYPE)
    m2m1_mask_w = jnp.zeros((LANE, DEC_H), jnp.float32)
    m2m1_mask_w = m2m1_mask_w.at[:3, :].set(
        0.02 * jax.random.normal(ks[10], (3, DEC_H))).astype(MXU_DTYPE)
    m2m2_w = jnp.zeros((DEC_H, LANE), jnp.float32)
    m2m2_w = m2m2_w.at[:, :1].set(
        0.02 * jax.random.normal(ks[11], (DEC_H, 1))).astype(MXU_DTYPE)

    return {
        # SAM-like encoder
        "patch_w": w(ks[0], (PATCH * PATCH * 3, EMBED)), "patch_b": b(EMBED),
        "guide_w": w(ks[1], (1, EMBED), dtype=jnp.float32), "guide_b": b(EMBED),
        "ln1_g": ones(EMBED), "ln1_b": b(EMBED),
        "qkv_w": w(ks[2], (EMBED, 3 * EMBED)), "qkv_b": b(3 * EMBED),
        "proj_w": w(ks[3], (EMBED, EMBED)), "proj_b": b(EMBED),
        "ln2_g": ones(EMBED), "ln2_b": b(EMBED),
        "mlp1_w": w(ks[4], (EMBED, MLP_H)), "mlp1_b": b(MLP_H),
        "mlp2_w": w(ks[5], (MLP_H, EMBED)), "mlp2_b": b(EMBED),
        "neck_w": w(ks[6], (EMBED, NECK_C)), "neck_b": b(NECK_C),
        "maskhead_w": maskhead_w, "maskhead_b": b(LANE),
        # m2m refinement head (nc=256); input = [feas(256), image(3), masks(3)]
        "m2m1_feas_w": w(ks[8], (NECK_C, DEC_H)),
        "m2m1_img_w": w(ks[9], (3, DEC_H), dtype=jnp.float32),
        "m2m1_mask_w": m2m1_mask_w,
        "m2m1_b": b(DEC_H),
        "m2m2_w": m2m2_w, "m2m2_b": b(LANE),
    }


# ------------------------- forward pass -------------------------

def sam_m2m_forward(params, image, guidance):
    """Mirrors sam_m2m.forward(image, guidance) -> pred [B,1,H,W]."""
    B, Cin, H, W = image.shape
    h, w = H // PATCH, W // PATCH
    S = h * w
    M = B * S
    assert S % 8 == 0, "tokens per image must be a multiple of 8 for this tiling"

    # patch extraction + pooling glue (XLA): the only host-side data movement.
    patches = image.reshape(B, Cin, h, PATCH, w, PATCH)
    patches = patches.transpose(0, 2, 4, 3, 5, 1).reshape(M, PATCH * PATCH * Cin)
    g = _avg_pool_to_grid(guidance, h, w)          # [M, 1]
    img_ds = _avg_pool_to_grid(image, h, w)        # [M, 3]

    # fused SAM-like encoder -> (feas tokens, mask-logit slab)
    feas_tok, mask_slab = encoder_call(params, patches, g, B, S)

    # composed path: nearest-upsample(masks) -> PATCHxPATCH mean-pool is the
    # identity, so mask logits go straight into the m2m head (no HBM round trip
    # of (B,3,H,W) masks or NCHW feas).
    alpha_slab = m2m_call(params, feas_tok, img_ds, mask_slab)

    alpha = alpha_slab[:, :1].reshape(B, h, w, 1)
    pred = jnp.repeat(jnp.repeat(alpha, PATCH, axis=1), PATCH, axis=2)
    return pred.transpose(0, 3, 1, 2)              # [B, 1, H, W]


# ------------------------- driver -------------------------

if __name__ == "__main__":
    key = jax.random.PRNGKey(0)
    pkey, ikey, gkey = jax.random.split(key, 3)
    params = init_params(pkey)

    B, H, W = 2, 32, 32
    image = jax.random.normal(ikey, (B, 3, H, W), dtype=jnp.float32)
    guidance = (jax.random.uniform(gkey, (B, 1, H, W)) > 0.5).astype(jnp.float32)

    fwd = jax.jit(functools.partial(sam_m2m_forward, params))
    pred = fwd(image, guidance)
    jax.block_until_ready(pred)

    assert pred.shape == (B, 1, H, W), pred.shape
    assert pred.dtype == jnp.float32
    assert bool(jnp.all(jnp.isfinite(pred)))
    assert bool(jnp.all((pred >= 0.0) & (pred <= 1.0)))
    print("KERNEL_OK")
</pallas_src>

<mosaic_0001>
module attributes {stable_mosaic.version = 11 : i64} {
  func.func @_encoder_kernel(%arg0: i32, %arg1: memref<16x192xf32, #tpu.memory_space<vmem>>, %arg2: memref<16x1xf32, #tpu.memory_space<vmem>>, %arg3: memref<192x128xbf16, #tpu.memory_space<vmem>>, %arg4: memref<1x128xf32, #tpu.memory_space<vmem>>, %arg5: memref<1x128xf32, #tpu.memory_space<vmem>>, %arg6: memref<1x128xf32, #tpu.memory_space<vmem>>, %arg7: memref<1x128xf32, #tpu.memory_space<vmem>>, %arg8: memref<1x128xf32, #tpu.memory_space<vmem>>, %arg9: memref<128x384xbf16, #tpu.memory_space<vmem>>, %arg10: memref<1x384xf32, #tpu.memory_space<vmem>>, %arg11: memref<128x128xbf16, #tpu.memory_space<vmem>>, %arg12: memref<1x128xf32, #tpu.memory_space<vmem>>, %arg13: memref<1x128xf32, #tpu.memory_space<vmem>>, %arg14: memref<1x128xf32, #tpu.memory_space<vmem>>, %arg15: memref<128x256xbf16, #tpu.memory_space<vmem>>, %arg16: memref<1x256xf32, #tpu.memory_space<vmem>>, %arg17: memref<256x128xbf16, #tpu.memory_space<vmem>>, %arg18: memref<1x128xf32, #tpu.memory_space<vmem>>, %arg19: memref<128x256xbf16, #tpu.memory_space<vmem>>, %arg20: memref<1x256xf32, #tpu.memory_space<vmem>>, %arg21: memref<256x128xbf16, #tpu.memory_space<vmem>>, %arg22: memref<1x128xf32, #tpu.memory_space<vmem>>, %arg23: memref<16x256xf32, #tpu.memory_space<vmem>>, %arg24: memref<16x128xf32, #tpu.memory_space<vmem>>) attributes {dimension_semantics = [#tpu.dimension_semantics<parallel>], iteration_bounds = array<i64: 2>, scalar_prefetch = 0 : i64, scratch_operands = 0 : i64, tpu.core_type = #tpu.core_type<tc>, window_params = [{transform_indices = @transform_0, window_bounds = array<i64: 16, 192>}, {transform_indices = @transform_1, window_bounds = array<i64: 16, 1>}, {pipeline_mode = #tpu.pipeline_mode<synchronous>, transform_indices = @transform_2, window_bounds = array<i64: 192, 128>}, {pipeline_mode = #tpu.pipeline_mode<synchronous>, transform_indices = @transform_3, window_bounds = array<i64: 1, 128>}, {pipeline_mode = #tpu.pipeline_mode<synchronous>, transform_indices = @transform_4, window_bounds = array<i64: 1, 128>}, {pipeline_mode = #tpu.pipeline_mode<synchronous>, transform_indices = @transform_5, window_bounds = array<i64: 1, 128>}, {pipeline_mode = #tpu.pipeline_mode<synchronous>, transform_indices = @transform_6, window_bounds = array<i64: 1, 128>}, {pipeline_mode = #tpu.pipeline_mode<synchronous>, transform_indices = @transform_7, window_bounds = array<i64: 1, 128>}, {pipeline_mode = #tpu.pipeline_mode<synchronous>, transform_indices = @transform_8, window_bounds = array<i64: 128, 384>}, {pipeline_mode = #tpu.pipeline_mode<synchronous>, transform_indices = @transform_9, window_bounds = array<i64: 1, 384>}, {pipeline_mode = #tpu.pipeline_mode<synchronous>, transform_indices = @transform_10, window_bounds = array<i64: 128, 128>}, {pipeline_mode = #tpu.pipeline_mode<synchronous>, transform_indices = @transform_11, window_bounds = array<i64: 1, 128>}, {pipeline_mode = #tpu.pipeline_mode<synchronous>, transform_indices = @transform_12, window_bounds = array<i64: 1, 128>}, {pipeline_mode = #tpu.pipeline_mode<synchronous>, transform_indices = @transform_13, window_bounds = array<i64: 1, 128>}, {pipeline_mode = #tpu.pipeline_mode<synchronous>, transform_indices = @transform_14, window_bounds = array<i64: 128, 256>}, {pipeline_mode = #tpu.pipeline_mode<synchronous>, transform_indices = @transform_15, window_bounds = array<i64: 1, 256>}, {pipeline_mode = #tpu.pipeline_mode<synchronous>, transform_indices = @transform_16, window_bounds = array<i64: 256, 128>}, {pipeline_mode = #tpu.pipeline_mode<synchronous>, transform_indices = @transform_17, window_bounds = array<i64: 1, 128>}, {pipeline_mode = #tpu.pipeline_mode<synchronous>, transform_indices = @transform_18, window_bounds = array<i64: 128, 256>}, {pipeline_mode = #tpu.pipeline_mode<synchronous>, transform_indices = @transform_19, window_bounds = array<i64: 1, 256>}, {pipeline_mode = #tpu.pipeline_mode<synchronous>, transform_indices = @transform_20, window_bounds = array<i64: 256, 128>}, {pipeline_mode = #tpu.pipeline_mode<synchronous>, transform_indices = @transform_21, window_bounds = array<i64: 1, 128>}, {transform_indices = @transform_22, window_bounds = array<i64: 16, 256>}, {transform_indices = @transform_23, window_bounds = array<i64: 16, 128>}]} {
    %c0 = arith.constant 0 : index
    %c0_0 = arith.constant 0 : index
    %0 = vector.load %arg1[%c0, %c0_0] : memref<16x192xf32, #tpu.memory_space<vmem>>, vector<16x192xf32>
    %1 = arith.truncf %0 : vector<16x192xf32> to vector<16x192xbf16>
    %c0_1 = arith.constant 0 : index
    %c0_2 = arith.constant 0 : index
    %2 = vector.load %arg3[%c0_1, %c0_2] : memref<192x128xbf16, #tpu.memory_space<vmem>>, vector<192x128xbf16>
    %cst = arith.constant dense<0.000000e+00> : vector<16x128xf32>
    %3 = tpu.matmul %1, %2, %cst {dimension_numbers = #tpu.dot_dimension_numbers<[1], [0], [0], [1], [0, 0, 1, 1], [], []>} : vector<16x192xbf16>, vector<192x128xbf16>, vector<16x128xf32> -> vector<16x128xf32>
    %c0_3 = arith.constant 0 : index
    %c0_4 = arith.constant 0 : index
    %4 = vector.load %arg4[%c0_3, %c0_4] : memref<1x128xf32, #tpu.memory_space<vmem>>, vector<1x128xf32>
    %5 = vector.broadcast %4 : vector<1x128xf32> to vector<16x128xf32>
    %6 = arith.addf %3, %5 : vector<16x128xf32>
    %c0_5 = arith.constant 0 : index
    %c0_6 = arith.constant 0 : index
    %7 = vector.load %arg2[%c0_5, %c0_6] : memref<16x1xf32, #tpu.memory_space<vmem>>, vector<16x1xf32>
    %c0_7 = arith.constant 0 : index
    %c0_8 = arith.constant 0 : index
    %8 = vector.load %arg5[%c0_7, %c0_8] : memref<1x128xf32, #tpu.memory_space<vmem>>, vector<1x128xf32>
    %9 = vector.broadcast %7 : vector<16x1xf32> to vector<16x128xf32>
    %10 = vector.broadcast %8 : vector<1x128xf32> to vector<16x128xf32>
    %11 = arith.mulf %9, %10 : vector<16x128xf32>
    %12 = arith.addf %6, %11 : vector<16x128xf32>
    %c0_9 = arith.constant 0 : index
    %c0_10 = arith.constant 0 : index
    %13 = vector.load %arg6[%c0_9, %c0_10] : memref<1x128xf32, #tpu.memory_space<vmem>>, vector<1x128xf32>
    %14 = vector.broadcast %13 : vector<1x128xf32> to vector<16x128xf32>
    %15 = arith.addf %12, %14 : vector<16x128xf32>
    %c0_11 = arith.constant 0 : index
    %c0_12 = arith.constant 0 : index
    %16 = vector.load %arg7[%c0_11, %c0_12] : memref<1x128xf32, #tpu.memory_space<vmem>>, vector<1x128xf32>
    %c0_13 = arith.constant 0 : index
    %c0_14 = arith.constant 0 : index
    %17 = vector.load %arg8[%c0_13, %c0_14] : memref<1x128xf32, #tpu.memory_space<vmem>>, vector<1x128xf32>
    %cst_15 = arith.constant dense<0.000000e+00> : vector<16xf32>
    %18 = vector.multi_reduction <add>, %15, %cst_15 [1] : vector<16x128xf32> to vector<16xf32>
    %19 = vector.shape_cast %18 : vector<16xf32> to vector<16x1xf32>
    %cst_16 = arith.constant 1.280000e+02 : f32
    %20 = vector.broadcast %cst_16 : f32 to vector<16x1xf32>
    %21 = arith.divf %19, %20 : vector<16x1xf32>
    %22 = vector.broadcast %21 : vector<16x1xf32> to vector<16x128xf32>
    %23 = arith.subf %15, %22 : vector<16x128xf32>
    %24 = arith.mulf %23, %23 : vector<16x128xf32>
    %cst_17 = arith.constant dense<0.000000e+00> : vector<16xf32>
    %25 = vector.multi_reduction <add>, %24, %cst_17 [1] : vector<16x128xf32> to vector<16xf32>
    %26 = vector.shape_cast %25 : vector<16xf32> to vector<16x1xf32>
    %cst_18 = arith.constant 1.280000e+02 : f32
    %27 = vector.broadcast %cst_18 : f32 to vector<16x1xf32>
    %28 = arith.divf %26, %27 : vector<16x1xf32>
    %29 = vector.broadcast %21 : vector<16x1xf32> to vector<16x128xf32>
    %30 = arith.subf %15, %29 : vector<16x128xf32>
    %cst_19 = arith.constant 9.99999997E-7 : f32
    %31 = vector.broadcast %cst_19 : f32 to vector<16x1xf32>
    %32 = arith.addf %28, %31 : vector<16x1xf32>
    %33 = math.rsqrt %32 : vector<16x1xf32>
    %34 = vector.broadcast %33 : vector<16x1xf32> to vector<16x128xf32>
    %35 = arith.mulf %30, %34 : vector<16x128xf32>
    %36 = vector.broadcast %16 : vector<1x128xf32> to vector<16x128xf32>
    %37 = arith.mulf %35, %36 : vector<16x128xf32>
    %38 = vector.broadcast %17 : vector<1x128xf32> to vector<16x128xf32>
    %39 = arith.addf %37, %38 : vector<16x128xf32>
    %40 = arith.truncf %39 : vector<16x128xf32> to vector<16x128xbf16>
    %c0_20 = arith.constant 0 : index
    %c0_21 = arith.constant 0 : index
    %41 = vector.load %arg9[%c0_20, %c0_21] : memref<128x384xbf16, #tpu.memory_space<vmem>>, vector<128x384xbf16>
    %cst_22 = arith.constant dense<0.000000e+00> : vector<16x384xf32>
    %42 = tpu.matmul %40, %41, %cst_22 {dimension_numbers = #tpu.dot_dimension_numbers<[1], [0], [0], [1], [0, 0, 1, 1], [], []>} : vector<16x128xbf16>, vector<128x384xbf16>, vector<16x384xf32> -> vector<16x384xf32>
    %c0_23 = arith.constant 0 : index
    %c0_24 = arith.constant 0 : index
    %43 = vector.load %arg10[%c0_23, %c0_24] : memref<1x384xf32, #tpu.memory_space<vmem>>, vector<1x384xf32>
    %44 = vector.broadcast %43 : vector<1x384xf32> to vector<16x384xf32>
    %45 = arith.addf %42, %44 : vector<16x384xf32>
    %46 = vector.extract_strided_slice %45 {offsets = [0, 0], sizes = [16, 32], strides = [1, 1]} : vector<16x384xf32> to vector<16x32xf32>
    %cst_25 = arith.constant 0.176776692 : f32
    %47 = vector.broadcast %cst_25 : f32 to vector<16x32xf32>
    %48 = arith.mulf %46, %47 : vector<16x32xf32>
    %49 = vector.extract_strided_slice %45 {offsets = [0, 128], sizes = [16, 32], strides = [1, 1]} : vector<16x384xf32> to vector<16x32xf32>
    %50 = vector.extract_strided_slice %45 {offsets = [0, 256], sizes = [16, 32], strides = [1, 1]} : vector<16x384xf32> to vector<16x32xf32>
    %51 = arith.truncf %48 : vector<16x32xf32> to vector<16x32xbf16>
    %52 = arith.truncf %49 : vector<16x32xf32> to vector<16x32xbf16>
    %cst_26 = arith.constant dense<0.000000e+00> : vector<16x16xf32>
    %53 = tpu.matmul %51, %52, %cst_26 {dimension_numbers = #tpu.dot_dimension_numbers<[1], [1], [0], [0], [0, 0, 1, 0], [], []>} : vector<16x32xbf16>, vector<16x32xbf16>, vector<16x16xf32> -> vector<16x16xf32>
    %cst_27 = arith.constant dense<0xFF800000> : vector<16xf32>
    %54 = vector.multi_reduction <maximumf>, %53, %cst_27 [1] : vector<16x16xf32> to vector<16xf32>
    %55 = vector.shape_cast %54 : vector<16xf32> to vector<16x1xf32>
    %56 = vector.broadcast %55 : vector<16x1xf32> to vector<16x16xf32>
    %57 = arith.subf %53, %56 : vector<16x16xf32>
    %58 = math.exp %57 : vector<16x16xf32>
    %cst_28 = arith.constant dense<0.000000e+00> : vector<16xf32>
    %59 = vector.multi_reduction <add>, %58, %cst_28 [1] : vector<16x16xf32> to vector<16xf32>
    %60 = vector.shape_cast %59 : vector<16xf32> to vector<16x1xf32>
    %61 = tpu.reciprocal %60 {approx = true} : vector<16x1xf32> -> vector<16x1xf32>
    %62 = vector.broadcast %61 : vector<16x1xf32> to vector<16x16xf32>
    %63 = arith.mulf %58, %62 : vector<16x16xf32>
    %64 = arith.truncf %63 : vector<16x16xf32> to vector<16x16xbf16>
    %65 = arith.truncf %50 : vector<16x32xf32> to vector<16x32xbf16>
    %cst_29 = arith.constant dense<0.000000e+00> : vector<16x32xf32>
    %66 = tpu.matmul %64, %65, %cst_29 {dimension_numbers = #tpu.dot_dimension_numbers<[1], [0], [0], [1], [0, 0, 1, 1], [], []>} : vector<16x16xbf16>, vector<16x32xbf16>, vector<16x32xf32> -> vector<16x32xf32>
    %67 = vector.extract_strided_slice %45 {offsets = [0, 32], sizes = [16, 32], strides = [1, 1]} : vector<16x384xf32> to vector<16x32xf32>
    %cst_30 = arith.constant 0.176776692 : f32
    %68 = vector.broadcast %cst_30 : f32 to vector<16x32xf32>
    %69 = arith.mulf %67, %68 : vector<16x32xf32>
    %70 = vector.extract_strided_slice %45 {offsets = [0, 160], sizes = [16, 32], strides = [1, 1]} : vector<16x384xf32> to vector<16x32xf32>
    %71 = vector.extract_strided_slice %45 {offsets = [0, 288], sizes = [16, 32], strides = [1, 1]} : vector<16x384xf32> to vector<16x32xf32>
    %72 = arith.truncf %69 : vector<16x32xf32> to vector<16x32xbf16>
    %73 = arith.truncf %70 : vector<16x32xf32> to vector<16x32xbf16>
    %cst_31 = arith.constant dense<0.000000e+00> : vector<16x16xf32>
    %74 = tpu.matmul %72, %73, %cst_31 {dimension_numbers = #tpu.dot_dimension_numbers<[1], [1], [0], [0], [0, 0, 1, 0], [], []>} : vector<16x32xbf16>, vector<16x32xbf16>, vector<16x16xf32> -> vector<16x16xf32>
    %cst_32 = arith.constant dense<0xFF800000> : vector<16xf32>
    %75 = vector.multi_reduction <maximumf>, %74, %cst_32 [1] : vector<16x16xf32> to vector<16xf32>
    %76 = vector.shape_cast %75 : vector<16xf32> to vector<16x1xf32>
    %77 = vector.broadcast %76 : vector<16x1xf32> to vector<16x16xf32>
    %78 = arith.subf %74, %77 : vector<16x16xf32>
    %79 = math.exp %78 : vector<16x16xf32>
    %cst_33 = arith.constant dense<0.000000e+00> : vector<16xf32>
    %80 = vector.multi_reduction <add>, %79, %cst_33 [1] : vector<16x16xf32> to vector<16xf32>
    %81 = vector.shape_cast %80 : vector<16xf32> to vector<16x1xf32>
    %82 = tpu.reciprocal %81 {approx = true} : vector<16x1xf32> -> vector<16x1xf32>
    %83 = vector.broadcast %82 : vector<16x1xf32> to vector<16x16xf32>
    %84 = arith.mulf %79, %83 : vector<16x16xf32>
    %85 = arith.truncf %84 : vector<16x16xf32> to vector<16x16xbf16>
    %86 = arith.truncf %71 : vector<16x32xf32> to vector<16x32xbf16>
    %cst_34 = arith.constant dense<0.000000e+00> : vector<16x32xf32>
    %87 = tpu.matmul %85, %86, %cst_34 {dimension_numbers = #tpu.dot_dimension_numbers<[1], [0], [0], [1], [0, 0, 1, 1], [], []>} : vector<16x16xbf16>, vector<16x32xbf16>, vector<16x32xf32> -> vector<16x32xf32>
    %88 = vector.extract_strided_slice %45 {offsets = [0, 64], sizes = [16, 32], strides = [1, 1]} : vector<16x384xf32> to vector<16x32xf32>
    %cst_35 = arith.constant 0.176776692 : f32
    %89 = vector.broadcast %cst_35 : f32 to vector<16x32xf32>
    %90 = arith.mulf %88, %89 : vector<16x32xf32>
    %91 = vector.extract_strided_slice %45 {offsets = [0, 192], sizes = [16, 32], strides = [1, 1]} : vector<16x384xf32> to vector<16x32xf32>
    %92 = vector.extract_strided_slice %45 {offsets = [0, 320], sizes = [16, 32], strides = [1, 1]} : vector<16x384xf32> to vector<16x32xf32>
    %93 = arith.truncf %90 : vector<16x32xf32> to vector<16x32xbf16>
    %94 = arith.truncf %91 : vector<16x32xf32> to vector<16x32xbf16>
    %cst_36 = arith.constant dense<0.000000e+00> : vector<16x16xf32>
    %95 = tpu.matmul %93, %94, %cst_36 {dimension_numbers = #tpu.dot_dimension_numbers<[1], [1], [0], [0], [0, 0, 1, 0], [], []>} : vector<16x32xbf16>, vector<16x32xbf16>, vector<16x16xf32> -> vector<16x16xf32>
    %cst_37 = arith.constant dense<0xFF800000> : vector<16xf32>
    %96 = vector.multi_reduction <maximumf>, %95, %cst_37 [1] : vector<16x16xf32> to vector<16xf32>
    %97 = vector.shape_cast %96 : vector<16xf32> to vector<16x1xf32>
    %98 = vector.broadcast %97 : vector<16x1xf32> to vector<16x16xf32>
    %99 = arith.subf %95, %98 : vector<16x16xf32>
    %100 = math.exp %99 : vector<16x16xf32>
    %cst_38 = arith.constant dense<0.000000e+00> : vector<16xf32>
    %101 = vector.multi_reduction <add>, %100, %cst_38 [1] : vector<16x16xf32> to vector<16xf32>
    %102 = vector.shape_cast %101 : vector<16xf32> to vector<16x1xf32>
    %103 = tpu.reciprocal %102 {approx = true} : vector<16x1xf32> -> vector<16x1xf32>
    %104 = vector.broadcast %103 : vector<16x1xf32> to vector<16x16xf32>
    %105 = arith.mulf %100, %104 : vector<16x16xf32>
    %106 = arith.truncf %105 : vector<16x16xf32> to vector<16x16xbf16>
    %107 = arith.truncf %92 : vector<16x32xf32> to vector<16x32xbf16>
    %cst_39 = arith.constant dense<0.000000e+00> : vector<16x32xf32>
    %108 = tpu.matmul %106, %107, %cst_39 {dimension_numbers = #tpu.dot_dimension_numbers<[1], [0], [0], [1], [0, 0, 1, 1], [], []>} : vector<16x16xbf16>, vector<16x32xbf16>, vector<16x32xf32> -> vector<16x32xf32>
    %109 = vector.extract_strided_slice %45 {offsets = [0, 96], sizes = [16, 32], strides = [1, 1]} : vector<16x384xf32> to vector<16x32xf32>
    %cst_40 = arith.constant 0.176776692 : f32
    %110 = vector.broadcast %cst_40 : f32 to vector<16x32xf32>
    %111 = arith.mulf %109, %110 : vector<16x32xf32>
    %112 = vector.extract_strided_slice %45 {offsets = [0, 224], sizes = [16, 32], strides = [1, 1]} : vector<16x384xf32> to vector<16x32xf32>
    %113 = vector.extract_strided_slice %45 {offsets = [0, 352], sizes = [16, 32], strides = [1, 1]} : vector<16x384xf32> to vector<16x32xf32>
    %114 = arith.truncf %111 : vector<16x32xf32> to vector<16x32xbf16>
    %115 = arith.truncf %112 : vector<16x32xf32> to vector<16x32xbf16>
    %cst_41 = arith.constant dense<0.000000e+00> : vector<16x16xf32>
    %116 = tpu.matmul %114, %115, %cst_41 {dimension_numbers = #tpu.dot_dimension_numbers<[1], [1], [0], [0], [0, 0, 1, 0], [], []>} : vector<16x32xbf16>, vector<16x32xbf16>, vector<16x16xf32> -> vector<16x16xf32>
    %cst_42 = arith.constant dense<0xFF800000> : vector<16xf32>
    %117 = vector.multi_reduction <maximumf>, %116, %cst_42 [1] : vector<16x16xf32> to vector<16xf32>
    %118 = vector.shape_cast %117 : vector<16xf32> to vector<16x1xf32>
    %119 = vector.broadcast %118 : vector<16x1xf32> to vector<16x16xf32>
    %120 = arith.subf %116, %119 : vector<16x16xf32>
    %121 = math.exp %120 : vector<16x16xf32>
    %cst_43 = arith.constant dense<0.000000e+00> : vector<16xf32>
    %122 = vector.multi_reduction <add>, %121, %cst_43 [1] : vector<16x16xf32> to vector<16xf32>
    %123 = vector.shape_cast %122 : vector<16xf32> to vector<16x1xf32>
    %124 = tpu.reciprocal %123 {approx = true} : vector<16x1xf32> -> vector<16x1xf32>
    %125 = vector.broadcast %124 : vector<16x1xf32> to vector<16x16xf32>
    %126 = arith.mulf %121, %125 : vector<16x16xf32>
    %127 = arith.truncf %126 : vector<16x16xf32> to vector<16x16xbf16>
    %128 = arith.truncf %113 : vector<16x32xf32> to vector<16x32xbf16>
    %cst_44 = arith.constant dense<0.000000e+00> : vector<16x32xf32>
    %129 = tpu.matmul %127, %128, %cst_44 {dimension_numbers = #tpu.dot_dimension_numbers<[1], [0], [0], [1], [0, 0, 1, 1], [], []>} : vector<16x16xbf16>, vector<16x32xbf16>, vector<16x32xf32> -> vector<16x32xf32>
    %130 = tpu.concatenate %66, %87, %108, %129 in 1 : vector<16x32xf32>, vector<16x32xf32>, vector<16x32xf32>, vector<16x32xf32> -> vector<16x128xf32>
    %131 = arith.truncf %130 : vector<16x128xf32> to vector<16x128xbf16>
    %c0_45 = arith.constant 0 : index
    %c0_46 = arith.constant 0 : index
    %132 = vector.load %arg11[%c0_45, %c0_46] : memref<128x128xbf16, #tpu.memory_space<vmem>>, vector<128x128xbf16>
    %cst_47 = arith.constant dense<0.000000e+00> : vector<16x128xf32>
    %133 = tpu.matmul %131, %132, %cst_47 {dimension_numbers = #tpu.dot_dimension_numbers<[1], [0], [0], [1], [0, 0, 1, 1], [], []>} : vector<16x128xbf16>, vector<128x128xbf16>, vector<16x128xf32> -> vector<16x128xf32>
    %134 = arith.addf %15, %133 : vector<16x128xf32>
    %c0_48 = arith.constant 0 : index
    %c0_49 = arith.constant 0 : index
    %135 = vector.load %arg12[%c0_48, %c0_49] : memref<1x128xf32, #tpu.memory_space<vmem>>, vector<1x128xf32>
    %136 = vector.broadcast %135 : vector<1x128xf32> to vector<16x128xf32>
    %137 = arith.addf %134, %136 : vector<16x128xf32>
    %c0_50 = arith.constant 0 : index
    %c0_51 = arith.constant 0 : index
    %138 = vector.load %arg13[%c0_50, %c0_51] : memref<1x128xf32, #tpu.memory_space<vmem>>, vector<1x128xf32>
    %c0_52 = arith.constant 0 : index
    %c0_53 = arith.constant 0 : index
    %139 = vector.load %arg14[%c0_52, %c0_53] : memref<1x128xf32, #tpu.memory_space<vmem>>, vector<1x128xf32>
    %cst_54 = arith.constant dense<0.000000e+00> : vector<16xf32>
    %140 = vector.multi_reduction <add>, %137, %cst_54 [1] : vector<16x128xf32> to vector<16xf32>
    %141 = vector.shape_cast %140 : vector<16xf32> to vector<16x1xf32>
    %cst_55 = arith.constant 1.280000e+02 : f32
    %142 = vector.broadcast %cst_55 : f32 to vector<16x1xf32>
    %143 = arith.divf %141, %142 : vector<16x1xf32>
    %144 = vector.broadcast %143 : vector<16x1xf32> to vector<16x128xf32>
    %145 = arith.subf %137, %144 : vector<16x128xf32>
    %146 = arith.mulf %145, %145 : vector<16x128xf32>
    %cst_56 = arith.constant dense<0.000000e+00> : vector<16xf32>
    %147 = vector.multi_reduction <add>, %146, %cst_56 [1] : vector<16x128xf32> to vector<16xf32>
    %148 = vector.shape_cast %147 : vector<16xf32> to vector<16x1xf32>
    %cst_57 = arith.constant 1.280000e+02 : f32
    %149 = vector.broadcast %cst_57 : f32 to vector<16x1xf32>
    %150 = arith.divf %148, %149 : vector<16x1xf32>
    %151 = vector.broadcast %143 : vector<16x1xf32> to vector<16x128xf32>
    %152 = arith.subf %137, %151 : vector<16x128xf32>
    %cst_58 = arith.constant 9.99999997E-7 : f32
    %153 = vector.broadcast %cst_58 : f32 to vector<16x1xf32>
    %154 = arith.addf %150, %153 : vector<16x1xf32>
    %155 = math.rsqrt %154 : vector<16x1xf32>
    %156 = vector.broadcast %155 : vector<16x1xf32> to vector<16x128xf32>
    %157 = arith.mulf %152, %156 : vector<16x128xf32>
    %158 = vector.broadcast %138 : vector<1x128xf32> to vector<16x128xf32>
    %159 = arith.mulf %157, %158 : vector<16x128xf32>
    %160 = vector.broadcast %139 : vector<1x128xf32> to vector<16x128xf32>
    %161 = arith.addf %159, %160 : vector<16x128xf32>
    %162 = arith.truncf %161 : vector<16x128xf32> to vector<16x128xbf16>
    %c0_59 = arith.constant 0 : index
    %c0_60 = arith.constant 0 : index
    %163 = vector.load %arg15[%c0_59, %c0_60] : memref<128x256xbf16, #tpu.memory_space<vmem>>, vector<128x256xbf16>
    %cst_61 = arith.constant dense<0.000000e+00> : vector<16x256xf32>
    %164 = tpu.matmul %162, %163, %cst_61 {dimension_numbers = #tpu.dot_dimension_numbers<[1], [0], [0], [1], [0, 0, 1, 1], [], []>} : vector<16x128xbf16>, vector<128x256xbf16>, vector<16x256xf32> -> vector<16x256xf32>
    %c0_62 = arith.constant 0 : index
    %c0_63 = arith.constant 0 : index
    %165 = vector.load %arg16[%c0_62, %c0_63] : memref<1x256xf32, #tpu.memory_space<vmem>>, vector<1x256xf32>
    %166 = vector.broadcast %165 : vector<1x256xf32> to vector<16x256xf32>
    %167 = arith.addf %164, %166 : vector<16x256xf32>
    %cst_64 = arith.constant 0.000000e+00 : f32
    %168 = vector.broadcast %cst_64 : f32 to vector<16x256xf32>
    %169 = arith.maximumf %167, %168 : vector<16x256xf32>
    %170 = arith.truncf %169 : vector<16x256xf32> to vector<16x256xbf16>
    %c0_65 = arith.constant 0 : index
    %c0_66 = arith.constant 0 : index
    %171 = vector.load %arg17[%c0_65, %c0_66] : memref<256x128xbf16, #tpu.memory_space<vmem>>, vector<256x128xbf16>
    %cst_67 = arith.constant dense<0.000000e+00> : vector<16x128xf32>
    %172 = tpu.matmul %170, %171, %cst_67 {dimension_numbers = #tpu.dot_dimension_numbers<[1], [0], [0], [1], [0, 0, 1, 1], [], []>} : vector<16x256xbf16>, vector<256x128xbf16>, vector<16x128xf32> -> vector<16x128xf32>
    %173 = arith.addf %137, %172 : vector<16x128xf32>
    %c0_68 = arith.constant 0 : index
    %c0_69 = arith.constant 0 : index
    %174 = vector.load %arg18[%c0_68, %c0_69] : memref<1x128xf32, #tpu.memory_space<vmem>>, vector<1x128xf32>
    %175 = vector.broadcast %174 : vector<1x128xf32> to vector<16x128xf32>
    %176 = arith.addf %173, %175 : vector<16x128xf32>
    %177 = arith.truncf %176 : vector<16x128xf32> to vector<16x128xbf16>
    %c0_70 = arith.constant 0 : index
    %c0_71 = arith.constant 0 : index
    %178 = vector.load %arg19[%c0_70, %c0_71] : memref<128x256xbf16, #tpu.memory_space<vmem>>, vector<128x256xbf16>
    %cst_72 = arith.constant dense<0.000000e+00> : vector<16x256xf32>
    %179 = tpu.matmul %177, %178, %cst_72 {dimension_numbers = #tpu.dot_dimension_numbers<[1], [0], [0], [1], [0, 0, 1, 1], [], []>} : vector<16x128xbf16>, vector<128x256xbf16>, vector<16x256xf32> -> vector<16x256xf32>
    %c0_73 = arith.constant 0 : index
    %c0_74 = arith.constant 0 : index
    %180 = vector.load %arg20[%c0_73, %c0_74] : memref<1x256xf32, #tpu.memory_space<vmem>>, vector<1x256xf32>
    %181 = vector.broadcast %180 : vector<1x256xf32> to vector<16x256xf32>
    %182 = arith.addf %179, %181 : vector<16x256xf32>
    %c0_75 = arith.constant 0 : index
    %c0_76 = arith.constant 0 : index
    %183 = vector.load %arg23[%c0_75, %c0_76] : memref<16x256xf32, #tpu.memory_space<vmem>>, vector<16x256xf32>
    tpu.vector_store %arg23[%c0_75, %c0_76], %182 {strides = array<i32>} : memref<16x256xf32, #tpu.memory_space<vmem>>, vector<16x256xf32>,
    %184 = arith.truncf %182 : vector<16x256xf32> to vector<16x256xbf16>
    %c0_77 = arith.constant 0 : index
    %c0_78 = arith.constant 0 : index
    %185 = vector.load %arg21[%c0_77, %c0_78] : memref<256x128xbf16, #tpu.memory_space<vmem>>, vector<256x128xbf16>
    %cst_79 = arith.constant dense<0.000000e+00> : vector<16x128xf32>
    %186 = tpu.matmul %184, %185, %cst_79 {dimension_numbers = #tpu.dot_dimension_numbers<[1], [0], [0], [1], [0, 0, 1, 1], [], []>} : vector<16x256xbf16>, vector<256x128xbf16>, vector<16x128xf32> -> vector<16x128xf32>
    %c0_80 = arith.constant 0 : index
    %c0_81 = arith.constant 0 : index
    %187 = vector.load %arg22[%c0_80, %c0_81] : memref<1x128xf32, #tpu.memory_space<vmem>>, vector<1x128xf32>
    %188 = vector.broadcast %187 : vector<1x128xf32> to vector<16x128xf32>
    %189 = arith.addf %186, %188 : vector<16x128xf32>
    %c0_82 = arith.constant 0 : index
    %c0_83 = arith.constant 0 : index
    %190 = vector.load %arg24[%c0_82, %c0_83] : memref<16x128xf32, #tpu.memory_space<vmem>>, vector<16x128xf32>
    tpu.vector_store %arg24[%c0_82, %c0_83], %189 {strides = array<i32>} : memref<16x128xf32, #tpu.memory_space<vmem>>, vector<16x128xf32>,
    return
  }
  func.func @transform_0(%arg0: i32) -> (i32, i32) {
    %c0_i32 = arith.constant 0 : i32
    %c0_i32_0 = arith.constant 0 : i32
    return %arg0, %c0_i32 : i32, i32
  }
  func.func @transform_1(%arg0: i32) -> (i32, i32) {
    %c0_i32 = arith.constant 0 : i32
    %c0_i32_0 = arith.constant 0 : i32
    return %arg0, %c0_i32 : i32, i32
  }
  func.func @transform_2(%arg0: i32) -> (i32, i32) {
    %c0_i32 = arith.constant 0 : i32
    %c0_i32_0 = arith.constant 0 : i32
    %c0_i32_1 = arith.constant 0 : i32
    return %c0_i32, %c0_i32_0 : i32, i32
  }
  func.func @transform_3(%arg0: i32) -> (i32, i32) {
    %c0_i32 = arith.constant 0 : i32
    %c0_i32_0 = arith.constant 0 : i32
    %c0_i32_1 = arith.constant 0 : i32
    return %c0_i32, %c0_i32_0 : i32, i32
  }
  func.func @transform_4(%arg0: i32) -> (i32, i32) {
    %c0_i32 = arith.constant 0 : i32
    %c0_i32_0 = arith.constant 0 : i32
    %c0_i32_1 = arith.constant 0 : i32
    return %c0_i32, %c0_i32_0 : i32, i32
  }
  func.func @transform_5(%arg0: i32) -> (i32, i32) {
    %c0_i32 = arith.constant 0 : i32
    %c0_i32_0 = arith.constant 0 : i32
    %c0_i32_1 = arith.constant 0 : i32
    return %c0_i32, %c0_i32_0 : i32, i32
  }
  func.func @transform_6(%arg0: i32) -> (i32, i32) {
    %c0_i32 = arith.constant 0 : i32
    %c0_i32_0 = arith.constant 0 : i32
    %c0_i32_1 = arith.constant 0 : i32
    return %c0_i32, %c0_i32_0 : i32, i32
  }
  func.func @transform_7(%arg0: i32) -> (i32, i32) {
    %c0_i32 = arith.constant 0 : i32
    %c0_i32_0 = arith.constant 0 : i32
    %c0_i32_1 = arith.constant 0 : i32
    return %c0_i32, %c0_i32_0 : i32, i32
  }
  func.func @transform_8(%arg0: i32) -> (i32, i32) {
    %c0_i32 = arith.constant 0 : i32
    %c0_i32_0 = arith.constant 0 : i32
    %c0_i32_1 = arith.constant 0 : i32
    return %c0_i32, %c0_i32_0 : i32, i32
  }
  func.func @transform_9(%arg0: i32) -> (i32, i32) {
    %c0_i32 = arith.constant 0 : i32
    %c0_i32_0 = arith.constant 0 : i32
    %c0_i32_1 = arith.constant 0 : i32
    return %c0_i32, %c0_i32_0 : i32, i32
  }
  func.func @transform_10(%arg0: i32) -> (i32, i32) {
    %c0_i32 = arith.constant 0 : i32
    %c0_i32_0 = arith.constant 0 : i32
    %c0_i32_1 = arith.constant 0 : i32
    return %c0_i32, %c0_i32_0 : i32, i32
  }
  func.func @transform_11(%arg0: i32) -> (i32, i32) {
    %c0_i32 = arith.constant 0 : i32
    %c0_i32_0 = arith.constant 0 : i32
    %c0_i32_1 = arith.constant 0 : i32
    return %c0_i32, %c0_i32_0 : i32, i32
  }
  func.func @transform_12(%arg0: i32) -> (i32, i32) {
    %c0_i32 = arith.constant 0 : i32
    %c0_i32_0 = arith.constant 0 : i32
    %c0_i32_1 = arith.constant 0 : i32
    return %c0_i32, %c0_i32_0 : i32, i32
  }
  func.func @transform_13(%arg0: i32) -> (i32, i32) {
    %c0_i32 = arith.constant 0 : i32
    %c0_i32_0 = arith.constant 0 : i32
    %c0_i32_1 = arith.constant 0 : i32
    return %c0_i32, %c0_i32_0 : i32, i32
  }
  func.func @transform_14(%arg0: i32) -> (i32, i32) {
    %c0_i32 = arith.constant 0 : i32
    %c0_i32_0 = arith.constant 0 : i32
    %c0_i32_1 = arith.constant 0 : i32
    return %c0_i32, %c0_i32_0 : i32, i32
  }
  func.func @transform_15(%arg0: i32) -> (i32, i32) {
    %c0_i32 = arith.constant 0 : i32
    %c0_i32_0 = arith.constant 0 : i32
    %c0_i32_1 = arith.constant 0 : i32
    return %c0_i32, %c0_i32_0 : i32, i32
  }
  func.func @transform_16(%arg0: i32) -> (i32, i32) {
    %c0_i32 = arith.constant 0 : i32
    %c0_i32_0 = arith.constant 0 : i32
    %c0_i32_1 = arith.constant 0 : i32
    return %c0_i32, %c0_i32_0 : i32, i32
  }
  func.func @transform_17(%arg0: i32) -> (i32, i32) {
    %c0_i32 = arith.constant 0 : i32
    %c0_i32_0 = arith.constant 0 : i32
    %c0_i32_1 = arith.constant 0 : i32
    return %c0_i32, %c0_i32_0 : i32, i32
  }
  func.func @transform_18(%arg0: i32) -> (i32, i32) {
    %c0_i32 = arith.constant 0 : i32
    %c0_i32_0 = arith.constant 0 : i32
    %c0_i32_1 = arith.constant 0 : i32
    return %c0_i32, %c0_i32_0 : i32, i32
  }
  func.func @transform_19(%arg0: i32) -> (i32, i32) {
    %c0_i32 = arith.constant 0 : i32
    %c0_i32_0 = arith.constant 0 : i32
    %c0_i32_1 = arith.constant 0 : i32
    return %c0_i32, %c0_i32_0 : i32, i32
  }
  func.func @transform_20(%arg0: i32) -> (i32, i32) {
    %c0_i32 = arith.constant 0 : i32
    %c0_i32_0 = arith.constant 0 : i32
    %c0_i32_1 = arith.constant 0 : i32
    return %c0_i32, %c0_i32_0 : i32, i32
  }
  func.func @transform_21(%arg0: i32) -> (i32, i32) {
    %c0_i32 = arith.constant 0 : i32
    %c0_i32_0 = arith.constant 0 : i32
    %c0_i32_1 = arith.constant 0 : i32
    return %c0_i32, %c0_i32_0 : i32, i32
  }
  func.func @transform_22(%arg0: i32) -> (i32, i32) {
    %c0_i32 = arith.constant 0 : i32
    %c0_i32_0 = arith.constant 0 : i32
    return %arg0, %c0_i32 : i32, i32
  }
  func.func @transform_23(%arg0: i32) -> (i32, i32) {
    %c0_i32 = arith.constant 0 : i32
    %c0_i32_0 = arith.constant 0 : i32
    return %arg0, %c0_i32 : i32, i32
  }
}

module attributes {stable_mosaic.version = 11 : i64} {
  func.func @_m2m_kernel(%arg0: i32, %arg1: memref<16x256xf32, #tpu.memory_space<vmem>>, %arg2: memref<16x3xf32, #tpu.memory_space<vmem>>, %arg3: memref<16x128xf32, #tpu.memory_space<vmem>>, %arg4: memref<256x128xbf16, #tpu.memory_space<vmem>>, %arg5: memref<3x128xf32, #tpu.memory_space<vmem>>, %arg6: memref<128x128xbf16, #tpu.memory_space<vmem>>, %arg7: memref<1x128xf32, #tpu.memory_space<vmem>>, %arg8: memref<128x128xbf16, #tpu.memory_space<vmem>>, %arg9: memref<1x128xf32, #tpu.memory_space<vmem>>, %arg10: memref<16x128xf32, #tpu.memory_space<vmem>>) attributes {dimension_semantics = [#tpu.dimension_semantics<parallel>], iteration_bounds = array<i64: 2>, scalar_prefetch = 0 : i64, scratch_operands = 0 : i64, tpu.core_type = #tpu.core_type<tc>, window_params = [{transform_indices = @transform_0, window_bounds = array<i64: 16, 256>}, {transform_indices = @transform_1, window_bounds = array<i64: 16, 3>}, {transform_indices = @transform_2, window_bounds = array<i64: 16, 128>}, {pipeline_mode = #tpu.pipeline_mode<synchronous>, transform_indices = @transform_3, window_bounds = array<i64: 256, 128>}, {pipeline_mode = #tpu.pipeline_mode<synchronous>, transform_indices = @transform_4, window_bounds = array<i64: 3, 128>}, {pipeline_mode = #tpu.pipeline_mode<synchronous>, transform_indices = @transform_5, window_bounds = array<i64: 128, 128>}, {pipeline_mode = #tpu.pipeline_mode<synchronous>, transform_indices = @transform_6, window_bounds = array<i64: 1, 128>}, {pipeline_mode = #tpu.pipeline_mode<synchronous>, transform_indices = @transform_7, window_bounds = array<i64: 128, 128>}, {pipeline_mode = #tpu.pipeline_mode<synchronous>, transform_indices = @transform_8, window_bounds = array<i64: 1, 128>}, {transform_indices = @transform_9, window_bounds = array<i64: 16, 128>}]} {
    %c0 = arith.constant 0 : index
    %c0_0 = arith.constant 0 : index
    %0 = vector.load %arg1[%c0, %c0_0] : memref<16x256xf32, #tpu.memory_space<vmem>>, vector<16x256xf32>
    %1 = arith.truncf %0 : vector<16x256xf32> to vector<16x256xbf16>
    %c0_1 = arith.constant 0 : index
    %c0_2 = arith.constant 0 : index
    %2 = vector.load %arg4[%c0_1, %c0_2] : memref<256x128xbf16, #tpu.memory_space<vmem>>, vector<256x128xbf16>
    %cst = arith.constant dense<0.000000e+00> : vector<16x128xf32>
    %3 = tpu.matmul %1, %2, %cst {dimension_numbers = #tpu.dot_dimension_numbers<[1], [0], [0], [1], [0, 0, 1, 1], [], []>} : vector<16x256xbf16>, vector<256x128xbf16>, vector<16x128xf32> -> vector<16x128xf32>
    %c0_3 = arith.constant 0 : index
    %c0_4 = arith.constant 0 : index
    %4 = vector.load %arg3[%c0_3, %c0_4] : memref<16x128xf32, #tpu.memory_space<vmem>>, vector<16x128xf32>
    %5 = arith.truncf %4 : vector<16x128xf32> to vector<16x128xbf16>
    %c0_5 = arith.constant 0 : index
    %c0_6 = arith.constant 0 : index
    %6 = vector.load %arg6[%c0_5, %c0_6] : memref<128x128xbf16, #tpu.memory_space<vmem>>, vector<128x128xbf16>
    %cst_7 = arith.constant dense<0.000000e+00> : vector<16x128xf32>
    %7 = tpu.matmul %5, %6, %cst_7 {dimension_numbers = #tpu.dot_dimension_numbers<[1], [0], [0], [1], [0, 0, 1, 1], [], []>} : vector<16x128xbf16>, vector<128x128xbf16>, vector<16x128xf32> -> vector<16x128xf32>
    %8 = arith.addf %3, %7 : vector<16x128xf32>
    %c0_8 = arith.constant 0 : index
    %c0_9 = arith.constant 0 : index
    %9 = vector.load %arg2[%c0_8, %c0_9] : memref<16x3xf32, #tpu.memory_space<vmem>>, vector<16x3xf32>
    %c0_10 = arith.constant 0 : index
    %c0_11 = arith.constant 0 : index
    %10 = vector.load %arg5[%c0_10, %c0_11] : memref<3x128xf32, #tpu.memory_space<vmem>>, vector<3x128xf32>
    %11 = vector.extract_strided_slice %9 {offsets = [0, 0], sizes = [16, 1], strides = [1, 1]} : vector<16x3xf32> to vector<16x1xf32>
    %12 = vector.extract_strided_slice %10 {offsets = [0, 0], sizes = [1, 128], strides = [1, 1]} : vector<3x128xf32> to vector<1x128xf32>
    %13 = vector.broadcast %11 : vector<16x1xf32> to vector<16x128xf32>
    %14 = vector.broadcast %12 : vector<1x128xf32> to vector<16x128xf32>
    %15 = arith.mulf %13, %14 : vector<16x128xf32>
    %16 = vector.extract_strided_slice %9 {offsets = [0, 1], sizes = [16, 1], strides = [1, 1]} : vector<16x3xf32> to vector<16x1xf32>
    %17 = vector.extract_strided_slice %10 {offsets = [1, 0], sizes = [1, 128], strides = [1, 1]} : vector<3x128xf32> to vector<1x128xf32>
    %18 = vector.broadcast %16 : vector<16x1xf32> to vector<16x128xf32>
    %19 = vector.broadcast %17 : vector<1x128xf32> to vector<16x128xf32>
    %20 = arith.mulf %18, %19 : vector<16x128xf32>
    %21 = arith.addf %15, %20 : vector<16x128xf32>
    %22 = vector.extract_strided_slice %9 {offsets = [0, 2], sizes = [16, 1], strides = [1, 1]} : vector<16x3xf32> to vector<16x1xf32>
    %23 = vector.extract_strided_slice %10 {offsets = [2, 0], sizes = [1, 128], strides = [1, 1]} : vector<3x128xf32> to vector<1x128xf32>
    %24 = vector.broadcast %22 : vector<16x1xf32> to vector<16x128xf32>
    %25 = vector.broadcast %23 : vector<1x128xf32> to vector<16x128xf32>
    %26 = arith.mulf %24, %25 : vector<16x128xf32>
    %27 = arith.addf %21, %26 : vector<16x128xf32>
    %28 = arith.addf %8, %27 : vector<16x128xf32>
    %c0_12 = arith.constant 0 : index
    %c0_13 = arith.constant 0 : index
    %29 = vector.load %arg7[%c0_12, %c0_13] : memref<1x128xf32, #tpu.memory_space<vmem>>, vector<1x128xf32>
    %30 = vector.broadcast %29 : vector<1x128xf32> to vector<16x128xf32>
    %31 = arith.addf %28, %30 : vector<16x128xf32>
    %cst_14 = arith.constant 0.000000e+00 : f32
    %32 = vector.broadcast %cst_14 : f32 to vector<16x128xf32>
    %33 = arith.maximumf %31, %32 : vector<16x128xf32>
    %34 = arith.truncf %33 : vector<16x128xf32> to vector<16x128xbf16>
    %c0_15 = arith.constant 0 : index
    %c0_16 = arith.constant 0 : index
    %35 = vector.load %arg8[%c0_15, %c0_16] : memref<128x128xbf16, #tpu.memory_space<vmem>>, vector<128x128xbf16>
    %cst_17 = arith.constant dense<0.000000e+00> : vector<16x128xf32>
    %36 = tpu.matmul %34, %35, %cst_17 {dimension_numbers = #tpu.dot_dimension_numbers<[1], [0], [0], [1], [0, 0, 1, 1], [], []>} : vector<16x128xbf16>, vector<128x128xbf16>, vector<16x128xf32> -> vector<16x128xf32>
    %c0_18 = arith.constant 0 : index
    %c0_19 = arith.constant 0 : index
    %37 = vector.load %arg9[%c0_18, %c0_19] : memref<1x128xf32, #tpu.memory_space<vmem>>, vector<1x128xf32>
    %38 = vector.broadcast %37 : vector<1x128xf32> to vector<16x128xf32>
    %39 = arith.addf %36, %38 : vector<16x128xf32>
    %40 = arith.negf %39 : vector<16x128xf32>
    %41 = math.exp %40 : vector<16x128xf32>
    %cst_20 = arith.constant 1.000000e+00 : f32
    %42 = vector.broadcast %cst_20 : f32 to vector<16x128xf32>
    %43 = arith.addf %42, %41 : vector<16x128xf32>
    %44 = arith.divf %42, %43 : vector<16x128xf32>
    %c0_21 = arith.constant 0 : index
    %c0_22 = arith.constant 0 : index
    %45 = vector.load %arg10[%c0_21, %c0_22] : memref<16x128xf32, #tpu.memory_space<vmem>>, vector<16x128xf32>
    tpu.vector_store %arg10[%c0_21, %c0_22], %44 {strides = array<i32>} : memref<16x128xf32, #tpu.memory_space<vmem>>, vector<16x128xf32>,
    return
  }
  func.func @transform_0(%arg0: i32) -> (i32, i32) {
    %c0_i32 = arith.constant 0 : i32
    %c0_i32_0 = arith.constant 0 : i32
    return %arg0, %c0_i32 : i32, i32
  }
  func.func @transform_1(%arg0: i32) -> (i32, i32) {
    %c0_i32 = arith.constant 0 : i32
    %c0_i32_0 = arith.constant 0 : i32
    return %arg0, %c0_i32 : i32, i32
  }
  func.func @transform_2(%arg0: i32) -> (i32, i32) {
    %c0_i32 = arith.constant 0 : i32
    %c0_i32_0 = arith.constant 0 : i32
    return %arg0, %c0_i32 : i32, i32
  }
  func.func @transform_3(%arg0: i32) -> (i32, i32) {
    %c0_i32 = arith.constant 0 : i32
    %c0_i32_0 = arith.constant 0 : i32
    %c0_i32_1 = arith.constant 0 : i32
    return %c0_i32, %c0_i32_0 : i32, i32
  }
  func.func @transform_4(%arg0: i32) -> (i32, i32) {
    %c0_i32 = arith.constant 0 : i32
    %c0_i32_0 = arith.constant 0 : i32
    %c0_i32_1 = arith.constant 0 : i32
    return %c0_i32, %c0_i32_0 : i32, i32
  }
  func.func @transform_5(%arg0: i32) -> (i32, i32) {
    %c0_i32 = arith.constant 0 : i32
    %c0_i32_0 = arith.constant 0 : i32
    %c0_i32_1 = arith.constant 0 : i32
    return %c0_i32, %c0_i32_0 : i32, i32
  }
  func.func @transform_6(%arg0: i32) -> (i32, i32) {
    %c0_i32 = arith.constant 0 : i32
    %c0_i32_0 = arith.constant 0 : i32
    %c0_i32_1 = arith.constant 0 : i32
    return %c0_i32, %c0_i32_0 : i32, i32
  }
  func.func @transform_7(%arg0: i32) -> (i32, i32) {
    %c0_i32 = arith.constant 0 : i32
    %c0_i32_0 = arith.constant 0 : i32
    %c0_i32_1 = arith.constant 0 : i32
    return %c0_i32, %c0_i32_0 : i32, i32
  }
  func.func @transform_8(%arg0: i32) -> (i32, i32) {
    %c0_i32 = arith.constant 0 : i32
    %c0_i32_0 = arith.constant 0 : i32
    %c0_i32_1 = arith.constant 0 : i32
    return %c0_i32, %c0_i32_0 : i32, i32
  }
  func.func @transform_9(%arg0: i32) -> (i32, i32) {
    %c0_i32 = arith.constant 0 : i32
    %c0_i32_0 = arith.constant 0 : i32
    return %arg0, %c0_i32 : i32, i32
  }
}

</mosaic_0001>

<llo_original>
// kernel: sam_m2m_forward.3
$region0: #{sam_m2m_forward.3}
  #allocation0 [shape = 'u32[]', space=smem, size = 0x4, offset = 0x4, fixed_abs, tag = 'smem constant byte address 0x4 - core index']
  #allocation1 [shape = 'u32[144,128]{1,0:T(1,128)}', space=vmem, size = 0x12000, scoped, tag = 'internal scratch']
  %s0 = inlined_call_operand.vmem [shape: f32[32,256], index: 0, kind: input, shape index: {}]
  %s1 = inlined_call_operand.vmem [shape: f32[32,3], index: 1, kind: input, shape index: {}]
  %s2 = inlined_call_operand.vmem [shape: f32[32,128], index: 2, kind: input, shape index: {}]
  %s3 = inlined_call_operand.vmem [shape: bf16[256,128], index: 3, kind: input, shape index: {}]
  %s4 = inlined_call_operand.vmem [shape: f32[3,128], index: 4, kind: input, shape index: {}]
  %s5 = inlined_call_operand.vmem [shape: bf16[128,128], index: 5, kind: input, shape index: {}]
  %s6 = inlined_call_operand.vmem [shape: f32[1,128], index: 6, kind: input, shape index: {}, may-alias: {6,8}]
  %s7 = inlined_call_operand.vmem [shape: bf16[128,128], index: 7, kind: input, shape index: {}]
  %s8 = inlined_call_operand.vmem [shape: f32[1,128], index: 8, kind: input, shape index: {}, may-alias: {6,8}]
  %s9 = inlined_call_operand.vmem [shape: f32[32,128], index: 9, kind: output, shape index: {}]
  %s10 = sld [smem:[#allocation0]]
  $region69: #{sam_m2m_forward.3} parent=0
    _
  %s12 = ssub.s32 1, %s10
  %s13 = scalar_select 0, %s12, %s10
  loop: start=0, step=1, limit=4
  $region2: #{sam_m2m_forward.3} parent=0 // loop_pre_header
    _
  $region3: #{sam_m2m_forward.3} parent=0 // loop_header
    %s15 = sphi 0, %s19
    %p16 = scmp.ge.s32.totalorder %s15, 4
    %s25 = sphi 0, %s27
    %s28 = sphi 0, %s25
    %s29 = sphi 0, %s28
    %s45 = sphi 0, %s29
    %s51 = sphi 0, %s53
    %s54 = sphi 0, %s51
    %s55 = sphi 0, %s54
    %s71 = sphi 0, %s55
    %s77 = sphi 0, %s79
    %s80 = sphi 0, %s77
    %s81 = sphi 0, %s80
    %s97 = sphi 0, %s81
    %s101 = sphi 0, %s101
    %s103 = sphi 0, %s101
    %s104 = sphi 0, %s103
    %s118 = sphi 0, %s104
    %s122 = sphi 0, %s122
    %s124 = sphi 0, %s122
    %s125 = sphi 0, %s124
    %s139 = sphi 0, %s125
    %s143 = sphi 0, %s143
    %s145 = sphi 0, %s143
    %s146 = sphi 0, %s145
    %s160 = sphi 0, %s146
    %s164 = sphi 0, %s164
    %s166 = sphi 0, %s164
    %s167 = sphi 0, %s166
    %s181 = sphi 0, %s167
    %s185 = sphi 0, %s185
    %s187 = sphi 0, %s185
    %s188 = sphi 0, %s187
    %s202 = sphi 0, %s188
    %s206 = sphi 0, %s206
    %s208 = sphi 0, %s206
    %s209 = sphi 0, %s208
    %s223 = sphi 0, %s209
    %s229 = sphi 0, %s231
    %s232 = sphi 0, %s229
    %s233 = sphi 0, %s232
    %s249 = sphi 0, %s233
  $region4: #{sam_m2m_forward.3} parent=0 // loop_header_branch
    %18 = sbr.rel (%p16) target = $region8
  $region5: #{sam_m2m_forward.3} parent=0 // loop_body
    %s20 = ssub.s32 %s15, 1
    %s21 = ssub.s32 %s15, 2
    %s22 = sadd.s32 %s15, 1
    %s23 = ssub.s32 %s15, %s22
    %p24 = scmp.eq.s32.totalorder %s23, 0
    %s26 = sadd.s32 %s25, 1
    %s27 = scalar_select %p24, %s25, %s26
    %p30 = pneg %p24
    %p31 = scmp.eq.s32.totalorder %s15, 1
    %p32 = por %p30, %p31
    %p33 = scmp.ne.s32.totalorder %s25, %s28
    %p34 = scmp.eq.s32.totalorder %s15, 0
    %p35 = por %p33, %p34
    %p36 = scmp.ne.s32.totalorder %s25, %s28
    %p37 = scmp.eq.s32.totalorder %s20, 1
    %p38 = por %p36, %p37
    %p39 = scmp.ne.s32.totalorder %s28, %s29
    %p40 = scmp.eq.s32.totalorder %s20, 0
    %p41 = por %p39, %p40
    %p42 = scmp.ne.s32.totalorder %s28, %s29
    %p43 = scmp.eq.s32.totalorder %s21, 1
    %p44 = por %p42, %p43
    %p46 = scmp.ne.s32.totalorder %s29, %s45
    %p47 = scmp.eq.s32.totalorder %s21, 0
    %p48 = por %p46, %p47
    %s49 = ssub.s32 %s15, %s22
    %p50 = scmp.eq.s32.totalorder %s49, 0
    %s52 = sadd.s32 %s51, 1
    %s53 = scalar_select %p50, %s51, %s52
    %p56 = pneg %p50
    %p57 = scmp.eq.s32.totalorder %s15, 1
    %p58 = por %p56, %p57
    %p59 = scmp.ne.s32.totalorder %s51, %s54
    %p60 = scmp.eq.s32.totalorder %s15, 0
    %p61 = por %p59, %p60
    %p62 = scmp.ne.s32.totalorder %s51, %s54
    %p63 = scmp.eq.s32.totalorder %s20, 1
    %p64 = por %p62, %p63
    %p65 = scmp.ne.s32.totalorder %s54, %s55
    %p66 = scmp.eq.s32.totalorder %s20, 0
    %p67 = por %p65, %p66
    %p68 = scmp.ne.s32.totalorder %s54, %s55
    %p69 = scmp.eq.s32.totalorder %s21, 1
    %p70 = por %p68, %p69
    %p72 = scmp.ne.s32.totalorder %s55, %s71
    %p73 = scmp.eq.s32.totalorder %s21, 0
    %p74 = por %p72, %p73
    %s75 = ssub.s32 %s15, %s22
    %p76 = scmp.eq.s32.totalorder %s75, 0
    %s78 = sadd.s32 %s77, 1
    %s79 = scalar_select %p76, %s77, %s78
    %p82 = pneg %p76
    %p83 = scmp.eq.s32.totalorder %s15, 1
    %p84 = por %p82, %p83
    %p85 = scmp.ne.s32.totalorder %s77, %s80
    %p86 = scmp.eq.s32.totalorder %s15, 0
    %p87 = por %p85, %p86
    %p88 = scmp.ne.s32.totalorder %s77, %s80
    %p89 = scmp.eq.s32.totalorder %s20, 1
    %p90 = por %p88, %p89
    %p91 = scmp.ne.s32.totalorder %s80, %s81
    %p92 = scmp.eq.s32.totalorder %s20, 0
    %p93 = por %p91, %p92
    %p94 = scmp.ne.s32.totalorder %s80, %s81
    %p95 = scmp.eq.s32.totalorder %s21, 1
    %p96 = por %p94, %p95
    %p98 = scmp.ne.s32.totalorder %s81, %s97
    %p99 = scmp.eq.s32.totalorder %s21, 0
    %p100 = por %p98, %p99
    %s102 = sadd.s32 %s101, 1
    %p105 = scmp.eq.s32.totalorder %s15, 1
    %p106 = scmp.ne.s32.totalorder %s101, %s103
    %p107 = scmp.eq.s32.totalorder %s15, 0
    %p108 = por %p106, %p107
    %p109 = scmp.ne.s32.totalorder %s101, %s103
    %p110 = scmp.eq.s32.totalorder %s20, 1
    %p111 = por %p109, %p110
    %p112 = scmp.ne.s32.totalorder %s103, %s104
    %p113 = scmp.eq.s32.totalorder %s20, 0
    %p114 = por %p112, %p113
    %p115 = scmp.ne.s32.totalorder %s103, %s104
    %p116 = scmp.eq.s32.totalorder %s21, 1
    %p117 = por %p115, %p116
    %p119 = scmp.ne.s32.totalorder %s104, %s118
    %p120 = scmp.eq.s32.totalorder %s21, 0
    %p121 = por %p119, %p120
    %s123 = sadd.s32 %s122, 1
    %p126 = scmp.eq.s32.totalorder %s15, 1
    %p127 = scmp.ne.s32.totalorder %s122, %s124
    %p128 = scmp.eq.s32.totalorder %s15, 0
    %p129 = por %p127, %p128
    %p130 = scmp.ne.s32.totalorder %s122, %s124
    %p131 = scmp.eq.s32.totalorder %s20, 1
    %p132 = por %p130, %p131
    %p133 = scmp.ne.s32.totalorder %s124, %s125
    %p134 = scmp.eq.s32.totalorder %s20, 0
    %p135 = por %p133, %p134
    %p136 = scmp.ne.s32.totalorder %s124, %s125
    %p137 = scmp.eq.s32.totalorder %s21, 1
    %p138 = por %p136, %p137
    %p140 = scmp.ne.s32.totalorder %s125, %s139
    %p141 = scmp.eq.s32.totalorder %s21, 0
    %p142 = por %p140, %p141
    %s144 = sadd.s32 %s143, 1
    %p147 = scmp.eq.s32.totalorder %s15, 1
    %p148 = scmp.ne.s32.totalorder %s143, %s145
    %p149 = scmp.eq.s32.totalorder %s15, 0
    %p150 = por %p148, %p149
    %p151 = scmp.ne.s32.totalorder %s143, %s145
    %p152 = scmp.eq.s32.totalorder %s20, 1
    %p153 = por %p151, %p152
    %p154 = scmp.ne.s32.totalorder %s145, %s146
    %p155 = scmp.eq.s32.totalorder %s20, 0
    %p156 = por %p154, %p155
    %p157 = scmp.ne.s32.totalorder %s145, %s146
    %p158 = scmp.eq.s32.totalorder %s21, 1
    %p159 = por %p157, %p158
    %p161 = scmp.ne.s32.totalorder %s146, %s160
    %p162 = scmp.eq.s32.totalorder %s21, 0
    %p163 = por %p161, %p162
    %s165 = sadd.s32 %s164, 1
    %p168 = scmp.eq.s32.totalorder %s15, 1
    %p169 = scmp.ne.s32.totalorder %s164, %s166
    %p170 = scmp.eq.s32.totalorder %s15, 0
    %p171 = por %p169, %p170
    %p172 = scmp.ne.s32.totalorder %s164, %s166
    %p173 = scmp.eq.s32.totalorder %s20, 1
    %p174 = por %p172, %p173
    %p175 = scmp.ne.s32.totalorder %s166, %s167
    %p176 = scmp.eq.s32.totalorder %s20, 0
    %p177 = por %p175, %p176
    %p178 = scmp.ne.s32.totalorder %s166, %s167
    %p179 = scmp.eq.s32.totalorder %s21, 1
    %p180 = por %p178, %p179
    %p182 = scmp.ne.s32.totalorder %s167, %s181
    %p183 = scmp.eq.s32.totalorder %s21, 0
    %p184 = por %p182, %p183
    %s186 = sadd.s32 %s185, 1
    %p189 = scmp.eq.s32.totalorder %s15, 1
    %p190 = scmp.ne.s32.totalorder %s185, %s187
    %p191 = scmp.eq.s32.totalorder %s15, 0
    %p192 = por %p190, %p191
    %p193 = scmp.ne.s32.totalorder %s185, %s187
    %p194 = scmp.eq.s32.totalorder %s20, 1
    %p195 = por %p193, %p194
    %p196 = scmp.ne.s32.totalorder %s187, %s188
    %p197 = scmp.eq.s32.totalorder %s20, 0
    %p198 = por %p196, %p197
    %p199 = scmp.ne.s32.totalorder %s187, %s188
    %p200 = scmp.eq.s32.totalorder %s21, 1
    %p201 = por %p199, %p200
    %p203 = scmp.ne.s32.totalorder %s188, %s202
    %p204 = scmp.eq.s32.totalorder %s21, 0
    %p205 = por %p203, %p204
    %s207 = sadd.s32 %s206, 1
    %p210 = scmp.eq.s32.totalorder %s15, 1
    %p211 = scmp.ne.s32.totalorder %s206, %s208
    %p212 = scmp.eq.s32.totalorder %s15, 0
    %p213 = por %p211, %p212
    %p214 = scmp.ne.s32.totalorder %s206, %s208
    %p215 = scmp.eq.s32.totalorder %s20, 1
    %p216 = por %p214, %p215
    %p217 = scmp.ne.s32.totalorder %s208, %s209
    %p218 = scmp.eq.s32.totalorder %s20, 0
    %p219 = por %p217, %p218
    %p220 = scmp.ne.s32.totalorder %s208, %s209
    %p221 = scmp.eq.s32.totalorder %s21, 1
    %p222 = por %p220, %p221
    %p224 = scmp.ne.s32.totalorder %s209, %s223
    %p225 = scmp.eq.s32.totalorder %s21, 0
    %p226 = por %p224, %p225
    %s227 = ssub.s32 %s15, %s22
    %p228 = scmp.eq.s32.totalorder %s227, 0
    %s230 = sadd.s32 %s229, 1
    %s231 = scalar_select %p228, %s229, %s230
    %p234 = pneg %p228
    %p235 = scmp.eq.s32.totalorder %s15, 1
    %p236 = por %p234, %p235
    %p237 = scmp.ne.s32.totalorder %s229, %s232
    %p238 = scmp.eq.s32.totalorder %s15, 0
    %p239 = por %p237, %p238
    %p240 = scmp.ne.s32.totalorder %s229, %s232
    %p241 = scmp.eq.s32.totalorder %s20, 1
    %p242 = por %p240, %p241
    %p243 = scmp.ne.s32.totalorder %s232, %s233
    %p244 = scmp.eq.s32.totalorder %s20, 0
    %p245 = por %p243, %p244
    %p246 = scmp.ne.s32.totalorder %s232, %s233
    %p247 = scmp.eq.s32.totalorder %s21, 1
    %p248 = por %p246, %p247
    %p250 = scmp.ne.s32.totalorder %s233, %s249
    %p251 = scmp.eq.s32.totalorder %s21, 0
    %p252 = por %p250, %p251
    %p253 = scmp.le.s32.totalorder 1, %s15
    %p254 = scmp.lt.s32.totalorder %s15, 3
    %p255 = pnand %p253, %p254
    %p256 = pneg %p255
    // Predicated region
    $region9: #{sam_m2m_forward.3} parent=5 // pred_check
      _
    $region10: #{sam_m2m_forward.3} parent=5 // pred_check_branch
      %258 = sbr.rel (%p255) target = $region12
    $region11: #{sam_m2m_forward.3} parent=5 // pred_region
      %s259 = ssub.s32 %s15, 1
      // Predicated region
      $region13: #{sam_m2m_forward.3} parent=11 // pred_check
        %p260 = pneg %p114
      $region14: #{sam_m2m_forward.3} parent=11 // pred_check_branch
        %262 = sbr.rel (%p260) target = $region16
      $region15: #{sam_m2m_forward.3} parent=11 // pred_region
        _
      $region16: #{sam_m2m_forward.3} parent=11 // pred_fallthru
        _
      // Predicated region
      $region17: #{sam_m2m_forward.3} parent=11 // pred_check
        %p263 = pneg %p135
      $region18: #{sam_m2m_forward.3} parent=11 // pred_check_branch
        %265 = sbr.rel (%p263) target = $region20
      $region19: #{sam_m2m_forward.3} parent=11 // pred_region
        _
      $region20: #{sam_m2m_forward.3} parent=11 // pred_fallthru
        _
      // Predicated region
      $region21: #{sam_m2m_forward.3} parent=11 // pred_check
        %p266 = pneg %p156
      $region22: #{sam_m2m_forward.3} parent=11 // pred_check_branch
        %268 = sbr.rel (%p266) target = $region24
      $region23: #{sam_m2m_forward.3} parent=11 // pred_region
        _
      $region24: #{sam_m2m_forward.3} parent=11 // pred_fallthru
        _
      // Predicated region
      $region25: #{sam_m2m_forward.3} parent=11 // pred_check
        %p269 = pneg %p177
      $region26: #{sam_m2m_forward.3} parent=11 // pred_check_branch
        %271 = sbr.rel (%p269) target = $region28
      $region27: #{sam_m2m_forward.3} parent=11 // pred_region
        _
      $region28: #{sam_m2m_forward.3} parent=11 // pred_fallthru
        _
      // Predicated region
      $region29: #{sam_m2m_forward.3} parent=11 // pred_check
        %p272 = pneg %p198
      $region30: #{sam_m2m_forward.3} parent=11 // pred_check_branch
        %274 = sbr.rel (%p272) target = $region32
      $region31: #{sam_m2m_forward.3} parent=11 // pred_region
        _
      $region32: #{sam_m2m_forward.3} parent=11 // pred_fallthru
        _
      // Predicated region
      $region33: #{sam_m2m_forward.3} parent=11 // pred_check
        %p275 = pneg %p219
      $region34: #{sam_m2m_forward.3} parent=11 // pred_check_branch
        %277 = sbr.rel (%p275) target = $region36
      $region35: #{sam_m2m_forward.3} parent=11 // pred_region
        _
      $region36: #{sam_m2m_forward.3} parent=11 // pred_fallthru
        _
    $region12: #{sam_m2m_forward.3} parent=5 // pred_fallthru
      _
    %p278 = scmp.lt.s32.totalorder %s15, 2
    // Predicated region
    $region37: #{sam_m2m_forward.3} parent=5 // pred_check
      %p279 = pneg %p278
    $region38: #{sam_m2m_forward.3} parent=5 // pred_check_branch
      %281 = sbr.rel (%p279) target = $region40
    $region39: #{sam_m2m_forward.3} parent=5 // pred_region
      // Predicated region
      $region41: #{sam_m2m_forward.3} parent=39 // pred_check
        %p282 = pneg %p35
      $region42: #{sam_m2m_forward.3} parent=39 // pred_check_branch
        %284 = sbr.rel (%p282) target = $region44
      $region43: #{sam_m2m_forward.3} parent=39 // pred_region
        %s285 = smul.u32 2, %s15
        %p286 = scmp.lt.s32.totalorder %s285, 3
        %s287 = scalar_select %p286, %s285, 3
        %s288 = smul.addr %s287, 2
        %s289 = smul.addr %s288, 8
        %s290 = scalar_lea.vmem %s0, %s289
        %s291 = smul.u32 2, %s15
      $region44: #{sam_m2m_forward.3} parent=39 // pred_fallthru
        _
      // Predicated region
      $region45: #{sam_m2m_forward.3} parent=39 // pred_check
        %p292 = pneg %p61
      $region46: #{sam_m2m_forward.3} parent=39 // pred_check_branch
        %294 = sbr.rel (%p292) target = $region48
      $region47: #{sam_m2m_forward.3} parent=39 // pred_region
        %s295 = smul.u32 2, %s15
        %p296 = scmp.lt.s32.totalorder %s295, 3
        %s297 = scalar_select %p296, %s295, 3
        %s298 = smul.addr %s297, 8
        %s299 = scalar_lea.vmem %s1, %s298
        %s300 = smul.u32 2, %s15
      $region48: #{sam_m2m_forward.3} parent=39 // pred_fallthru
        _
      // Predicated region
      $region49: #{sam_m2m_forward.3} parent=39 // pred_check
        %p301 = pneg %p87
      $region50: #{sam_m2m_forward.3} parent=39 // pred_check_branch
        %303 = sbr.rel (%p301) target = $region52
      $region51: #{sam_m2m_forward.3} parent=39 // pred_region
        %s304 = smul.u32 2, %s15
        %p305 = scmp.lt.s32.totalorder %s304, 3
        %s306 = scalar_select %p305, %s304, 3
        %s307 = smul.addr %s306, 8
        %s308 = scalar_lea.vmem %s2, %s307
        %s309 = smul.u32 2, %s15
      $region52: #{sam_m2m_forward.3} parent=39 // pred_fallthru
        _
    $region40: #{sam_m2m_forward.3} parent=5 // pred_fallthru
      _
    %p310 = scmp.le.s32.totalorder 1, %s15
    %p311 = scmp.lt.s32.totalorder %s15, 3
    %p312 = pnand %p310, %p311
    %p313 = pneg %p312
    // Predicated region
    $region53: #{sam_m2m_forward.3} parent=5 // pred_check
      _
    $region54: #{sam_m2m_forward.3} parent=5 // pred_check_branch
      %315 = sbr.rel (%p312) target = $region56
    $region55: #{sam_m2m_forward.3} parent=5 // pred_region
      %s316 = ssub.s32 %s15, 1
      %s317 = smul.u32 2, %s20
      %p318 = scmp.lt.s32.totalorder %s317, 3
      %s319 = scalar_select %p318, %s317, 3
      %s320 = smul.addr %s319, 2
      %s321 = smul.addr %s320, 8
      %s322 = scalar_lea.vmem %s0, %s321
      %p323 = pneg %p41
      %p324 = pneg %p38
      %s325 = smul.u32 2, %s20
      %p326 = scmp.lt.s32.totalorder %s325, 3
      %s327 = scalar_select %p326, %s325, 3
      %s328 = smul.addr %s327, 8
      %s329 = scalar_lea.vmem %s1, %s328
      %p330 = pneg %p67
      %p331 = pneg %p64
      %s332 = smul.u32 2, %s20
      %p333 = scmp.lt.s32.totalorder %s332, 3
      %s334 = scalar_select %p333, %s332, 3
      %s335 = smul.addr %s334, 8
      %s336 = scalar_lea.vmem %s2, %s335
      %p337 = pneg %p93
      %p338 = pneg %p90
      %p339 = pneg %p114
      %p340 = pneg %p111
      %p341 = pneg %p135
      %p342 = pneg %p132
      %p343 = pneg %p156
      %p344 = pneg %p153
      %p345 = pneg %p177
      %p346 = pneg %p174
      %p347 = pneg %p198
      %p348 = pneg %p195
      %p349 = pneg %p219
      %p350 = pneg %p216
      %p351 = pneg %p245
      %p352 = pneg %p242
      %s353 = smul.u32 2, %s20
      %p354 = scmp.lt.s32.totalorder %s353, 3
      %s355 = scalar_select %p354, %s353, 3
      %s356 = smul.addr %s355, 8
      %s357 = scalar_lea.vmem %s9, %s356
      %s358 = smul.u32 2, %s20
      %p359 = scmp.lt.s32.totalorder %s358, 3
      %s360 = scalar_select %p359, %s358, 3
      %s361 = smul.addr %s360, 2
      %s362 = smul.addr %s361, 8
      %s363 = scalar_lea.vmem %s0, %s362
      %s364 = smul.u32 2, %s20
      %s365 = smul.u32 2, %s20
      %p366 = scmp.lt.s32.totalorder %s365, 3
      %s367 = scalar_select %p366, %s365, 3
      %s368 = smul.addr %s367, 8
      %s369 = scalar_lea.vmem %s1, %s368
      %s370 = smul.u32 2, %s20
      %s371 = smul.u32 2, %s20
      %p372 = scmp.lt.s32.totalorder %s371, 3
      %s373 = scalar_select %p372, %s371, 3
      %s374 = smul.addr %s373, 8
      %s375 = scalar_lea.vmem %s2, %s374
      %s376 = smul.u32 2, %s20
      %s377 = smul.u32 2, %s20
      %p378 = scmp.lt.s32.totalorder %s377, 3
      %s379 = scalar_select %p378, %s377, 3
      %s380 = smul.addr %s379, 8
      %s381 = scalar_lea.vmem %s9, %s380
      %s382 = smul.u32 2, %s20
      %v384 = vld [vmem:[%s363] sm:$0xff]
      %v385 = vld [vmem:[%s363 + $0x8] sm:$0xff]
      %v386 = vld [vmem:[%s363 + $0x10] sm:$0xff]
      %v387 = vld [vmem:[%s363 + $0x18] sm:$0xff]
      %v388 = vpack.c.bf16 %v386, %v384
      %v389 = vpack.c.bf16 %v387, %v385
      %v390 = vld [vmem:[%s3] sm:$0xf]
      %v391 = vld [vmem:[%s3 + $0x4] sm:$0xf]
      %v392 = vld [vmem:[%s3 + $0x8] sm:$0xf]
      %v393 = vld [vmem:[%s3 + $0xc] sm:$0xf]
      %v394 = vld [vmem:[%s3 + $0x10] sm:$0xf]
      %v395 = vld [vmem:[%s3 + $0x14] sm:$0xf]
      %v396 = vld [vmem:[%s3 + $0x18] sm:$0xf]
      %v397 = vld [vmem:[%s3 + $0x1c] sm:$0xf]
      %v398 = vld [vmem:[%s3 + $0x20] sm:$0xf]
      %v399 = vld [vmem:[%s3 + $0x24] sm:$0xf]
      %v400 = vld [vmem:[%s3 + $0x28] sm:$0xf]
      %v401 = vld [vmem:[%s3 + $0x2c] sm:$0xf]
      %v402 = vld [vmem:[%s3 + $0x30] sm:$0xf]
      %v403 = vld [vmem:[%s3 + $0x34] sm:$0xf]
      %v404 = vld [vmem:[%s3 + $0x38] sm:$0xf]
      %v405 = vld [vmem:[%s3 + $0x3c] sm:$0xf]
      %v406 = vld [vmem:[%s3 + $0x40] sm:$0xf]
      %v407 = vld [vmem:[%s3 + $0x44] sm:$0xf]
      %v408 = vld [vmem:[%s3 + $0x48] sm:$0xf]
      %v409 = vld [vmem:[%s3 + $0x4c] sm:$0xf]
      %v410 = vld [vmem:[%s3 + $0x50] sm:$0xf]
      %v411 = vld [vmem:[%s3 + $0x54] sm:$0xf]
      %v412 = vld [vmem:[%s3 + $0x58] sm:$0xf]
      %v413 = vld [vmem:[%s3 + $0x5c] sm:$0xf]
      %v414 = vld [vmem:[%s3 + $0x60] sm:$0xf]
      %v415 = vld [vmem:[%s3 + $0x64] sm:$0xf]
      %v416 = vld [vmem:[%s3 + $0x68] sm:$0xf]
      %v417 = vld [vmem:[%s3 + $0x6c] sm:$0xf]
      %v418 = vld [vmem:[%s3 + $0x70] sm:$0xf]
      %v419 = vld [vmem:[%s3 + $0x74] sm:$0xf]
      %v420 = vld [vmem:[%s3 + $0x78] sm:$0xf]
      %v421 = vld [vmem:[%s3 + $0x7c] sm:$0xf]
      %v422 = vld [vmem:[%s375] sm:$0xff]
      %v423 = vld [vmem:[%s375 + $0x8] sm:$0xff]
      %v424 = vpack.c.bf16 %v423, %v422
      %v425 = vld [vmem:[%s5] sm:$0xf]
      %v426 = vld [vmem:[%s5 + $0x4] sm:$0xf]
      %v427 = vld [vmem:[%s5 + $0x8] sm:$0xf]
      %v428 = vld [vmem:[%s5 + $0xc] sm:$0xf]
      %v429 = vld [vmem:[%s5 + $0x10] sm:$0xf]
      %v430 = vld [vmem:[%s5 + $0x14] sm:$0xf]
      %v431 = vld [vmem:[%s5 + $0x18] sm:$0xf]
      %v432 = vld [vmem:[%s5 + $0x1c] sm:$0xf]
      %v433 = vld [vmem:[%s5 + $0x20] sm:$0xf]
      %v434 = vld [vmem:[%s5 + $0x24] sm:$0xf]
      %v435 = vld [vmem:[%s5 + $0x28] sm:$0xf]
      %v436 = vld [vmem:[%s5 + $0x2c] sm:$0xf]
      %v437 = vld [vmem:[%s5 + $0x30] sm:$0xf]
      %v438 = vld [vmem:[%s5 + $0x34] sm:$0xf]
      %v439 = vld [vmem:[%s5 + $0x38] sm:$0xf]
      %v440 = vld [vmem:[%s5 + $0x3c] sm:$0xf]
      %v457 = vunpack.c.l.b16 %v425
      %v458 = vunpack.c.l.b16 %v426
      %v459 = vunpack.c.l.b16 %v427
      %v460 = vunpack.c.l.b16 %v428
      %v461 = vunpack.c.l.b16 %v429
      %v462 = vunpack.c.l.b16 %v430
      %v463 = vunpack.c.l.b16 %v431
      %v464 = vunpack.c.l.b16 %v432
      %v465 = vunpack.c.l.b16 %v433
      %v466 = vunpack.c.l.b16 %v434
      %v467 = vunpack.c.l.b16 %v435
      %v468 = vunpack.c.l.b16 %v436
      %v469 = vunpack.c.l.b16 %v437
      %v470 = vunpack.c.l.b16 %v438
      %v471 = vunpack.c.l.b16 %v439
      %v472 = vunpack.c.l.b16 %v440
      %v473 = vpack.c.b16 %v458, %v457
      %v474 = vpack.c.b16 %v460, %v459
      %v475 = vpack.c.b16 %v462, %v461
      %v476 = vpack.c.b16 %v464, %v463
      %v477 = vpack.c.b16 %v466, %v465
      %v478 = vpack.c.b16 %v468, %v467
      %v479 = vpack.c.b16 %v470, %v469
      %v480 = vpack.c.b16 %v472, %v471
      %489 = vmatprep.subr.bf16.mxu0 0
      %490 = vmatpush1.bf16.msra.mxu0 %v473
      %491 = vmatprep.subr.bf16.mxu0 0
      %492 = vmatpush1.bf16.msra.mxu0 %v474
      %493 = vmatprep.subr.bf16.mxu0 0
      %494 = vmatpush1.bf16.msra.mxu0 %v475
      %495 = vmatprep.subr.bf16.mxu0 0
      %496 = vmatpush1.bf16.msra.mxu0 %v476
      %497 = vmatprep.subr.bf16.mxu0 0
      %498 = vmatpush1.bf16.msra.mxu0 %v477
      %499 = vmatprep.subr.bf16.mxu0 0
      %500 = vmatpush1.bf16.msra.mxu0 %v478
      %501 = vmatprep.subr.bf16.mxu0 0
      %502 = vmatpush1.bf16.msra.mxu0 %v479
      %503 = vmatprep.subr.bf16.mxu0 0
      %504 = vmatpush1.bf16.msra.mxu0 %v480
      %505 = vmatprep.subr.bf16.mxu0 0
      %506 = vmatpush1.bf16.msra.mxu0 0
      %507 = vmatprep.subr.bf16.mxu0 0
      %508 = vmatpush1.bf16.msra.mxu0 0
      %509 = vmatprep.subr.bf16.mxu0 0
      %510 = vmatpush1.bf16.msra.mxu0 0
      %511 = vmatprep.subr.bf16.mxu0 0
      %512 = vmatpush1.bf16.msra.mxu0 0
      %513 = vmatprep.subr.bf16.mxu0 0
      %514 = vmatpush1.bf16.msra.mxu0 0
      %515 = vmatprep.subr.bf16.mxu0 0
      %516 = vmatpush1.bf16.msra.mxu0 0
      %517 = vmatprep.subr.bf16.mxu0 0
      %518 = vmatpush1.bf16.msra.mxu0 0
      %519 = vmatprep.subr.bf16.mxu0 0
      %520 = vmatpush1.bf16.msra.mxu0 0
      %521 = vmatprep.mubr.bf16.mxu0 0
      %522 = vmatmul.mubr.bf16.gmra.mrb[0].mxu0 %v424
      %v523 = vpop.f32.mrb[0].mxu0
      %v524 = vadd.f32 0.0, %v523
      %v525 = vpop.f32.mrb[0].mxu0
      %v526 = vpop.f32.mrb[0].mxu0
      %v527 = vadd.f32 0.0, %v526
      %v528 = vpop.f32.mrb[0].mxu0
      %529 = vdwg.mxu0
      %v562 = vunpack.c.l.b16 %v390
      %v563 = vunpack.c.l.b16 %v391
      %v564 = vunpack.c.l.b16 %v392
      %v565 = vunpack.c.l.b16 %v393
      %v566 = vunpack.c.l.b16 %v394
      %v567 = vunpack.c.l.b16 %v395
      %v568 = vunpack.c.l.b16 %v396
      %v569 = vunpack.c.l.b16 %v397
      %v570 = vunpack.c.l.b16 %v398
      %v571 = vunpack.c.l.b16 %v399
      %v572 = vunpack.c.l.b16 %v400
      %v573 = vunpack.c.l.b16 %v401
      %v574 = vunpack.c.l.b16 %v402
      %v575 = vunpack.c.l.b16 %v403
      %v576 = vunpack.c.l.b16 %v404
      %v577 = vunpack.c.l.b16 %v405
      %v578 = vunpack.c.l.b16 %v406
      %v579 = vunpack.c.l.b16 %v407
      %v580 = vunpack.c.l.b16 %v408
      %v581 = vunpack.c.l.b16 %v409
      %v582 = vunpack.c.l.b16 %v410
      %v583 = vunpack.c.l.b16 %v411
      %v584 = vunpack.c.l.b16 %v412
      %v585 = vunpack.c.l.b16 %v413
      %v586 = vunpack.c.l.b16 %v414
      %v587 = vunpack.c.l.b16 %v415
      %v588 = vunpack.c.l.b16 %v416
      %v589 = vunpack.c.l.b16 %v417
      %v590 = vunpack.c.l.b16 %v418
      %v591 = vunpack.c.l.b16 %v419
      %v592 = vunpack.c.l.b16 %v420
      %v593 = vunpack.c.l.b16 %v421
      %v594 = vpack.c.b16 %v563, %v562
      %v595 = vpack.c.b16 %v565, %v564
      %v596 = vpack.c.b16 %v567, %v566
      %v597 = vpack.c.b16 %v569, %v568
      %v598 = vpack.c.b16 %v571, %v570
      %v599 = vpack.c.b16 %v573, %v572
      %v600 = vpack.c.b16 %v575, %v574
      %v601 = vpack.c.b16 %v577, %v576
      %v602 = vpack.c.b16 %v579, %v578
      %v603 = vpack.c.b16 %v581, %v580
      %v604 = vpack.c.b16 %v583, %v582
      %v605 = vpack.c.b16 %v585, %v584
      %v606 = vpack.c.b16 %v587, %v586
      %v607 = vpack.c.b16 %v589, %v588
      %v608 = vpack.c.b16 %v591, %v590
      %v609 = vpack.c.b16 %v593, %v592
      %626 = vmatprep.subr.bf16.mxu0 0
      %627 = vmatpush1.bf16.msra.mxu0 %v594
      %628 = vmatprep.subr.bf16.mxu0 0
      %629 = vmatpush1.bf16.msra.mxu0 %v595
      %630 = vmatprep.subr.bf16.mxu0 0
      %631 = vmatpush1.bf16.msra.mxu0 %v596
      %632 = vmatprep.subr.bf16.mxu0 0
      %633 = vmatpush1.bf16.msra.mxu0 %v597
      %634 = vmatprep.subr.bf16.mxu0 0
      %635 = vmatpush1.bf16.msra.mxu0 %v598
      %636 = vmatprep.subr.bf16.mxu0 0
      %637 = vmatpush1.bf16.msra.mxu0 %v599
      %638 = vmatprep.subr.bf16.mxu0 0
      %639 = vmatpush1.bf16.msra.mxu0 %v600
      %640 = vmatprep.subr.bf16.mxu0 0
      %641 = vmatpush1.bf16.msra.mxu0 %v601
      %642 = vmatprep.subr.bf16.mxu0 0
      %643 = vmatpush1.bf16.msra.mxu0 %v602
      %644 = vmatprep.subr.bf16.mxu0 0
      %645 = vmatpush1.bf16.msra.mxu0 %v603
      %646 = vmatprep.subr.bf16.mxu0 0
      %647 = vmatpush1.bf16.msra.mxu0 %v604
      %648 = vmatprep.subr.bf16.mxu0 0
      %649 = vmatpush1.bf16.msra.mxu0 %v605
      %650 = vmatprep.subr.bf16.mxu0 0
      %651 = vmatpush1.bf16.msra.mxu0 %v606
      %652 = vmatprep.subr.bf16.mxu0 0
      %653 = vmatpush1.bf16.msra.mxu0 %v607
      %654 = vmatprep.subr.bf16.mxu0 0
      %655 = vmatpush1.bf16.msra.mxu0 %v608
      %656 = vmatprep.subr.bf16.mxu0 0
      %657 = vmatpush1.bf16.msra.mxu0 %v609
      %658 = vmatprep.mubr.bf16.mxu0 %v389
      %659 = vmatmul.mubr.bf16.gmra.mrb[0].mxu0 %v388
      %v660 = vpop.f32.mrb[0].mxu0
      %v661 = vadd.f32 %v524, %v660
      %v662 = vpop.f32.mrb[0].mxu0
      %v663 = vpop.f32.mrb[0].mxu0
      %v664 = vadd.f32 %v527, %v663
      %v665 = vpop.f32.mrb[0].mxu0
      %666 = vdwg.mxu0
      %v667 = vld [vmem:[%s369] sm:$0xff]
      %v668 = vld [vmem:[%s369 + $0x8] sm:$0xff]
      %v669 = vld [vmem:[%s4] sm:$0x7]
      %671 = vset.pattern.permute.xlu0 0
      %672 = vperm.xlu0 %671, %v667
      %v673 = vpop.permute.xlu0 %672
      %676 = vset.pattern.permute.xlu0 0
      %677 = vperm.xlu0 %676, %v668
      %v678 = vpop.permute.xlu0 %677
      %v680 = vlaneseq
      %v681 = vshrl.u32 %v680, 7
      %v682 = vsub.s32 0, %v681
      %v683 = vrot.slane %v669, %v682
      %v684 = vmul.f32 %v673, %v683
      %v685 = vmul.f32 %v678, %v683
      %686 = vset.pattern.permute.xlu0 1
      %687 = vperm.xlu0 %686, %v667
      %v688 = vpop.permute.xlu0 %687
      %690 = vset.pattern.permute.xlu0 1
      %691 = vperm.xlu0 %690, %v668
      %v692 = vpop.permute.xlu0 %691
      %v694 = vlaneseq
      %v695 = vshrl.u32 %v694, 7
      %v696 = vsub.s32 1, %v695
      %v697 = vrot.slane %v669, %v696
      %v698 = vmul.f32 %v688, %v697
      %v699 = vmul.f32 %v692, %v697
      %v700 = vadd.f32 %v684, %v698
      %v701 = vadd.f32 %v685, %v699
      %702 = vset.pattern.permute.xlu0 2
      %703 = vperm.xlu0 %702, %v667
      %v704 = vpop.permute.xlu0 %703
      %706 = vset.pattern.permute.xlu0 2
      %707 = vperm.xlu0 %706, %v668
      %v708 = vpop.permute.xlu0 %707
      %v710 = vlaneseq
      %v711 = vshrl.u32 %v710, 7
      %v712 = vsub.s32 2, %v711
      %v713 = vrot.slane %v669, %v712
      %v714 = vmul.f32 %v704, %v713
      %v715 = vmul.f32 %v708, %v713
      %v716 = vadd.f32 %v700, %v714
      %v717 = vadd.f32 %v701, %v715
      %v718 = vadd.f32 %v661, %v716
      %v719 = vadd.f32 %v664, %v717
      %v720 = vld [vmem:[%s6] sm:$0x1]
      %v722 = vlaneseq
      %v723 = vshrl.u32 %v722, 7
      %v724 = vsub.s32 0, %v723
      %v725 = vrot.slane %v720, %v724
      %v727 = vadd.f32 %v718, %v725
      %v728 = vadd.f32 %v719, %v725
      %v729 = vmax.f32 %v727, 0.0
      %v730 = vmax.f32 %v728, 0.0
      %v731 = vpack.c.bf16 %v730, %v729
      %v732 = vld [vmem:[%s7] sm:$0xf]
      %v733 = vld [vmem:[%s7 + $0x4] sm:$0xf]
      %v734 = vld [vmem:[%s7 + $0x8] sm:$0xf]
      %v735 = vld [vmem:[%s7 + $0xc] sm:$0xf]
      %v736 = vld [vmem:[%s7 + $0x10] sm:$0xf]
      %v737 = vld [vmem:[%s7 + $0x14] sm:$0xf]
      %v738 = vld [vmem:[%s7 + $0x18] sm:$0xf]
      %v739 = vld [vmem:[%s7 + $0x1c] sm:$0xf]
      %v740 = vld [vmem:[%s7 + $0x20] sm:$0xf]
      %v741 = vld [vmem:[%s7 + $0x24] sm:$0xf]
      %v742 = vld [vmem:[%s7 + $0x28] sm:$0xf]
      %v743 = vld [vmem:[%s7 + $0x2c] sm:$0xf]
      %v744 = vld [vmem:[%s7 + $0x30] sm:$0xf]
      %v745 = vld [vmem:[%s7 + $0x34] sm:$0xf]
      %v746 = vld [vmem:[%s7 + $0x38] sm:$0xf]
      %v747 = vld [vmem:[%s7 + $0x3c] sm:$0xf]
      %v748 = vld [vmem:[%s8] sm:$0x1]
      %v750 = vlaneseq
      %v751 = vshrl.u32 %v750, 7
      %v752 = vsub.s32 0, %v751
      %v753 = vrot.slane %v748, %v752
      %v771 = vunpack.c.l.b16 %v732
      %v772 = vunpack.c.l.b16 %v733
      %v773 = vunpack.c.l.b16 %v734
      %v774 = vunpack.c.l.b16 %v735
      %v775 = vunpack.c.l.b16 %v736
      %v776 = vunpack.c.l.b16 %v737
      %v777 = vunpack.c.l.b16 %v738
      %v778 = vunpack.c.l.b16 %v739
      %v779 = vunpack.c.l.b16 %v740
      %v780 = vunpack.c.l.b16 %v741
      %v781 = vunpack.c.l.b16 %v742
      %v782 = vunpack.c.l.b16 %v743
      %v783 = vunpack.c.l.b16 %v744
      %v784 = vunpack.c.l.b16 %v745
      %v785 = vunpack.c.l.b16 %v746
      %v786 = vunpack.c.l.b16 %v747
      %v787 = vpack.c.b16 %v772, %v771
      %v788 = vpack.c.b16 %v774, %v773
      %v789 = vpack.c.b16 %v776, %v775
      %v790 = vpack.c.b16 %v778, %v777
      %v791 = vpack.c.b16 %v780, %v779
      %v792 = vpack.c.b16 %v782, %v781
      %v793 = vpack.c.b16 %v784, %v783
      %v794 = vpack.c.b16 %v786, %v785
      %803 = vmatprep.subr.bf16.mxu0 0
      %804 = vmatpush1.bf16.msra.mxu0 %v787
      %805 = vmatprep.subr.bf16.mxu0 0
      %806 = vmatpush1.bf16.msra.mxu0 %v788
      %807 = vmatprep.subr.bf16.mxu0 0
      %808 = vmatpush1.bf16.msra.mxu0 %v789
      %809 = vmatprep.subr.bf16.mxu0 0
      %810 = vmatpush1.bf16.msra.mxu0 %v790
      %811 = vmatprep.subr.bf16.mxu0 0
      %812 = vmatpush1.bf16.msra.mxu0 %v791
      %813 = vmatprep.subr.bf16.mxu0 0
      %814 = vmatpush1.bf16.msra.mxu0 %v792
      %815 = vmatprep.subr.bf16.mxu0 0
      %816 = vmatpush1.bf16.msra.mxu0 %v793
      %817 = vmatprep.subr.bf16.mxu0 0
      %818 = vmatpush1.bf16.msra.mxu0 %v794
      %819 = vmatprep.subr.bf16.mxu0 0
      %820 = vmatpush1.bf16.msra.mxu0 0
      %821 = vmatprep.subr.bf16.mxu0 0
      %822 = vmatpush1.bf16.msra.mxu0 0
      %823 = vmatprep.subr.bf16.mxu0 0
      %824 = vmatpush1.bf16.msra.mxu0 0
      %825 = vmatprep.subr.bf16.mxu0 0
      %826 = vmatpush1.bf16.msra.mxu0 0
      %827 = vmatprep.subr.bf16.mxu0 0
      %828 = vmatpush1.bf16.msra.mxu0 0
      %829 = vmatprep.subr.bf16.mxu0 0
      %830 = vmatpush1.bf16.msra.mxu0 0
      %831 = vmatprep.subr.bf16.mxu0 0
      %832 = vmatpush1.bf16.msra.mxu0 0
      %833 = vmatprep.subr.bf16.mxu0 0
      %834 = vmatpush1.bf16.msra.mxu0 0
      %835 = vmatprep.mubr.bf16.mxu0 0
      %836 = vmatmul.mubr.bf16.gmra.mrb[0].mxu0 %v731
      %v837 = vpop.f32.mrb[0].mxu0
      %v838 = vadd.f32 %v753, %v837
      %v839 = vpop.f32.mrb[0].mxu0
      %v840 = vpop.f32.mrb[0].mxu0
      %v841 = vadd.f32 %v753, %v840
      %v842 = vpop.f32.mrb[0].mxu0
      %843 = vdwg.mxu0
      %v844 = vxor.u32 %v838, 2147483648
      %v845 = vxor.u32 %v841, 2147483648
      %v846 = vmul.f32 %v844, 1.442695
      %v847 = vpow.pop %v846
      %v848 = vmul.f32 %v845, 1.442695
      %v849 = vpow.pop %v848
      %v850 = vadd.f32 %v847, 1.0
      %v851 = vadd.f32 %v849, 1.0
      %v852 = vrcp.pop %v850
      %v853 = vmul.f32 1.0, %v852
      %v854 = vrcp.pop %v851
      %v855 = vmul.f32 1.0, %v854
      %856 = vst [vmem:[%s381] sm:$0xff] %v853
      %857 = vst [vmem:[%s381 + $0x8] sm:$0xff] %v855
      %s858 = smul.u32 2, %s20
      %p859 = scmp.lt.s32.totalorder %s858, 3
      %s860 = scalar_select %p859, %s858, 3
      %s861 = smul.addr %s860, 8
      %s862 = scalar_lea.vmem %s9, %s861
      // Predicated region
      $region57: #{sam_m2m_forward.3} parent=55 // pred_check
        %p863 = pneg %p242
      $region58: #{sam_m2m_forward.3} parent=55 // pred_check_branch
        %865 = sbr.rel (%p863) target = $region60
      $region59: #{sam_m2m_forward.3} parent=55 // pred_region
        %s866 = smul.u32 2, %s20
      $region60: #{sam_m2m_forward.3} parent=55 // pred_fallthru
        _
    $region56: #{sam_m2m_forward.3} parent=5 // pred_fallthru
      _
    %p867 = scmp.le.s32.totalorder 2, %s15
    // Predicated region
    $region61: #{sam_m2m_forward.3} parent=5 // pred_check
      %p868 = pneg %p867
    $region62: #{sam_m2m_forward.3} parent=5 // pred_check_branch
      %870 = sbr.rel (%p868) target = $region64
    $region63: #{sam_m2m_forward.3} parent=5 // pred_region
      %s871 = ssub.s32 %s15, 2
      // Predicated region
      $region65: #{sam_m2m_forward.3} parent=63 // pred_check
        %p872 = pneg %p248
      $region66: #{sam_m2m_forward.3} parent=63 // pred_check_branch
        %874 = sbr.rel (%p872) target = $region68
      $region67: #{sam_m2m_forward.3} parent=63 // pred_region
        %s875 = smul.u32 2, %s21
        %p876 = scmp.lt.s32.totalorder %s875, 3
        %s877 = scalar_select %p876, %s875, 3
        %s878 = smul.addr %s877, 8
        %s879 = scalar_lea.vmem %s9, %s878
      $region68: #{sam_m2m_forward.3} parent=63 // pred_fallthru
        _
    $region64: #{sam_m2m_forward.3} parent=5 // pred_fallthru
      _
  $region6: #{sam_m2m_forward.3} parent=0 // loop_footer
    %s19 = sadd.s32 1, %s15
  $region7: #{sam_m2m_forward.3} parent=0 // loop_footer_branch
    %14 = sbr.rel target = $region3
  $region8: #{sam_m2m_forward.3} parent=0 // loop_exit
    _

// kernel: sam_m2m_forward.2
$region0: #{sam_m2m_forward.2}
  #allocation0 [shape = 'u32[]', space=smem, size = 0x4, offset = 0x4, fixed_abs, tag = 'smem constant byte address 0x4 - core index']
  #allocation1 [shape = 'u32[144,128]{1,0:T(1,128)}', space=vmem, size = 0x12000, scoped, tag = 'internal scratch']
  %s0 = inlined_call_operand.vmem [shape: f32[32,192], index: 0, kind: input, shape index: {}]
  %s1 = inlined_call_operand.vmem [shape: f32[32,1], index: 1, kind: input, shape index: {}]
  %s2 = inlined_call_operand.vmem [shape: bf16[192,128], index: 2, kind: input, shape index: {}]
  %s3 = inlined_call_operand.vmem [shape: f32[1,128], index: 3, kind: input, shape index: {}, may-alias: {3,5,7,11,13,17,21}]
  %s4 = inlined_call_operand.vmem [shape: f32[1,128], index: 4, kind: input, shape index: {}]
  %s5 = inlined_call_operand.vmem [shape: f32[1,128], index: 5, kind: input, shape index: {}, may-alias: {3,5,7,11,13,17,21}]
  %s6 = inlined_call_operand.vmem [shape: f32[1,128], index: 6, kind: input, shape index: {}, may-alias: {6,12}]
  %s7 = inlined_call_operand.vmem [shape: f32[1,128], index: 7, kind: input, shape index: {}, may-alias: {3,5,7,11,13,17,21}]
  %s8 = inlined_call_operand.vmem [shape: bf16[128,384], index: 8, kind: input, shape index: {}]
  %s9 = inlined_call_operand.vmem [shape: f32[1,384], index: 9, kind: input, shape index: {}]
  %s10 = inlined_call_operand.vmem [shape: bf16[128,128], index: 10, kind: input, shape index: {}]
  %s11 = inlined_call_operand.vmem [shape: f32[1,128], index: 11, kind: input, shape index: {}, may-alias: {3,5,7,11,13,17,21}]
  %s12 = inlined_call_operand.vmem [shape: f32[1,128], index: 12, kind: input, shape index: {}, may-alias: {6,12}]
  %s13 = inlined_call_operand.vmem [shape: f32[1,128], index: 13, kind: input, shape index: {}, may-alias: {3,5,7,11,13,17,21}]
  %s14 = inlined_call_operand.vmem [shape: bf16[128,256], index: 14, kind: input, shape index: {}]
  %s15 = inlined_call_operand.vmem [shape: f32[1,256], index: 15, kind: input, shape index: {}, may-alias: {15,19}]
  %s16 = inlined_call_operand.vmem [shape: bf16[256,128], index: 16, kind: input, shape index: {}]
  %s17 = inlined_call_operand.vmem [shape: f32[1,128], index: 17, kind: input, shape index: {}, may-alias: {3,5,7,11,13,17,21}]
  %s18 = inlined_call_operand.vmem [shape: bf16[128,256], index: 18, kind: input, shape index: {}]
  %s19 = inlined_call_operand.vmem [shape: f32[1,256], index: 19, kind: input, shape index: {}, may-alias: {15,19}]
  %s20 = inlined_call_operand.vmem [shape: bf16[256,128], index: 20, kind: input, shape index: {}]
  %s21 = inlined_call_operand.vmem [shape: f32[1,128], index: 21, kind: input, shape index: {}, may-alias: {3,5,7,11,13,17,21}]
  %s22 = inlined_call_operand.vmem [shape: f32[32,256], index: 22, kind: output, shape index: {0}]
  %s23 = inlined_call_operand.vmem [shape: f32[32,128], index: 23, kind: output, shape index: {1}]
  %24 = xla_tuple %s22, %s23
  %s25 = sld [smem:[#allocation0]]
  $region129: #{sam_m2m_forward.2} parent=0
    _
  %s27 = ssub.s32 1, %s25
  %s28 = scalar_select 0, %s27, %s25
  loop: start=0, step=1, limit=4
  $region2: #{sam_m2m_forward.2} parent=0 // loop_pre_header
    _
  $region3: #{sam_m2m_forward.2} parent=0 // loop_header
    %s30 = sphi 0, %s34
    %p31 = scmp.ge.s32.totalorder %s30, 4
    %s40 = sphi 0, %s42
    %s43 = sphi 0, %s40
    %s44 = sphi 0, %s43
    %s60 = sphi 0, %s44
    %s66 = sphi 0, %s68
    %s69 = sphi 0, %s66
    %s70 = sphi 0, %s69
    %s86 = sphi 0, %s70
    %s90 = sphi 0, %s90
    %s92 = sphi 0, %s90
    %s93 = sphi 0, %s92
    %s107 = sphi 0, %s93
    %s111 = sphi 0, %s111
    %s113 = sphi 0, %s111
    %s114 = sphi 0, %s113
    %s128 = sphi 0, %s114
    %s132 = sphi 0, %s132
    %s134 = sphi 0, %s132
    %s135 = sphi 0, %s134
    %s149 = sphi 0, %s135
    %s153 = sphi 0, %s153
    %s155 = sphi 0, %s153
    %s156 = sphi 0, %s155
    %s170 = sphi 0, %s156
    %s174 = sphi 0, %s174
    %s176 = sphi 0, %s174
    %s177 = sphi 0, %s176
    %s191 = sphi 0, %s177
    %s195 = sphi 0, %s195
    %s197 = sphi 0, %s195
    %s198 = sphi 0, %s197
    %s212 = sphi 0, %s198
    %s216 = sphi 0, %s216
    %s218 = sphi 0, %s216
    %s219 = sphi 0, %s218
    %s233 = sphi 0, %s219
    %s237 = sphi 0, %s237
    %s239 = sphi 0, %s237
    %s240 = sphi 0, %s239
    %s254 = sphi 0, %s240
    %s258 = sphi 0, %s258
    %s260 = sphi 0, %s258
    %s261 = sphi 0, %s260
    %s275 = sphi 0, %s261
    %s279 = sphi 0, %s279
    %s281 = sphi 0, %s279
    %s282 = sphi 0, %s281
    %s296 = sphi 0, %s282
    %s300 = sphi 0, %s300
    %s302 = sphi 0, %s300
    %s303 = sphi 0, %s302
    %s317 = sphi 0, %s303
    %s321 = sphi 0, %s321
    %s323 = sphi 0, %s321
    %s324 = sphi 0, %s323
    %s338 = sphi 0, %s324
    %s342 = sphi 0, %s342
    %s344 = sphi 0, %s342
    %s345 = sphi 0, %s344
    %s359 = sphi 0, %s345
    %s363 = sphi 0, %s363
    %s365 = sphi 0, %s363
    %s366 = sphi 0, %s365
    %s380 = sphi 0, %s366
    %s384 = sphi 0, %s384
    %s386 = sphi 0, %s384
    %s387 = sphi 0, %s386
    %s401 = sphi 0, %s387
    %s405 = sphi 0, %s405
    %s407 = sphi 0, %s405
    %s408 = sphi 0, %s407
    %s422 = sphi 0, %s408
    %s426 = sphi 0, %s426
    %s428 = sphi 0, %s426
    %s429 = sphi 0, %s428
    %s443 = sphi 0, %s429
    %s447 = sphi 0, %s447
    %s449 = sphi 0, %s447
    %s450 = sphi 0, %s449
    %s464 = sphi 0, %s450
    %s468 = sphi 0, %s468
    %s470 = sphi 0, %s468
    %s471 = sphi 0, %s470
    %s485 = sphi 0, %s471
    %s489 = sphi 0, %s489
    %s491 = sphi 0, %s489
    %s492 = sphi 0, %s491
    %s506 = sphi 0, %s492
    %s512 = sphi 0, %s514
    %s515 = sphi 0, %s512
    %s516 = sphi 0, %s515
    %s532 = sphi 0, %s516
    %s538 = sphi 0, %s540
    %s541 = sphi 0, %s538
    %s542 = sphi 0, %s541
    %s558 = sphi 0, %s542
  $region4: #{sam_m2m_forward.2} parent=0 // loop_header_branch
    %33 = sbr.rel (%p31) target = $region8
  $region5: #{sam_m2m_forward.2} parent=0 // loop_body
    %s35 = ssub.s32 %s30, 1
    %s36 = ssub.s32 %s30, 2
    %s37 = sadd.s32 %s30, 1
    %s38 = ssub.s32 %s30, %s37
    %p39 = scmp.eq.s32.totalorder %s38, 0
    %s41 = sadd.s32 %s40, 1
    %s42 = scalar_select %p39, %s40, %s41
    %p45 = pneg %p39
    %p46 = scmp.eq.s32.totalorder %s30, 1
    %p47 = por %p45, %p46
    %p48 = scmp.ne.s32.totalorder %s40, %s43
    %p49 = scmp.eq.s32.totalorder %s30, 0
    %p50 = por %p48, %p49
    %p51 = scmp.ne.s32.totalorder %s40, %s43
    %p52 = scmp.eq.s32.totalorder %s35, 1
    %p53 = por %p51, %p52
    %p54 = scmp.ne.s32.totalorder %s43, %s44
    %p55 = scmp.eq.s32.totalorder %s35, 0
    %p56 = por %p54, %p55
    %p57 = scmp.ne.s32.totalorder %s43, %s44
    %p58 = scmp.eq.s32.totalorder %s36, 1
    %p59 = por %p57, %p58
    %p61 = scmp.ne.s32.totalorder %s44, %s60
    %p62 = scmp.eq.s32.totalorder %s36, 0
    %p63 = por %p61, %p62
    %s64 = ssub.s32 %s30, %s37
    %p65 = scmp.eq.s32.totalorder %s64, 0
    %s67 = sadd.s32 %s66, 1
    %s68 = scalar_select %p65, %s66, %s67
    %p71 = pneg %p65
    %p72 = scmp.eq.s32.totalorder %s30, 1
    %p73 = por %p71, %p72
    %p74 = scmp.ne.s32.totalorder %s66, %s69
    %p75 = scmp.eq.s32.totalorder %s30, 0
    %p76 = por %p74, %p75
    %p77 = scmp.ne.s32.totalorder %s66, %s69
    %p78 = scmp.eq.s32.totalorder %s35, 1
    %p79 = por %p77, %p78
    %p80 = scmp.ne.s32.totalorder %s69, %s70
    %p81 = scmp.eq.s32.totalorder %s35, 0
    %p82 = por %p80, %p81
    %p83 = scmp.ne.s32.totalorder %s69, %s70
    %p84 = scmp.eq.s32.totalorder %s36, 1
    %p85 = por %p83, %p84
    %p87 = scmp.ne.s32.totalorder %s70, %s86
    %p88 = scmp.eq.s32.totalorder %s36, 0
    %p89 = por %p87, %p88
    %s91 = sadd.s32 %s90, 1
    %p94 = scmp.eq.s32.totalorder %s30, 1
    %p95 = scmp.ne.s32.totalorder %s90, %s92
    %p96 = scmp.eq.s32.totalorder %s30, 0
    %p97 = por %p95, %p96
    %p98 = scmp.ne.s32.totalorder %s90, %s92
    %p99 = scmp.eq.s32.totalorder %s35, 1
    %p100 = por %p98, %p99
    %p101 = scmp.ne.s32.totalorder %s92, %s93
    %p102 = scmp.eq.s32.totalorder %s35, 0
    %p103 = por %p101, %p102
    %p104 = scmp.ne.s32.totalorder %s92, %s93
    %p105 = scmp.eq.s32.totalorder %s36, 1
    %p106 = por %p104, %p105
    %p108 = scmp.ne.s32.totalorder %s93, %s107
    %p109 = scmp.eq.s32.totalorder %s36, 0
    %p110 = por %p108, %p109
    %s112 = sadd.s32 %s111, 1
    %p115 = scmp.eq.s32.totalorder %s30, 1
    %p116 = scmp.ne.s32.totalorder %s111, %s113
    %p117 = scmp.eq.s32.totalorder %s30, 0
    %p118 = por %p116, %p117
    %p119 = scmp.ne.s32.totalorder %s111, %s113
    %p120 = scmp.eq.s32.totalorder %s35, 1
    %p121 = por %p119, %p120
    %p122 = scmp.ne.s32.totalorder %s113, %s114
    %p123 = scmp.eq.s32.totalorder %s35, 0
    %p124 = por %p122, %p123
    %p125 = scmp.ne.s32.totalorder %s113, %s114
    %p126 = scmp.eq.s32.totalorder %s36, 1
    %p127 = por %p125, %p126
    %p129 = scmp.ne.s32.totalorder %s114, %s128
    %p130 = scmp.eq.s32.totalorder %s36, 0
    %p131 = por %p129, %p130
    %s133 = sadd.s32 %s132, 1
    %p136 = scmp.eq.s32.totalorder %s30, 1
    %p137 = scmp.ne.s32.totalorder %s132, %s134
    %p138 = scmp.eq.s32.totalorder %s30, 0
    %p139 = por %p137, %p138
    %p140 = scmp.ne.s32.totalorder %s132, %s134
    %p141 = scmp.eq.s32.totalorder %s35, 1
    %p142 = por %p140, %p141
    %p143 = scmp.ne.s32.totalorder %s134, %s135
    %p144 = scmp.eq.s32.totalorder %s35, 0
    %p145 = por %p143, %p144
    %p146 = scmp.ne.s32.totalorder %s134, %s135
    %p147 = scmp.eq.s32.totalorder %s36, 1
    %p148 = por %p146, %p147
    %p150 = scmp.ne.s32.totalorder %s135, %s149
    %p151 = scmp.eq.s32.totalorder %s36, 0
    %p152 = por %p150, %p151
    %s154 = sadd.s32 %s153, 1
    %p157 = scmp.eq.s32.totalorder %s30, 1
    %p158 = scmp.ne.s32.totalorder %s153, %s155
    %p159 = scmp.eq.s32.totalorder %s30, 0
    %p160 = por %p158, %p159
    %p161 = scmp.ne.s32.totalorder %s153, %s155
    %p162 = scmp.eq.s32.totalorder %s35, 1
    %p163 = por %p161, %p162
    %p164 = scmp.ne.s32.totalorder %s155, %s156
    %p165 = scmp.eq.s32.totalorder %s35, 0
    %p166 = por %p164, %p165
    %p167 = scmp.ne.s32.totalorder %s155, %s156
    %p168 = scmp.eq.s32.totalorder %s36, 1
    %p169 = por %p167, %p168
    %p171 = scmp.ne.s32.totalorder %s156, %s170
    %p172 = scmp.eq.s32.totalorder %s36, 0
    %p173 = por %p171, %p172
    %s175 = sadd.s32 %s174, 1
    %p178 = scmp.eq.s32.totalorder %s30, 1
    %p179 = scmp.ne.s32.totalorder %s174, %s176
    %p180 = scmp.eq.s32.totalorder %s30, 0
    %p181 = por %p179, %p180
    %p182 = scmp.ne.s32.totalorder %s174, %s176
    %p183 = scmp.eq.s32.totalorder %s35, 1
    %p184 = por %p182, %p183
    %p185 = scmp.ne.s32.totalorder %s176, %s177
    %p186 = scmp.eq.s32.totalorder %s35, 0
    %p187 = por %p185, %p186
    %p188 = scmp.ne.s32.totalorder %s176, %s177
    %p189 = scmp.eq.s32.totalorder %s36, 1
    %p190 = por %p188, %p189
    %p192 = scmp.ne.s32.totalorder %s177, %s191
    %p193 = scmp.eq.s32.totalorder %s36, 0
    %p194 = por %p192, %p193
    %s196 = sadd.s32 %s195, 1
    %p199 = scmp.eq.s32.totalorder %s30, 1
    %p200 = scmp.ne.s32.totalorder %s195, %s197
    %p201 = scmp.eq.s32.totalorder %s30, 0
    %p202 = por %p200, %p201
    %p203 = scmp.ne.s32.totalorder %s195, %s197
    %p204 = scmp.eq.s32.totalorder %s35, 1
    %p205 = por %p203, %p204
    %p206 = scmp.ne.s32.totalorder %s197, %s198
    %p207 = scmp.eq.s32.totalorder %s35, 0
    %p208 = por %p206, %p207
    %p209 = scmp.ne.s32.totalorder %s197, %s198
    %p210 = scmp.eq.s32.totalorder %s36, 1
    %p211 = por %p209, %p210
    %p213 = scmp.ne.s32.totalorder %s198, %s212
    %p214 = scmp.eq.s32.totalorder %s36, 0
    %p215 = por %p213, %p214
    %s217 = sadd.s32 %s216, 1
    %p220 = scmp.eq.s32.totalorder %s30, 1
    %p221 = scmp.ne.s32.totalorder %s216, %s218
    %p222 = scmp.eq.s32.totalorder %s30, 0
    %p223 = por %p221, %p222
    %p224 = scmp.ne.s32.totalorder %s216, %s218
    %p225 = scmp.eq.s32.totalorder %s35, 1
    %p226 = por %p224, %p225
    %p227 = scmp.ne.s32.totalorder %s218, %s219
    %p228 = scmp.eq.s32.totalorder %s35, 0
    %p229 = por %p227, %p228
    %p230 = scmp.ne.s32.totalorder %s218, %s219
    %p231 = scmp.eq.s32.totalorder %s36, 1
    %p232 = por %p230, %p231
    %p234 = scmp.ne.s32.totalorder %s219, %s233
    %p235 = scmp.eq.s32.totalorder %s36, 0
    %p236 = por %p234, %p235
    %s238 = sadd.s32 %s237, 1
    %p241 = scmp.eq.s32.totalorder %s30, 1
    %p242 = scmp.ne.s32.totalorder %s237, %s239
    %p243 = scmp.eq.s32.totalorder %s30, 0
    %p244 = por %p242, %p243
    %p245 = scmp.ne.s32.totalorder %s237, %s239
    %p246 = scmp.eq.s32.totalorder %s35, 1
    %p247 = por %p245, %p246
    %p248 = scmp.ne.s32.totalorder %s239, %s240
    %p249 = scmp.eq.s32.totalorder %s35, 0
    %p250 = por %p248, %p249
    %p251 = scmp.ne.s32.totalorder %s239, %s240
    %p252 = scmp.eq.s32.totalorder %s36, 1
    %p253 = por %p251, %p252
    %p255 = scmp.ne.s32.totalorder %s240, %s254
    %p256 = scmp.eq.s32.totalorder %s36, 0
    %p257 = por %p255, %p256
    %s259 = sadd.s32 %s258, 1
    %p262 = scmp.eq.s32.totalorder %s30, 1
    %p263 = scmp.ne.s32.totalorder %s258, %s260
    %p264 = scmp.eq.s32.totalorder %s30, 0
    %p265 = por %p263, %p264
    %p266 = scmp.ne.s32.totalorder %s258, %s260
    %p267 = scmp.eq.s32.totalorder %s35, 1
    %p268 = por %p266, %p267
    %p269 = scmp.ne.s32.totalorder %s260, %s261
    %p270 = scmp.eq.s32.totalorder %s35, 0
    %p271 = por %p269, %p270
    %p272 = scmp.ne.s32.totalorder %s260, %s261
    %p273 = scmp.eq.s32.totalorder %s36, 1
    %p274 = por %p272, %p273
    %p276 = scmp.ne.s32.totalorder %s261, %s275
    %p277 = scmp.eq.s32.totalorder %s36, 0
    %p278 = por %p276, %p277
    %s280 = sadd.s32 %s279, 1
    %p283 = scmp.eq.s32.totalorder %s30, 1
    %p284 = scmp.ne.s32.totalorder %s279, %s281
    %p285 = scmp.eq.s32.totalorder %s30, 0
    %p286 = por %p284, %p285
    %p287 = scmp.ne.s32.totalorder %s279, %s281
    %p288 = scmp.eq.s32.totalorder %s35, 1
    %p289 = por %p287, %p288
    %p290 = scmp.ne.s32.totalorder %s281, %s282
    %p291 = scmp.eq.s32.totalorder %s35, 0
    %p292 = por %p290, %p291
    %p293 = scmp.ne.s32.totalorder %s281, %s282
    %p294 = scmp.eq.s32.totalorder %s36, 1
    %p295 = por %p293, %p294
    %p297 = scmp.ne.s32.totalorder %s282, %s296
    %p298 = scmp.eq.s32.totalorder %s36, 0
    %p299 = por %p297, %p298
    %s301 = sadd.s32 %s300, 1
    %p304 = scmp.eq.s32.totalorder %s30, 1
    %p305 = scmp.ne.s32.totalorder %s300, %s302
    %p306 = scmp.eq.s32.totalorder %s30, 0
    %p307 = por %p305, %p306
    %p308 = scmp.ne.s32.totalorder %s300, %s302
    %p309 = scmp.eq.s32.totalorder %s35, 1
    %p310 = por %p308, %p309
    %p311 = scmp.ne.s32.totalorder %s302, %s303
    %p312 = scmp.eq.s32.totalorder %s35, 0
    %p313 = por %p311, %p312
    %p314 = scmp.ne.s32.totalorder %s302, %s303
    %p315 = scmp.eq.s32.totalorder %s36, 1
    %p316 = por %p314, %p315
    %p318 = scmp.ne.s32.totalorder %s303, %s317
    %p319 = scmp.eq.s32.totalorder %s36, 0
    %p320 = por %p318, %p319
    %s322 = sadd.s32 %s321, 1
    %p325 = scmp.eq.s32.totalorder %s30, 1
    %p326 = scmp.ne.s32.totalorder %s321, %s323
    %p327 = scmp.eq.s32.totalorder %s30, 0
    %p328 = por %p326, %p327
    %p329 = scmp.ne.s32.totalorder %s321, %s323
    %p330 = scmp.eq.s32.totalorder %s35, 1
    %p331 = por %p329, %p330
    %p332 = scmp.ne.s32.totalorder %s323, %s324
    %p333 = scmp.eq.s32.totalorder %s35, 0
    %p334 = por %p332, %p333
    %p335 = scmp.ne.s32.totalorder %s323, %s324
    %p336 = scmp.eq.s32.totalorder %s36, 1
    %p337 = por %p335, %p336
    %p339 = scmp.ne.s32.totalorder %s324, %s338
    %p340 = scmp.eq.s32.totalorder %s36, 0
    %p341 = por %p339, %p340
    %s343 = sadd.s32 %s342, 1
    %p346 = scmp.eq.s32.totalorder %s30, 1
    %p347 = scmp.ne.s32.totalorder %s342, %s344
    %p348 = scmp.eq.s32.totalorder %s30, 0
    %p349 = por %p347, %p348
    %p350 = scmp.ne.s32.totalorder %s342, %s344
    %p351 = scmp.eq.s32.totalorder %s35, 1
    %p352 = por %p350, %p351
    %p353 = scmp.ne.s32.totalorder %s344, %s345
    %p354 = scmp.eq.s32.totalorder %s35, 0
    %p355 = por %p353, %p354
    %p356 = scmp.ne.s32.totalorder %s344, %s345
    %p357 = scmp.eq.s32.totalorder %s36, 1
    %p358 = por %p356, %p357
    %p360 = scmp.ne.s32.totalorder %s345, %s359
    %p361 = scmp.eq.s32.totalorder %s36, 0
    %p362 = por %p360, %p361
    %s364 = sadd.s32 %s363, 1
    %p367 = scmp.eq.s32.totalorder %s30, 1
    %p368 = scmp.ne.s32.totalorder %s363, %s365
    %p369 = scmp.eq.s32.totalorder %s30, 0
    %p370 = por %p368, %p369
    %p371 = scmp.ne.s32.totalorder %s363, %s365
    %p372 = scmp.eq.s32.totalorder %s35, 1
    %p373 = por %p371, %p372
    %p374 = scmp.ne.s32.totalorder %s365, %s366
    %p375 = scmp.eq.s32.totalorder %s35, 0
    %p376 = por %p374, %p375
    %p377 = scmp.ne.s32.totalorder %s365, %s366
    %p378 = scmp.eq.s32.totalorder %s36, 1
    %p379 = por %p377, %p378
    %p381 = scmp.ne.s32.totalorder %s366, %s380
    %p382 = scmp.eq.s32.totalorder %s36, 0
    %p383 = por %p381, %p382
    %s385 = sadd.s32 %s384, 1
    %p388 = scmp.eq.s32.totalorder %s30, 1
    %p389 = scmp.ne.s32.totalorder %s384, %s386
    %p390 = scmp.eq.s32.totalorder %s30, 0
    %p391 = por %p389, %p390
    %p392 = scmp.ne.s32.totalorder %s384, %s386
    %p393 = scmp.eq.s32.totalorder %s35, 1
    %p394 = por %p392, %p393
    %p395 = scmp.ne.s32.totalorder %s386, %s387
    %p396 = scmp.eq.s32.totalorder %s35, 0
    %p397 = por %p395, %p396
    %p398 = scmp.ne.s32.totalorder %s386, %s387
    %p399 = scmp.eq.s32.totalorder %s36, 1
    %p400 = por %p398, %p399
    %p402 = scmp.ne.s32.totalorder %s387, %s401
    %p403 = scmp.eq.s32.totalorder %s36, 0
    %p404 = por %p402, %p403
    %s406 = sadd.s32 %s405, 1
    %p409 = scmp.eq.s32.totalorder %s30, 1
    %p410 = scmp.ne.s32.totalorder %s405, %s407
    %p411 = scmp.eq.s32.totalorder %s30, 0
    %p412 = por %p410, %p411
    %p413 = scmp.ne.s32.totalorder %s405, %s407
    %p414 = scmp.eq.s32.totalorder %s35, 1
    %p415 = por %p413, %p414
    %p416 = scmp.ne.s32.totalorder %s407, %s408
    %p417 = scmp.eq.s32.totalorder %s35, 0
    %p418 = por %p416, %p417
    %p419 = scmp.ne.s32.totalorder %s407, %s408
    %p420 = scmp.eq.s32.totalorder %s36, 1
    %p421 = por %p419, %p420
    %p423 = scmp.ne.s32.totalorder %s408, %s422
    %p424 = scmp.eq.s32.totalorder %s36, 0
    %p425 = por %p423, %p424
    %s427 = sadd.s32 %s426, 1
    %p430 = scmp.eq.s32.totalorder %s30, 1
    %p431 = scmp.ne.s32.totalorder %s426, %s428
    %p432 = scmp.eq.s32.totalorder %s30, 0
    %p433 = por %p431, %p432
    %p434 = scmp.ne.s32.totalorder %s426, %s428
    %p435 = scmp.eq.s32.totalorder %s35, 1
    %p436 = por %p434, %p435
    %p437 = scmp.ne.s32.totalorder %s428, %s429
    %p438 = scmp.eq.s32.totalorder %s35, 0
    %p439 = por %p437, %p438
    %p440 = scmp.ne.s32.totalorder %s428, %s429
    %p441 = scmp.eq.s32.totalorder %s36, 1
    %p442 = por %p440, %p441
    %p444 = scmp.ne.s32.totalorder %s429, %s443
    %p445 = scmp.eq.s32.totalorder %s36, 0
    %p446 = por %p444, %p445
    %s448 = sadd.s32 %s447, 1
    %p451 = scmp.eq.s32.totalorder %s30, 1
    %p452 = scmp.ne.s32.totalorder %s447, %s449
    %p453 = scmp.eq.s32.totalorder %s30, 0
    %p454 = por %p452, %p453
    %p455 = scmp.ne.s32.totalorder %s447, %s449
    %p456 = scmp.eq.s32.totalorder %s35, 1
    %p457 = por %p455, %p456
    %p458 = scmp.ne.s32.totalorder %s449, %s450
    %p459 = scmp.eq.s32.totalorder %s35, 0
    %p460 = por %p458, %p459
    %p461 = scmp.ne.s32.totalorder %s449, %s450
    %p462 = scmp.eq.s32.totalorder %s36, 1
    %p463 = por %p461, %p462
    %p465 = scmp.ne.s32.totalorder %s450, %s464
    %p466 = scmp.eq.s32.totalorder %s36, 0
    %p467 = por %p465, %p466
    %s469 = sadd.s32 %s468, 1
    %p472 = scmp.eq.s32.totalorder %s30, 1
    %p473 = scmp.ne.s32.totalorder %s468, %s470
    %p474 = scmp.eq.s32.totalorder %s30, 0
    %p475 = por %p473, %p474
    %p476 = scmp.ne.s32.totalorder %s468, %s470
    %p477 = scmp.eq.s32.totalorder %s35, 1
    %p478 = por %p476, %p477
    %p479 = scmp.ne.s32.totalorder %s470, %s471
    %p480 = scmp.eq.s32.totalorder %s35, 0
    %p481 = por %p479, %p480
    %p482 = scmp.ne.s32.totalorder %s470, %s471
    %p483 = scmp.eq.s32.totalorder %s36, 1
    %p484 = por %p482, %p483
    %p486 = scmp.ne.s32.totalorder %s471, %s485
    %p487 = scmp.eq.s32.totalorder %s36, 0
    %p488 = por %p486, %p487
    %s490 = sadd.s32 %s489, 1
    %p493 = scmp.eq.s32.totalorder %s30, 1
    %p494 = scmp.ne.s32.totalorder %s489, %s491
    %p495 = scmp.eq.s32.totalorder %s30, 0
    %p496 = por %p494, %p495
    %p497 = scmp.ne.s32.totalorder %s489, %s491
    %p498 = scmp.eq.s32.totalorder %s35, 1
    %p499 = por %p497, %p498
    %p500 = scmp.ne.s32.totalorder %s491, %s492
    %p501 = scmp.eq.s32.totalorder %s35, 0
    %p502 = por %p500, %p501
    %p503 = scmp.ne.s32.totalorder %s491, %s492
    %p504 = scmp.eq.s32.totalorder %s36, 1
    %p505 = por %p503, %p504
    %p507 = scmp.ne.s32.totalorder %s492, %s506
    %p508 = scmp.eq.s32.totalorder %s36, 0
    %p509 = por %p507, %p508
    %s510 = ssub.s32 %s30, %s37
    %p511 = scmp.eq.s32.totalorder %s510, 0
    %s513 = sadd.s32 %s512, 1
    %s514 = scalar_select %p511, %s512, %s513
    %p517 = pneg %p511
    %p518 = scmp.eq.s32.totalorder %s30, 1
    %p519 = por %p517, %p518
    %p520 = scmp.ne.s32.totalorder %s512, %s515
    %p521 = scmp.eq.s32.totalorder %s30, 0
    %p522 = por %p520, %p521
    %p523 = scmp.ne.s32.totalorder %s512, %s515
    %p524 = scmp.eq.s32.totalorder %s35, 1
    %p525 = por %p523, %p524
    %p526 = scmp.ne.s32.totalorder %s515, %s516
    %p527 = scmp.eq.s32.totalorder %s35, 0
    %p528 = por %p526, %p527
    %p529 = scmp.ne.s32.totalorder %s515, %s516
    %p530 = scmp.eq.s32.totalorder %s36, 1
    %p531 = por %p529, %p530
    %p533 = scmp.ne.s32.totalorder %s516, %s532
    %p534 = scmp.eq.s32.totalorder %s36, 0
    %p535 = por %p533, %p534
    %s536 = ssub.s32 %s30, %s37
    %p537 = scmp.eq.s32.totalorder %s536, 0
    %s539 = sadd.s32 %s538, 1
    %s540 = scalar_select %p537, %s538, %s539
    %p543 = pneg %p537
    %p544 = scmp.eq.s32.totalorder %s30, 1
    %p545 = por %p543, %p544
    %p546 = scmp.ne.s32.totalorder %s538, %s541
    %p547 = scmp.eq.s32.totalorder %s30, 0
    %p548 = por %p546, %p547
    %p549 = scmp.ne.s32.totalorder %s538, %s541
    %p550 = scmp.eq.s32.totalorder %s35, 1
    %p551 = por %p549, %p550
    %p552 = scmp.ne.s32.totalorder %s541, %s542
    %p553 = scmp.eq.s32.totalorder %s35, 0
    %p554 = por %p552, %p553
    %p555 = scmp.ne.s32.totalorder %s541, %s542
    %p556 = scmp.eq.s32.totalorder %s36, 1
    %p557 = por %p555, %p556
    %p559 = scmp.ne.s32.totalorder %s542, %s558
    %p560 = scmp.eq.s32.totalorder %s36, 0
    %p561 = por %p559, %p560
    %p562 = scmp.le.s32.totalorder 1, %s30
    %p563 = scmp.lt.s32.totalorder %s30, 3
    %p564 = pnand %p562, %p563
    %p565 = pneg %p564
    // Predicated region
    $region9: #{sam_m2m_forward.2} parent=5 // pred_check
      _
    $region10: #{sam_m2m_forward.2} parent=5 // pred_check_branch
      %567 = sbr.rel (%p564) target = $region12
    $region11: #{sam_m2m_forward.2} parent=5 // pred_region
      %s568 = ssub.s32 %s30, 1
      // Predicated region
      $region13: #{sam_m2m_forward.2} parent=11 // pred_check
        %p569 = pneg %p103
      $region14: #{sam_m2m_forward.2} parent=11 // pred_check_branch
        %571 = sbr.rel (%p569) target = $region16
      $region15: #{sam_m2m_forward.2} parent=11 // pred_region
        _
      $region16: #{sam_m2m_forward.2} parent=11 // pred_fallthru
        _
      // Predicated region
      $region17: #{sam_m2m_forward.2} parent=11 // pred_check
        %p572 = pneg %p124
      $region18: #{sam_m2m_forward.2} parent=11 // pred_check_branch
        %574 = sbr.rel (%p572) target = $region20
      $region19: #{sam_m2m_forward.2} parent=11 // pred_region
        _
      $region20: #{sam_m2m_forward.2} parent=11 // pred_fallthru
        _
      // Predicated region
      $region21: #{sam_m2m_forward.2} parent=11 // pred_check
        %p575 = pneg %p145
      $region22: #{sam_m2m_forward.2} parent=11 // pred_check_branch
        %577 = sbr.rel (%p575) target = $region24
      $region23: #{sam_m2m_forward.2} parent=11 // pred_region
        _
      $region24: #{sam_m2m_forward.2} parent=11 // pred_fallthru
        _
      // Predicated region
      $region25: #{sam_m2m_forward.2} parent=11 // pred_check
        %p578 = pneg %p166
      $region26: #{sam_m2m_forward.2} parent=11 // pred_check_branch
        %580 = sbr.rel (%p578) target = $region28
      $region27: #{sam_m2m_forward.2} parent=11 // pred_region
        _
      $region28: #{sam_m2m_forward.2} parent=11 // pred_fallthru
        _
      // Predicated region
      $region29: #{sam_m2m_forward.2} parent=11 // pred_check
        %p581 = pneg %p187
      $region30: #{sam_m2m_forward.2} parent=11 // pred_check_branch
        %583 = sbr.rel (%p581) target = $region32
      $region31: #{sam_m2m_forward.2} parent=11 // pred_region
        _
      $region32: #{sam_m2m_forward.2} parent=11 // pred_fallthru
        _
      // Predicated region
      $region33: #{sam_m2m_forward.2} parent=11 // pred_check
        %p584 = pneg %p208
      $region34: #{sam_m2m_forward.2} parent=11 // pred_check_branch
        %586 = sbr.rel (%p584) target = $region36
      $region35: #{sam_m2m_forward.2} parent=11 // pred_region
        _
      $region36: #{sam_m2m_forward.2} parent=11 // pred_fallthru
        _
      // Predicated region
      $region37: #{sam_m2m_forward.2} parent=11 // pred_check
        %p587 = pneg %p229
      $region38: #{sam_m2m_forward.2} parent=11 // pred_check_branch
        %589 = sbr.rel (%p587) target = $region40
      $region39: #{sam_m2m_forward.2} parent=11 // pred_region
        _
      $region40: #{sam_m2m_forward.2} parent=11 // pred_fallthru
        _
      // Predicated region
      $region41: #{sam_m2m_forward.2} parent=11 // pred_check
        %p590 = pneg %p250
      $region42: #{sam_m2m_forward.2} parent=11 // pred_check_branch
        %592 = sbr.rel (%p590) target = $region44
      $region43: #{sam_m2m_forward.2} parent=11 // pred_region
        _
      $region44: #{sam_m2m_forward.2} parent=11 // pred_fallthru
        _
      // Predicated region
      $region45: #{sam_m2m_forward.2} parent=11 // pred_check
        %p593 = pneg %p271
      $region46: #{sam_m2m_forward.2} parent=11 // pred_check_branch
        %595 = sbr.rel (%p593) target = $region48
      $region47: #{sam_m2m_forward.2} parent=11 // pred_region
        _
      $region48: #{sam_m2m_forward.2} parent=11 // pred_fallthru
        _
      // Predicated region
      $region49: #{sam_m2m_forward.2} parent=11 // pred_check
        %p596 = pneg %p292
      $region50: #{sam_m2m_forward.2} parent=11 // pred_check_branch
        %598 = sbr.rel (%p596) target = $region52
      $region51: #{sam_m2m_forward.2} parent=11 // pred_region
        _
      $region52: #{sam_m2m_forward.2} parent=11 // pred_fallthru
        _
      // Predicated region
      $region53: #{sam_m2m_forward.2} parent=11 // pred_check
        %p599 = pneg %p313
      $region54: #{sam_m2m_forward.2} parent=11 // pred_check_branch
        %601 = sbr.rel (%p599) target = $region56
      $region55: #{sam_m2m_forward.2} parent=11 // pred_region
        _
      $region56: #{sam_m2m_forward.2} parent=11 // pred_fallthru
        _
      // Predicated region
      $region57: #{sam_m2m_forward.2} parent=11 // pred_check
        %p602 = pneg %p334
      $region58: #{sam_m2m_forward.2} parent=11 // pred_check_branch
        %604 = sbr.rel (%p602) target = $region60
      $region59: #{sam_m2m_forward.2} parent=11 // pred_region
        _
      $region60: #{sam_m2m_forward.2} parent=11 // pred_fallthru
        _
      // Predicated region
      $region61: #{sam_m2m_forward.2} parent=11 // pred_check
        %p605 = pneg %p355
      $region62: #{sam_m2m_forward.2} parent=11 // pred_check_branch
        %607 = sbr.rel (%p605) target = $region64
      $region63: #{sam_m2m_forward.2} parent=11 // pred_region
        _
      $region64: #{sam_m2m_forward.2} parent=11 // pred_fallthru
        _
      // Predicated region
      $region65: #{sam_m2m_forward.2} parent=11 // pred_check
        %p608 = pneg %p376
      $region66: #{sam_m2m_forward.2} parent=11 // pred_check_branch
        %610 = sbr.rel (%p608) target = $region68
      $region67: #{sam_m2m_forward.2} parent=11 // pred_region
        _
      $region68: #{sam_m2m_forward.2} parent=11 // pred_fallthru
        _
      // Predicated region
      $region69: #{sam_m2m_forward.2} parent=11 // pred_check
        %p611 = pneg %p397
      $region70: #{sam_m2m_forward.2} parent=11 // pred_check_branch
        %613 = sbr.rel (%p611) target = $region72
      $region71: #{sam_m2m_forward.2} parent=11 // pred_region
        _
      $region72: #{sam_m2m_forward.2} parent=11 // pred_fallthru
        _
      // Predicated region
      $region73: #{sam_m2m_forward.2} parent=11 // pred_check
        %p614 = pneg %p418
      $region74: #{sam_m2m_forward.2} parent=11 // pred_check_branch
        %616 = sbr.rel (%p614) target = $region76
      $region75: #{sam_m2m_forward.2} parent=11 // pred_region
        _
      $region76: #{sam_m2m_forward.2} parent=11 // pred_fallthru
        _
      // Predicated region
      $region77: #{sam_m2m_forward.2} parent=11 // pred_check
        %p617 = pneg %p439
      $region78: #{sam_m2m_forward.2} parent=11 // pred_check_branch
        %619 = sbr.rel (%p617) target = $region80
      $region79: #{sam_m2m_forward.2} parent=11 // pred_region
        _
      $region80: #{sam_m2m_forward.2} parent=11 // pred_fallthru
        _
      // Predicated region
      $region81: #{sam_m2m_forward.2} parent=11 // pred_check
        %p620 = pneg %p460
      $region82: #{sam_m2m_forward.2} parent=11 // pred_check_branch
        %622 = sbr.rel (%p620) target = $region84
      $region83: #{sam_m2m_forward.2} parent=11 // pred_region
        _
      $region84: #{sam_m2m_forward.2} parent=11 // pred_fallthru
        _
      // Predicated region
      $region85: #{sam_m2m_forward.2} parent=11 // pred_check
        %p623 = pneg %p481
      $region86: #{sam_m2m_forward.2} parent=11 // pred_check_branch
        %625 = sbr.rel (%p623) target = $region88
      $region87: #{sam_m2m_forward.2} parent=11 // pred_region
        _
      $region88: #{sam_m2m_forward.2} parent=11 // pred_fallthru
        _
      // Predicated region
      $region89: #{sam_m2m_forward.2} parent=11 // pred_check
        %p626 = pneg %p502
      $region90: #{sam_m2m_forward.2} parent=11 // pred_check_branch
        %628 = sbr.rel (%p626) target = $region92
      $region91: #{sam_m2m_forward.2} parent=11 // pred_region
        _
      $region92: #{sam_m2m_forward.2} parent=11 // pred_fallthru
        _
    $region12: #{sam_m2m_forward.2} parent=5 // pred_fallthru
      _
    %p629 = scmp.lt.s32.totalorder %s30, 2
    // Predicated region
    $region93: #{sam_m2m_forward.2} parent=5 // pred_check
      %p630 = pneg %p629
    $region94: #{sam_m2m_forward.2} parent=5 // pred_check_branch
      %632 = sbr.rel (%p630) target = $region96
    $region95: #{sam_m2m_forward.2} parent=5 // pred_region
      // Predicated region
      $region97: #{sam_m2m_forward.2} parent=95 // pred_check
        %p633 = pneg %p50
      $region98: #{sam_m2m_forward.2} parent=95 // pred_check_branch
        %635 = sbr.rel (%p633) target = $region100
      $region99: #{sam_m2m_forward.2} parent=95 // pred_region
        %s636 = smul.u32 2, %s30
        %p637 = scmp.lt.s32.totalorder %s636, 3
        %s638 = scalar_select %p637, %s636, 3
        %s639 = smul.addr %s638, 2
        %s640 = smul.addr %s639, 8
        %s641 = scalar_lea.vmem %s0, %s640
        %s642 = smul.u32 2, %s30
      $region100: #{sam_m2m_forward.2} parent=95 // pred_fallthru
        _
      // Predicated region
      $region101: #{sam_m2m_forward.2} parent=95 // pred_check
        %p643 = pneg %p76
      $region102: #{sam_m2m_forward.2} parent=95 // pred_check_branch
        %645 = sbr.rel (%p643) target = $region104
      $region103: #{sam_m2m_forward.2} parent=95 // pred_region
        %s646 = smul.u32 2, %s30
        %p647 = scmp.lt.s32.totalorder %s646, 3
        %s648 = scalar_select %p647, %s646, 3
        %s649 = smul.addr %s648, 8
        %s650 = scalar_lea.vmem %s1, %s649
        %s651 = smul.u32 2, %s30
      $region104: #{sam_m2m_forward.2} parent=95 // pred_fallthru
        _
    $region96: #{sam_m2m_forward.2} parent=5 // pred_fallthru
      _
    %p652 = scmp.le.s32.totalorder 1, %s30
    %p653 = scmp.lt.s32.totalorder %s30, 3
    %p654 = pnand %p652, %p653
    %p655 = pneg %p654
    // Predicated region
    $region105: #{sam_m2m_forward.2} parent=5 // pred_check
      _
    $region106: #{sam_m2m_forward.2} parent=5 // pred_check_branch
      %657 = sbr.rel (%p654) target = $region108
    $region107: #{sam_m2m_forward.2} parent=5 // pred_region
      %s658 = ssub.s32 %s30, 1
      %s659 = smul.u32 2, %s35
      %p660 = scmp.lt.s32.totalorder %s659, 3
      %s661 = scalar_select %p660, %s659, 3
      %s662 = smul.addr %s661, 2
      %s663 = smul.addr %s662, 8
      %s664 = scalar_lea.vmem %s0, %s663
      %p665 = pneg %p56
      %p666 = pneg %p53
      %s667 = smul.u32 2, %s35
      %p668 = scmp.lt.s32.totalorder %s667, 3
      %s669 = scalar_select %p668, %s667, 3
      %s670 = smul.addr %s669, 8
      %s671 = scalar_lea.vmem %s1, %s670
      %p672 = pneg %p82
      %p673 = pneg %p79
      %p674 = pneg %p103
      %p675 = pneg %p100
      %p676 = pneg %p124
      %p677 = pneg %p121
      %p678 = pneg %p145
      %p679 = pneg %p142
      %p680 = pneg %p166
      %p681 = pneg %p163
      %p682 = pneg %p187
      %p683 = pneg %p184
      %p684 = pneg %p208
      %p685 = pneg %p205
      %p686 = pneg %p229
      %p687 = pneg %p226
      %p688 = pneg %p250
      %p689 = pneg %p247
      %p690 = pneg %p271
      %p691 = pneg %p268
      %p692 = pneg %p292
      %p693 = pneg %p289
      %p694 = pneg %p313
      %p695 = pneg %p310
      %p696 = pneg %p334
      %p697 = pneg %p331
      %p698 = pneg %p355
      %p699 = pneg %p352
      %p700 = pneg %p376
      %p701 = pneg %p373
      %p702 = pneg %p397
      %p703 = pneg %p394
      %p704 = pneg %p418
      %p705 = pneg %p415
      %p706 = pneg %p439
      %p707 = pneg %p436
      %p708 = pneg %p460
      %p709 = pneg %p457
      %p710 = pneg %p481
      %p711 = pneg %p478
      %p712 = pneg %p502
      %p713 = pneg %p499
      %p714 = pneg %p528
      %p715 = pneg %p525
      %s716 = smul.u32 2, %s35
      %p717 = scmp.lt.s32.totalorder %s716, 3
      %s718 = scalar_select %p717, %s716, 3
      %s719 = smul.addr %s718, 2
      %s720 = smul.addr %s719, 8
      %s721 = scalar_lea.vmem %s22, %s720
      %p722 = pneg %p554
      %p723 = pneg %p551
      %s724 = smul.u32 2, %s35
      %p725 = scmp.lt.s32.totalorder %s724, 3
      %s726 = scalar_select %p725, %s724, 3
      %s727 = smul.addr %s726, 8
      %s728 = scalar_lea.vmem %s23, %s727
      %s729 = smul.u32 2, %s35
      %p730 = scmp.lt.s32.totalorder %s729, 3
      %s731 = scalar_select %p730, %s729, 3
      %s732 = smul.addr %s731, 2
      %s733 = smul.addr %s732, 8
      %s734 = scalar_lea.vmem %s0, %s733
      %s735 = smul.u32 2, %s35
      %s736 = smul.u32 2, %s35
      %p737 = scmp.lt.s32.totalorder %s736, 3
      %s738 = scalar_select %p737, %s736, 3
      %s739 = smul.addr %s738, 8
      %s740 = scalar_lea.vmem %s1, %s739
      %s741 = smul.u32 2, %s35
      %s742 = smul.u32 2, %s35
      %p743 = scmp.lt.s32.totalorder %s742, 3
      %s744 = scalar_select %p743, %s742, 3
      %s745 = smul.addr %s744, 2
      %s746 = smul.addr %s745, 8
      %s747 = scalar_lea.vmem %s22, %s746
      %s748 = smul.u32 2, %s35
      %s749 = smul.u32 2, %s35
      %p750 = scmp.lt.s32.totalorder %s749, 3
      %s751 = scalar_select %p750, %s749, 3
      %s752 = smul.addr %s751, 8
      %s753 = scalar_lea.vmem %s23, %s752
      %s754 = smul.u32 2, %s35
      %v756 = vld [vmem:[%s734] sm:$0xff]
      %v757 = vld [vmem:[%s734 + $0x8] sm:$0xff]
      %v758 = vld [vmem:[%s734 + $0x10] sm:$0xff]
      %v759 = vld [vmem:[%s734 + $0x18] sm:$0xff]
      %v760 = vpack.c.bf16 %v758, %v756
      %v761 = vpack.c.bf16 %v759, %v757
      %v762 = vld [vmem:[%s2] sm:$0xf]
      %v763 = vld [vmem:[%s2 + $0x4] sm:$0xf]
      %v764 = vld [vmem:[%s2 + $0x8] sm:$0xf]
      %v765 = vld [vmem:[%s2 + $0xc] sm:$0xf]
      %v766 = vld [vmem:[%s2 + $0x10] sm:$0xf]
      %v767 = vld [vmem:[%s2 + $0x14] sm:$0xf]
      %v768 = vld [vmem:[%s2 + $0x18] sm:$0xf]
      %v769 = vld [vmem:[%s2 + $0x1c] sm:$0xf]
      %v770 = vld [vmem:[%s2 + $0x20] sm:$0xf]
      %v771 = vld [vmem:[%s2 + $0x24] sm:$0xf]
      %v772 = vld [vmem:[%s2 + $0x28] sm:$0xf]
      %v773 = vld [vmem:[%s2 + $0x2c] sm:$0xf]
      %v774 = vld [vmem:[%s2 + $0x30] sm:$0xf]
      %v775 = vld [vmem:[%s2 + $0x34] sm:$0xf]
      %v776 = vld [vmem:[%s2 + $0x38] sm:$0xf]
      %v777 = vld [vmem:[%s2 + $0x3c] sm:$0xf]
      %v778 = vld [vmem:[%s2 + $0x40] sm:$0xf]
      %v779 = vld [vmem:[%s2 + $0x44] sm:$0xf]
      %v780 = vld [vmem:[%s2 + $0x48] sm:$0xf]
      %v781 = vld [vmem:[%s2 + $0x4c] sm:$0xf]
      %v782 = vld [vmem:[%s2 + $0x50] sm:$0xf]
      %v783 = vld [vmem:[%s2 + $0x54] sm:$0xf]
      %v784 = vld [vmem:[%s2 + $0x58] sm:$0xf]
      %v785 = vld [vmem:[%s2 + $0x5c] sm:$0xf]
      %v786 = vld [vmem:[%s3] sm:$0x1]
      %v788 = vlaneseq
      %v789 = vshrl.u32 %v788, 7
      %v790 = vsub.s32 0, %v789
      %v791 = vrot.slane %v786, %v790
      %v817 = vunpack.c.l.b16 %v762
      %v818 = vunpack.c.l.b16 %v763
      %v819 = vunpack.c.l.b16 %v764
      %v820 = vunpack.c.l.b16 %v765
      %v821 = vunpack.c.l.b16 %v766
      %v822 = vunpack.c.l.b16 %v767
      %v823 = vunpack.c.l.b16 %v768
      %v824 = vunpack.c.l.b16 %v769
      %v825 = vunpack.c.l.b16 %v770
      %v826 = vunpack.c.l.b16 %v771
      %v827 = vunpack.c.l.b16 %v772
      %v828 = vunpack.c.l.b16 %v773
      %v829 = vunpack.c.l.b16 %v774
      %v830 = vunpack.c.l.b16 %v775
      %v831 = vunpack.c.l.b16 %v776
      %v832 = vunpack.c.l.b16 %v777
      %v833 = vunpack.c.l.b16 %v778
      %v834 = vunpack.c.l.b16 %v779
      %v835 = vunpack.c.l.b16 %v780
      %v836 = vunpack.c.l.b16 %v781
      %v837 = vunpack.c.l.b16 %v782
      %v838 = vunpack.c.l.b16 %v783
      %v839 = vunpack.c.l.b16 %v784
      %v840 = vunpack.c.l.b16 %v785
      %v841 = vpack.c.b16 %v818, %v817
      %v842 = vpack.c.b16 %v820, %v819
      %v843 = vpack.c.b16 %v822, %v821
      %v844 = vpack.c.b16 %v824, %v823
      %v845 = vpack.c.b16 %v826, %v825
      %v846 = vpack.c.b16 %v828, %v827
      %v847 = vpack.c.b16 %v830, %v829
      %v848 = vpack.c.b16 %v832, %v831
      %v849 = vpack.c.b16 %v834, %v833
      %v850 = vpack.c.b16 %v836, %v835
      %v851 = vpack.c.b16 %v838, %v837
      %v852 = vpack.c.b16 %v840, %v839
      %vm865 = vcmask 523264
      %v867 = vsel %vm865, %v761, 0
      %869 = vmatprep.subr.bf16.mxu0 0
      %870 = vmatpush1.bf16.msra.mxu0 %v841
      %871 = vmatprep.subr.bf16.mxu0 0
      %872 = vmatpush1.bf16.msra.mxu0 %v842
      %873 = vmatprep.subr.bf16.mxu0 0
      %874 = vmatpush1.bf16.msra.mxu0 %v843
      %875 = vmatprep.subr.bf16.mxu0 0
      %876 = vmatpush1.bf16.msra.mxu0 %v844
      %877 = vmatprep.subr.bf16.mxu0 0
      %878 = vmatpush1.bf16.msra.mxu0 %v845
      %879 = vmatprep.subr.bf16.mxu0 0
      %880 = vmatpush1.bf16.msra.mxu0 %v846
      %881 = vmatprep.subr.bf16.mxu0 0
      %882 = vmatpush1.bf16.msra.mxu0 %v847
      %883 = vmatprep.subr.bf16.mxu0 0
      %884 = vmatpush1.bf16.msra.mxu0 %v848
      %885 = vmatprep.subr.bf16.mxu0 0
      %886 = vmatpush1.bf16.msra.mxu0 %v849
      %887 = vmatprep.subr.bf16.mxu0 0
      %888 = vmatpush1.bf16.msra.mxu0 %v850
      %889 = vmatprep.subr.bf16.mxu0 0
      %890 = vmatpush1.bf16.msra.mxu0 %v851
      %891 = vmatprep.subr.bf16.mxu0 0
      %892 = vmatpush1.bf16.msra.mxu0 %v852
      %893 = vmatprep.subr.bf16.mxu0 0
      %894 = vmatpush1.bf16.msra.mxu0 0
      %895 = vmatprep.subr.bf16.mxu0 0
      %896 = vmatpush1.bf16.msra.mxu0 0
      %897 = vmatprep.subr.bf16.mxu0 0
      %898 = vmatpush1.bf16.msra.mxu0 0
      %899 = vmatprep.subr.bf16.mxu0 0
      %900 = vmatpush1.bf16.msra.mxu0 0
      %901 = vmatprep.mubr.bf16.mxu0 %v867
      %902 = vmatmul.mubr.bf16.gmra.mrb[0].mxu0 %v760
      %v903 = vpop.f32.mrb[0].mxu0
      %v904 = vadd.f32 %v791, %v903
      %v905 = vpop.f32.mrb[0].mxu0
      %v906 = vpop.f32.mrb[0].mxu0
      %v907 = vadd.f32 %v791, %v906
      %v908 = vpop.f32.mrb[0].mxu0
      %909 = vdwg.mxu0
      %v910 = vld [vmem:[%s740] sm:$0xff]
      %v911 = vld [vmem:[%s740 + $0x8] sm:$0xff]
      %v912 = vld [vmem:[%s4] sm:$0x1]
      %914 = vset.pattern.permute.xlu0 0
      %915 = vperm.xlu0 %914, %v910
      %v916 = vpop.permute.xlu0 %915
      %919 = vset.pattern.permute.xlu0 0
      %920 = vperm.xlu0 %919, %v911
      %v921 = vpop.permute.xlu0 %920
      %v924 = vlaneseq
      %v925 = vshrl.u32 %v924, 7
      %v926 = vsub.s32 0, %v925
      %v927 = vrot.slane %v912, %v926
      %v929 = vmul.f32 %v916, %v927
      %v930 = vmul.f32 %v921, %v927
      %v931 = vadd.f32 %v904, %v929
      %v932 = vadd.f32 %v907, %v930
      %v933 = vld [vmem:[%s5] sm:$0x1]
      %v935 = vlaneseq
      %v936 = vshrl.u32 %v935, 7
      %v937 = vsub.s32 0, %v936
      %v938 = vrot.slane %v933, %v937
      %v940 = vadd.f32 %v931, %v938
      %v941 = vadd.f32 %v932, %v938
      %v942 = vld [vmem:[%s6] sm:$0x1]
      %v943 = vld [vmem:[%s7] sm:$0x1]
      %944 = vadd.xlane.f32.xlu0 %v940
      %v945 = vpop.xlane.xlu0 %944
      %946 = vadd.xlane.f32.xlu0 %v941
      %v947 = vpop.xlane.xlu0 %946
      %v948 = vrcp.pop 128.0
      %v949 = vmul.f32 %v945, %v948
      %v950 = vmul.f32 %v947, %v948
      %v951 = vsub.f32 %v940, %v949
      %v952 = vsub.f32 %v941, %v950
      %v953 = vmul.f32 %v951, %v951
      %v954 = vmul.f32 %v952, %v952
      %955 = vadd.xlane.f32.xlu0 %v953
      %v956 = vpop.xlane.xlu0 %955
      %957 = vadd.xlane.f32.xlu0 %v954
      %v958 = vpop.xlane.xlu0 %957
      %v959 = vmul.f32 %v956, %v948
      %v960 = vmul.f32 %v958, %v948
      %v961 = vadd.f32 %v959, 1e-06
      %v962 = vadd.f32 %v960, 1e-06
      %v963 = vrsqrt.pop %v961
      %v964 = vrsqrt.pop %v962
      %v965 = vmul.f32 %v951, %v963
      %v966 = vmul.f32 %v952, %v964
      %v968 = vlaneseq
      %v969 = vshrl.u32 %v968, 7
      %v970 = vsub.s32 0, %v969
      %v971 = vrot.slane %v942, %v970
      %v973 = vmul.f32 %v965, %v971
      %v974 = vmul.f32 %v966, %v971
      %v976 = vlaneseq
      %v977 = vshrl.u32 %v976, 7
      %v978 = vsub.s32 0, %v977
      %v979 = vrot.slane %v943, %v978
      %v981 = vadd.f32 %v973, %v979
      %v982 = vadd.f32 %v974, %v979
      %v983 = vpack.c.bf16 %v982, %v981
      %v984 = vld [vmem:[%s8] sm:$0xff]
      %v985 = vld [vmem:[%s8 + $0x8] sm:$0xf]
      %v986 = vld [vmem:[%s8 + $0xc] sm:$0xff]
      %v987 = vld [vmem:[%s8 + $0x14] sm:$0xf]
      %v988 = vld [vmem:[%s8 + $0x18] sm:$0xff]
      %v989 = vld [vmem:[%s8 + $0x20] sm:$0xf]
      %v990 = vld [vmem:[%s8 + $0x24] sm:$0xff]
      %v991 = vld [vmem:[%s8 + $0x2c] sm:$0xf]
      %v992 = vld [vmem:[%s8 + $0x30] sm:$0xff]
      %v993 = vld [vmem:[%s8 + $0x38] sm:$0xf]
      %v994 = vld [vmem:[%s8 + $0x3c] sm:$0xff]
      %v995 = vld [vmem:[%s8 + $0x44] sm:$0xf]
      %v996 = vld [vmem:[%s8 + $0x48] sm:$0xff]
      %v997 = vld [vmem:[%s8 + $0x50] sm:$0xf]
      %v998 = vld [vmem:[%s8 + $0x54] sm:$0xff]
      %v999 = vld [vmem:[%s8 + $0x5c] sm:$0xf]
      %v1000 = vld [vmem:[%s8 + $0x60] sm:$0xff]
      %v1001 = vld [vmem:[%s8 + $0x68] sm:$0xf]
      %v1002 = vld [vmem:[%s8 + $0x6c] sm:$0xff]
      %v1003 = vld [vmem:[%s8 + $0x74] sm:$0xf]
      %v1004 = vld [vmem:[%s8 + $0x78] sm:$0xff]
      %v1005 = vld [vmem:[%s8 + $0x80] sm:$0xf]
      %v1006 = vld [vmem:[%s8 + $0x84] sm:$0xff]
      %v1007 = vld [vmem:[%s8 + $0x8c] sm:$0xf]
      %v1008 = vld [vmem:[%s8 + $0x90] sm:$0xff]
      %v1009 = vld [vmem:[%s8 + $0x98] sm:$0xf]
      %v1010 = vld [vmem:[%s8 + $0x9c] sm:$0xff]
      %v1011 = vld [vmem:[%s8 + $0xa4] sm:$0xf]
      %v1012 = vld [vmem:[%s8 + $0xa8] sm:$0xff]
      %v1013 = vld [vmem:[%s8 + $0xb0] sm:$0xf]
      %v1014 = vld [vmem:[%s8 + $0xb4] sm:$0xff]
      %v1015 = vld [vmem:[%s8 + $0xbc] sm:$0xf]
      %v1016 = vld [vmem:[%s9] sm:$0x7]
      %v1018 = vlaneseq
      %v1019 = vshrl.u32 %v1018, 7
      %v1020 = vsub.s32 0, %v1019
      %v1021 = vrot.slane %v1016, %v1020
      %v1022 = vlaneseq
      %v1023 = vshrl.u32 %v1022, 7
      %v1024 = vsub.s32 1, %v1023
      %v1025 = vrot.slane %v1016, %v1024
      %v1026 = vlaneseq
      %v1027 = vshrl.u32 %v1026, 7
      %v1028 = vsub.s32 2, %v1027
      %v1029 = vrot.slane %v1016, %v1028
      %v1065 = vunpack.c.l.b16 %v984
      %v1066 = vunpack.c.h.b16 %v984
      %v1067 = vunpack.c.l.b16 %v985
      %v1068 = vunpack.c.l.b16 %v986
      %v1069 = vunpack.c.h.b16 %v986
      %v1070 = vunpack.c.l.b16 %v987
      %v1071 = vunpack.c.l.b16 %v988
      %v1072 = vunpack.c.h.b16 %v988
      %v1073 = vunpack.c.l.b16 %v989
      %v1074 = vunpack.c.l.b16 %v990
      %v1075 = vunpack.c.h.b16 %v990
      %v1076 = vunpack.c.l.b16 %v991
      %v1077 = vunpack.c.l.b16 %v992
      %v1078 = vunpack.c.h.b16 %v992
      %v1079 = vunpack.c.l.b16 %v993
      %v1080 = vunpack.c.l.b16 %v994
      %v1081 = vunpack.c.h.b16 %v994
      %v1082 = vunpack.c.l.b16 %v995
      %v1083 = vunpack.c.l.b16 %v996
      %v1084 = vunpack.c.h.b16 %v996
      %v1085 = vunpack.c.l.b16 %v997
      %v1086 = vunpack.c.l.b16 %v998
      %v1087 = vunpack.c.h.b16 %v998
      %v1088 = vunpack.c.l.b16 %v999
      %v1089 = vunpack.c.l.b16 %v1000
      %v1090 = vunpack.c.h.b16 %v1000
      %v1091 = vunpack.c.l.b16 %v1001
      %v1092 = vunpack.c.l.b16 %v1002
      %v1093 = vunpack.c.h.b16 %v1002
      %v1094 = vunpack.c.l.b16 %v1003
      %v1095 = vunpack.c.l.b16 %v1004
      %v1096 = vunpack.c.h.b16 %v1004
      %v1097 = vunpack.c.l.b16 %v1005
      %v1098 = vunpack.c.l.b16 %v1006
      %v1099 = vunpack.c.h.b16 %v1006
      %v1100 = vunpack.c.l.b16 %v1007
      %v1101 = vunpack.c.l.b16 %v1008
      %v1102 = vunpack.c.h.b16 %v1008
      %v1103 = vunpack.c.l.b16 %v1009
      %v1104 = vunpack.c.l.b16 %v1010
      %v1105 = vunpack.c.h.b16 %v1010
      %v1106 = vunpack.c.l.b16 %v1011
      %v1107 = vunpack.c.l.b16 %v1012
      %v1108 = vunpack.c.h.b16 %v1012
      %v1109 = vunpack.c.l.b16 %v1013
      %v1110 = vunpack.c.l.b16 %v1014
      %v1111 = vunpack.c.h.b16 %v1014
      %v1112 = vunpack.c.l.b16 %v1015
      %v1113 = vpack.c.b16 %v1068, %v1065
      %v1114 = vpack.c.b16 %v1069, %v1066
      %v1115 = vpack.c.b16 %v1070, %v1067
      %v1116 = vpack.c.b16 %v1074, %v1071
      %v1117 = vpack.c.b16 %v1075, %v1072
      %v1118 = vpack.c.b16 %v1076, %v1073
      %v1119 = vpack.c.b16 %v1080, %v1077
      %v1120 = vpack.c.b16 %v1081, %v1078
      %v1121 = vpack.c.b16 %v1082, %v1079
      %v1122 = vpack.c.b16 %v1086, %v1083
      %v1123 = vpack.c.b16 %v1087, %v1084
      %v1124 = vpack.c.b16 %v1088, %v1085
      %v1125 = vpack.c.b16 %v1092, %v1089
      %v1126 = vpack.c.b16 %v1093, %v1090
      %v1127 = vpack.c.b16 %v1094, %v1091
      %v1128 = vpack.c.b16 %v1098, %v1095
      %v1129 = vpack.c.b16 %v1099, %v1096
      %v1130 = vpack.c.b16 %v1100, %v1097
      %v1131 = vpack.c.b16 %v1104, %v1101
      %v1132 = vpack.c.b16 %v1105, %v1102
      %v1133 = vpack.c.b16 %v1106, %v1103
      %v1134 = vpack.c.b16 %v1110, %v1107
      %v1135 = vpack.c.b16 %v1111, %v1108
      %v1136 = vpack.c.b16 %v1112, %v1109
      %1161 = vmatprep.subr.bf16.mxu0 %v1114
      %1162 = vmatpush1.bf16.msra.mxu0 %v1113
      %1163 = vmatprep.subr.bf16.mxu0 %v1117
      %1164 = vmatpush1.bf16.msra.mxu0 %v1116
      %1165 = vmatprep.subr.bf16.mxu0 %v1120
      %1166 = vmatpush1.bf16.msra.mxu0 %v1119
      %1167 = vmatprep.subr.bf16.mxu0 %v1123
      %1168 = vmatpush1.bf16.msra.mxu0 %v1122
      %1169 = vmatprep.subr.bf16.mxu0 %v1126
      %1170 = vmatpush1.bf16.msra.mxu0 %v1125
      %1171 = vmatprep.subr.bf16.mxu0 %v1129
      %1172 = vmatpush1.bf16.msra.mxu0 %v1128
      %1173 = vmatprep.subr.bf16.mxu0 %v1132
      %1174 = vmatpush1.bf16.msra.mxu0 %v1131
      %1175 = vmatprep.subr.bf16.mxu0 %v1135
      %1176 = vmatpush1.bf16.msra.mxu0 %v1134
      %1177 = vmatprep.subr.bf16.mxu0 0
      %1178 = vmatpush1.bf16.msra.mxu0 0
      %1179 = vmatprep.subr.bf16.mxu0 0
      %1180 = vmatpush1.bf16.msra.mxu0 0
      %1181 = vmatprep.subr.bf16.mxu0 0
      %1182 = vmatpush1.bf16.msra.mxu0 0
      %1183 = vmatprep.subr.bf16.mxu0 0
      %1184 = vmatpush1.bf16.msra.mxu0 0
      %1185 = vmatprep.subr.bf16.mxu0 0
      %1186 = vmatpush1.bf16.msra.mxu0 0
      %1187 = vmatprep.subr.bf16.mxu0 0
      %1188 = vmatpush1.bf16.msra.mxu0 0
      %1189 = vmatprep.subr.bf16.mxu0 0
      %1190 = vmatpush1.bf16.msra.mxu0 0
      %1191 = vmatprep.subr.bf16.mxu0 0
      %1192 = vmatpush1.bf16.msra.mxu0 0
      %1193 = vmatprep.mubr.bf16.mxu0 0
      %1194 = vmatmul.mubr.bf16.gmra.mrb[0].mxu0 %v983
      %v1195 = vpop.f32.mrb[0].mxu0
      %v1196 = vadd.f32 %v1021, %v1195
      %v1197 = vpop.f32.mrb[0].mxu0
      %v1198 = vadd.f32 %v1025, %v1197
      %v1199 = vpop.f32.mrb[0].mxu0
      %v1200 = vadd.f32 %v1021, %v1199
      %v1201 = vpop.f32.mrb[0].mxu0
      %v1202 = vadd.f32 %v1025, %v1201
      %1203 = vdwg.mxu0
      %1204 = vmatprep.subr.bf16.mxu0 0
      %1205 = vmatpush1.bf16.msra.mxu0 %v1115
      %1206 = vmatprep.subr.bf16.mxu0 0
      %1207 = vmatpush1.bf16.msra.mxu0 %v1118
      %1208 = vmatprep.subr.bf16.mxu0 0
      %1209 = vmatpush1.bf16.msra.mxu0 %v1121
      %1210 = vmatprep.subr.bf16.mxu0 0
      %1211 = vmatpush1.bf16.msra.mxu0 %v1124
      %1212 = vmatprep.subr.bf16.mxu0 0
      %1213 = vmatpush1.bf16.msra.mxu0 %v1127
      %1214 = vmatprep.subr.bf16.mxu0 0
      %1215 = vmatpush1.bf16.msra.mxu0 %v1130
      %1216 = vmatprep.subr.bf16.mxu0 0
      %1217 = vmatpush1.bf16.msra.mxu0 %v1133
      %1218 = vmatprep.subr.bf16.mxu0 0
      %1219 = vmatpush1.bf16.msra.mxu0 %v1136
      %1220 = vmatprep.subr.bf16.mxu0 0
      %1221 = vmatpush1.bf16.msra.mxu0 0
      %1222 = vmatprep.subr.bf16.mxu0 0
      %1223 = vmatpush1.bf16.msra.mxu0 0
      %1224 = vmatprep.subr.bf16.mxu0 0
      %1225 = vmatpush1.bf16.msra.mxu0 0
      %1226 = vmatprep.subr.bf16.mxu0 0
      %1227 = vmatpush1.bf16.msra.mxu0 0
      %1228 = vmatprep.subr.bf16.mxu0 0
      %1229 = vmatpush1.bf16.msra.mxu0 0
      %1230 = vmatprep.subr.bf16.mxu0 0
      %1231 = vmatpush1.bf16.msra.mxu0 0
      %1232 = vmatprep.subr.bf16.mxu0 0
      %1233 = vmatpush1.bf16.msra.mxu0 0
      %1234 = vmatprep.subr.bf16.mxu0 0
      %1235 = vmatpush1.bf16.msra.mxu0 0
      %1236 = vmatprep.mubr.bf16.mxu0 0
      %1237 = vmatmul.mubr.bf16.gmra.mrb[0].mxu0 %v983
      %v1238 = vpop.f32.mrb[0].mxu0
      %v1239 = vadd.f32 %v1029, %v1238
      %v1240 = vpop.f32.mrb[0].mxu0
      %v1241 = vpop.f32.mrb[0].mxu0
      %v1242 = vadd.f32 %v1029, %v1241
      %v1243 = vpop.f32.mrb[0].mxu0
      %1244 = vdwg.mxu0
      %v1245 = vmul.f32 %v1196, 0.17677669
      %v1246 = vmul.f32 %v1200, 0.17677669
      %v1247 = vpack.c.bf16 %v1246, %v1245
      %v1248 = vpack.c.bf16 %v1202, %v1198
      %vm1249 = vcmask 261120
      %v1251 = vsel %vm1249, %v1247, 0
      %v1254 = vsel %vm1249, %v1248, 0
      %1256 = vmatprep.subr.bf16.mxu0 0
      %1257 = vmatpush1.bf16.xpose.msra.mxu0 %v1254
      %1258 = vmatprep.subr.bf16.mxu0 0
      %1259 = vmatpush1.bf16.xpose.msra.mxu0 0
      %1260 = vmatprep.subr.bf16.mxu0 0
      %1261 = vmatpush1.bf16.xpose.msra.mxu0 0
      %1262 = vmatprep.subr.bf16.mxu0 0
      %1263 = vmatpush1.bf16.xpose.msra.mxu0 0
      %1264 = vmatprep.subr.bf16.mxu0 0
      %1265 = vmatpush1.bf16.xpose.msra.mxu0 0
      %1266 = vmatprep.subr.bf16.mxu0 0
      %1267 = vmatpush1.bf16.xpose.msra.mxu0 0
      %1268 = vmatprep.subr.bf16.mxu0 0
      %1269 = vmatpush1.bf16.xpose.msra.mxu0 0
      %1270 = vmatprep.subr.bf16.mxu0 0
      %1271 = vmatpush1.bf16.xpose.msra.mxu0 0
      %1272 = vmatprep.subr.bf16.mxu0 0
      %1273 = vmatpush1.bf16.xpose.msra.mxu0 0
      %1274 = vmatprep.subr.bf16.mxu0 0
      %1275 = vmatpush1.bf16.xpose.msra.mxu0 0
      %1276 = vmatprep.subr.bf16.mxu0 0
      %1277 = vmatpush1.bf16.xpose.msra.mxu0 0
      %1278 = vmatprep.subr.bf16.mxu0 0
      %1279 = vmatpush1.bf16.xpose.msra.mxu0 0
      %1280 = vmatprep.subr.bf16.mxu0 0
      %1281 = vmatpush1.bf16.xpose.msra.mxu0 0
      %1282 = vmatprep.subr.bf16.mxu0 0
      %1283 = vmatpush1.bf16.xpose.msra.mxu0 0
      %1284 = vmatprep.subr.bf16.mxu0 0
      %1285 = vmatpush1.bf16.xpose.msra.mxu0 0
      %1286 = vmatprep.subr.bf16.mxu0 0
      %1287 = vmatpush1.bf16.xpose.msra.mxu0 0
      %1288 = vmatprep.mubr.bf16.mxu0 0
      %1289 = vmatmul.mubr.bf16.gmra.mrb[0].mxu0 %v1251
      %v1290 = vpop.f32.mrb[0].mxu0
      %v1291 = vadd.f32 0.0, %v1290
      %v1292 = vpop.f32.mrb[0].mxu0
      %v1293 = vpop.f32.mrb[0].mxu0
      %v1294 = vadd.f32 0.0, %v1293
      %v1295 = vpop.f32.mrb[0].mxu0
      %1296 = vdwg.mxu0
      %vm1297 = vcmask 130048
      %v1298 = vsel %vm1297, %v1291, -inf
      %1299 = vmax.xlane.f32.xlu0 %v1298
      %v1300 = vpop.xlane.xlu0 %1299
      %v1301 = vsel %vm1297, %v1294, -inf
      %1302 = vmax.xlane.f32.xlu0 %v1301
      %v1303 = vpop.xlane.xlu0 %1302
      %v1304 = vsub.f32 %v1291, %v1300
      %v1305 = vsub.f32 %v1294, %v1303
      %v1306 = vmul.f32 %v1304, 1.442695
      %v1307 = vpow.pop %v1306
      %v1308 = vmul.f32 %v1305, 1.442695
      %v1309 = vpow.pop %v1308
      %v1310 = vsel %vm1297, %v1307, 0.0
      %1311 = vadd.xlane.f32.xlu0 %v1310
      %v1312 = vpop.xlane.xlu0 %1311
      %v1313 = vsel %vm1297, %v1309, 0.0
      %1314 = vadd.xlane.f32.xlu0 %v1313
      %v1315 = vpop.xlane.xlu0 %1314
      %v1316 = vrcp.pop %v1312
      %v1317 = vrcp.pop %v1315
      %v1318 = vmul.f32 %v1307, %v1316
      %v1319 = vmul.f32 %v1309, %v1317
      %v1320 = vpack.c.bf16 %v1319, %v1318
      %v1321 = vpack.c.bf16 %v1242, %v1239
      %v1323 = vsel %vm1297, %v1320, 0
      %1325 = vmatprep.subr.bf16.mxu0 0
      %1326 = vmatpush1.bf16.msra.mxu0 %v1321
      %1327 = vmatprep.subr.bf16.mxu0 0
      %1328 = vmatpush1.bf16.msra.mxu0 0
      %1329 = vmatprep.subr.bf16.mxu0 0
      %1330 = vmatpush1.bf16.msra.mxu0 0
      %1331 = vmatprep.subr.bf16.mxu0 0
      %1332 = vmatpush1.bf16.msra.mxu0 0
      %1333 = vmatprep.subr.bf16.mxu0 0
      %1334 = vmatpush1.bf16.msra.mxu0 0
      %1335 = vmatprep.subr.bf16.mxu0 0
      %1336 = vmatpush1.bf16.msra.mxu0 0
      %1337 = vmatprep.subr.bf16.mxu0 0
      %1338 = vmatpush1.bf16.msra.mxu0 0
      %1339 = vmatprep.subr.bf16.mxu0 0
      %1340 = vmatpush1.bf16.msra.mxu0 0
      %1341 = vmatprep.subr.bf16.mxu0 0
      %1342 = vmatpush1.bf16.msra.mxu0 0
      %1343 = vmatprep.subr.bf16.mxu0 0
      %1344 = vmatpush1.bf16.msra.mxu0 0
      %1345 = vmatprep.subr.bf16.mxu0 0
      %1346 = vmatpush1.bf16.msra.mxu0 0
      %1347 = vmatprep.subr.bf16.mxu0 0
      %1348 = vmatpush1.bf16.msra.mxu0 0
      %1349 = vmatprep.subr.bf16.mxu0 0
      %1350 = vmatpush1.bf16.msra.mxu0 0
      %1351 = vmatprep.subr.bf16.mxu0 0
      %1352 = vmatpush1.bf16.msra.mxu0 0
      %1353 = vmatprep.subr.bf16.mxu0 0
      %1354 = vmatpush1.bf16.msra.mxu0 0
      %1355 = vmatprep.subr.bf16.mxu0 0
      %1356 = vmatpush1.bf16.msra.mxu0 0
      %1357 = vmatprep.mubr.bf16.mxu0 0
      %1358 = vmatmul.mubr.bf16.gmra.mrb[0].mxu0 %v1323
      %v1359 = vpop.f32.mrb[0].mxu0
      %v1360 = vadd.f32 0.0, %v1359
      %v1361 = vpop.f32.mrb[0].mxu0
      %v1362 = vpop.f32.mrb[0].mxu0
      %v1363 = vadd.f32 0.0, %v1362
      %v1364 = vpop.f32.mrb[0].mxu0
      %1365 = vdwg.mxu0
      %1367 = vrot.lane.b32.xlu0 %v1247, 96
      %v1368 = vpop.permute.xlu0 %1367
      %1370 = vrot.lane.b32.xlu0 %v1248, 96
      %v1371 = vpop.permute.xlu0 %1370
      %v1373 = vsel %vm1249, %v1368, 0
      %v1376 = vsel %vm1249, %v1371, 0
      %1378 = vmatprep.subr.bf16.mxu0 0
      %1379 = vmatpush1.bf16.xpose.msra.mxu0 %v1376
      %1380 = vmatprep.subr.bf16.mxu0 0
      %1381 = vmatpush1.bf16.xpose.msra.mxu0 0
      %1382 = vmatprep.subr.bf16.mxu0 0
      %1383 = vmatpush1.bf16.xpose.msra.mxu0 0
      %1384 = vmatprep.subr.bf16.mxu0 0
      %1385 = vmatpush1.bf16.xpose.msra.mxu0 0
      %1386 = vmatprep.subr.bf16.mxu0 0
      %1387 = vmatpush1.bf16.xpose.msra.mxu0 0
      %1388 = vmatprep.subr.bf16.mxu0 0
      %1389 = vmatpush1.bf16.xpose.msra.mxu0 0
      %1390 = vmatprep.subr.bf16.mxu0 0
      %1391 = vmatpush1.bf16.xpose.msra.mxu0 0
      %1392 = vmatprep.subr.bf16.mxu0 0
      %1393 = vmatpush1.bf16.xpose.msra.mxu0 0
      %1394 = vmatprep.subr.bf16.mxu0 0
      %1395 = vmatpush1.bf16.xpose.msra.mxu0 0
      %1396 = vmatprep.subr.bf16.mxu0 0
      %1397 = vmatpush1.bf16.xpose.msra.mxu0 0
      %1398 = vmatprep.subr.bf16.mxu0 0
      %1399 = vmatpush1.bf16.xpose.msra.mxu0 0
      %1400 = vmatprep.subr.bf16.mxu0 0
      %1401 = vmatpush1.bf16.xpose.msra.mxu0 0
      %1402 = vmatprep.subr.bf16.mxu0 0
      %1403 = vmatpush1.bf16.xpose.msra.mxu0 0
      %1404 = vmatprep.subr.bf16.mxu0 0
      %1405 = vmatpush1.bf16.xpose.msra.mxu0 0
      %1406 = vmatprep.subr.bf16.mxu0 0
      %1407 = vmatpush1.bf16.xpose.msra.mxu0 0
      %1408 = vmatprep.subr.bf16.mxu0 0
      %1409 = vmatpush1.bf16.xpose.msra.mxu0 0
      %1410 = vmatprep.mubr.bf16.mxu0 0
      %1411 = vmatmul.mubr.bf16.gmra.mrb[0].mxu0 %v1373
      %v1412 = vpop.f32.mrb[0].mxu0
      %v1413 = vadd.f32 0.0, %v1412
      %v1414 = vpop.f32.mrb[0].mxu0
      %v1415 = vpop.f32.mrb[0].mxu0
      %v1416 = vadd.f32 0.0, %v1415
      %v1417 = vpop.f32.mrb[0].mxu0
      %1418 = vdwg.mxu0
      %v1419 = vsel %vm1297, %v1413, -inf
      %1420 = vmax.xlane.f32.xlu0 %v1419
      %v1421 = vpop.xlane.xlu0 %1420
      %v1422 = vsel %vm1297, %v1416, -inf
      %1423 = vmax.xlane.f32.xlu0 %v1422
      %v1424 = vpop.xlane.xlu0 %1423
      %v1425 = vsub.f32 %v1413, %v1421
      %v1426 = vsub.f32 %v1416, %v1424
      %v1427 = vmul.f32 %v1425, 1.442695
      %v1428 = vpow.pop %v1427
      %v1429 = vmul.f32 %v1426, 1.442695
      %v1430 = vpow.pop %v1429
      %v1431 = vsel %vm1297, %v1428, 0.0
      %1432 = vadd.xlane.f32.xlu0 %v1431
      %v1433 = vpop.xlane.xlu0 %1432
      %v1434 = vsel %vm1297, %v1430, 0.0
      %1435 = vadd.xlane.f32.xlu0 %v1434
      %v1436 = vpop.xlane.xlu0 %1435
      %v1437 = vrcp.pop %v1433
      %v1438 = vrcp.pop %v1436
      %v1439 = vmul.f32 %v1428, %v1437
      %v1440 = vmul.f32 %v1430, %v1438
      %v1441 = vpack.c.bf16 %v1440, %v1439
      %1443 = vrot.lane.b32.xlu0 %v1321, 96
      %v1444 = vpop.permute.xlu0 %1443
      %v1447 = vsel %vm1297, %v1441, 0
      %1449 = vmatprep.subr.bf16.mxu0 0
      %1450 = vmatpush1.bf16.msra.mxu0 %v1444
      %1451 = vmatprep.subr.bf16.mxu0 0
      %1452 = vmatpush1.bf16.msra.mxu0 0
      %1453 = vmatprep.subr.bf16.mxu0 0
      %1454 = vmatpush1.bf16.msra.mxu0 0
      %1455 = vmatprep.subr.bf16.mxu0 0
      %1456 = vmatpush1.bf16.msra.mxu0 0
      %1457 = vmatprep.subr.bf16.mxu0 0
      %1458 = vmatpush1.bf16.msra.mxu0 0
      %1459 = vmatprep.subr.bf16.mxu0 0
      %1460 = vmatpush1.bf16.msra.mxu0 0
      %1461 = vmatprep.subr.bf16.mxu0 0
      %1462 = vmatpush1.bf16.msra.mxu0 0
      %1463 = vmatprep.subr.bf16.mxu0 0
      %1464 = vmatpush1.bf16.msra.mxu0 0
      %1465 = vmatprep.subr.bf16.mxu0 0
      %1466 = vmatpush1.bf16.msra.mxu0 0
      %1467 = vmatprep.subr.bf16.mxu0 0
      %1468 = vmatpush1.bf16.msra.mxu0 0
      %1469 = vmatprep.subr.bf16.mxu0 0
      %1470 = vmatpush1.bf16.msra.mxu0 0
      %1471 = vmatprep.subr.bf16.mxu0 0
      %1472 = vmatpush1.bf16.msra.mxu0 0
      %1473 = vmatprep.subr.bf16.mxu0 0
      %1474 = vmatpush1.bf16.msra.mxu0 0
      %1475 = vmatprep.subr.bf16.mxu0 0
      %1476 = vmatpush1.bf16.msra.mxu0 0
      %1477 = vmatprep.subr.bf16.mxu0 0
      %1478 = vmatpush1.bf16.msra.mxu0 0
      %1479 = vmatprep.subr.bf16.mxu0 0
      %1480 = vmatpush1.bf16.msra.mxu0 0
      %1481 = vmatprep.mubr.bf16.mxu0 0
      %1482 = vmatmul.mubr.bf16.gmra.mrb[0].mxu0 %v1447
      %v1483 = vpop.f32.mrb[0].mxu0
      %v1484 = vadd.f32 0.0, %v1483
      %v1485 = vpop.f32.mrb[0].mxu0
      %v1486 = vpop.f32.mrb[0].mxu0
      %v1487 = vadd.f32 0.0, %v1486
      %v1488 = vpop.f32.mrb[0].mxu0
      %1489 = vdwg.mxu0
      %1490 = vrot.lane.b32.xlu0 %v1247, 64
      %v1491 = vpop.permute.xlu0 %1490
      %1492 = vrot.lane.b32.xlu0 %v1248, 64
      %v1493 = vpop.permute.xlu0 %1492
      %v1495 = vsel %vm1249, %v1491, 0
      %v1498 = vsel %vm1249, %v1493, 0
      %1500 = vmatprep.subr.bf16.mxu0 0
      %1501 = vmatpush1.bf16.xpose.msra.mxu0 %v1498
      %1502 = vmatprep.subr.bf16.mxu0 0
      %1503 = vmatpush1.bf16.xpose.msra.mxu0 0
      %1504 = vmatprep.subr.bf16.mxu0 0
      %1505 = vmatpush1.bf16.xpose.msra.mxu0 0
      %1506 = vmatprep.subr.bf16.mxu0 0
      %1507 = vmatpush1.bf16.xpose.msra.mxu0 0
      %1508 = vmatprep.subr.bf16.mxu0 0
      %1509 = vmatpush1.bf16.xpose.msra.mxu0 0
      %1510 = vmatprep.subr.bf16.mxu0 0
      %1511 = vmatpush1.bf16.xpose.msra.mxu0 0
      %1512 = vmatprep.subr.bf16.mxu0 0
      %1513 = vmatpush1.bf16.xpose.msra.mxu0 0
      %1514 = vmatprep.subr.bf16.mxu0 0
      %1515 = vmatpush1.bf16.xpose.msra.mxu0 0
      %1516 = vmatprep.subr.bf16.mxu0 0
      %1517 = vmatpush1.bf16.xpose.msra.mxu0 0
      %1518 = vmatprep.subr.bf16.mxu0 0
      %1519 = vmatpush1.bf16.xpose.msra.mxu0 0
      %1520 = vmatprep.subr.bf16.mxu0 0
      %1521 = vmatpush1.bf16.xpose.msra.mxu0 0
      %1522 = vmatprep.subr.bf16.mxu0 0
      %1523 = vmatpush1.bf16.xpose.msra.mxu0 0
      %1524 = vmatprep.subr.bf16.mxu0 0
      %1525 = vmatpush1.bf16.xpose.msra.mxu0 0
      %1526 = vmatprep.subr.bf16.mxu0 0
      %1527 = vmatpush1.bf16.xpose.msra.mxu0 0
      %1528 = vmatprep.subr.bf16.mxu0 0
      %1529 = vmatpush1.bf16.xpose.msra.mxu0 0
      %1530 = vmatprep.subr.bf16.mxu0 0
      %1531 = vmatpush1.bf16.xpose.msra.mxu0 0
      %1532 = vmatprep.mubr.bf16.mxu0 0
      %1533 = vmatmul.mubr.bf16.gmra.mrb[0].mxu0 %v1495
      %v1534 = vpop.f32.mrb[0].mxu0
      %v1535 = vadd.f32 0.0, %v1534
      %v1536 = vpop.f32.mrb[0].mxu0
      %v1537 = vpop.f32.mrb[0].mxu0
      %v1538 = vadd.f32 0.0, %v1537
      %v1539 = vpop.f32.mrb[0].mxu0
      %1540 = vdwg.mxu0
      %v1541 = vsel %vm1297, %v1535, -inf
      %1542 = vmax.xlane.f32.xlu0 %v1541
      %v1543 = vpop.xlane.xlu0 %1542
      %v1544 = vsel %vm1297, %v1538, -inf
      %1545 = vmax.xlane.f32.xlu0 %v1544
      %v1546 = vpop.xlane.xlu0 %1545
      %v1547 = vsub.f32 %v1535, %v1543
      %v1548 = vsub.f32 %v1538, %v1546
      %v1549 = vmul.f32 %v1547, 1.442695
      %v1550 = vpow.pop %v1549
      %v1551 = vmul.f32 %v1548, 1.442695
      %v1552 = vpow.pop %v1551
      %v1553 = vsel %vm1297, %v1550, 0.0
      %1554 = vadd.xlane.f32.xlu0 %v1553
      %v1555 = vpop.xlane.xlu0 %1554
      %v1556 = vsel %vm1297, %v1552, 0.0
      %1557 = vadd.xlane.f32.xlu0 %v1556
      %v1558 = vpop.xlane.xlu0 %1557
      %v1559 = vrcp.pop %v1555
      %v1560 = vrcp.pop %v1558
      %v1561 = vmul.f32 %v1550, %v1559
      %v1562 = vmul.f32 %v1552, %v1560
      %v1563 = vpack.c.bf16 %v1562, %v1561
      %1564 = vrot.lane.b32.xlu0 %v1321, 64
      %v1565 = vpop.permute.xlu0 %1564
      %v1568 = vsel %vm1297, %v1563, 0
      %1570 = vmatprep.subr.bf16.mxu0 0
      %1571 = vmatpush1.bf16.msra.mxu0 %v1565
      %1572 = vmatprep.subr.bf16.mxu0 0
      %1573 = vmatpush1.bf16.msra.mxu0 0
      %1574 = vmatprep.subr.bf16.mxu0 0
      %1575 = vmatpush1.bf16.msra.mxu0 0
      %1576 = vmatprep.subr.bf16.mxu0 0
      %1577 = vmatpush1.bf16.msra.mxu0 0
      %1578 = vmatprep.subr.bf16.mxu0 0
      %1579 = vmatpush1.bf16.msra.mxu0 0
      %1580 = vmatprep.subr.bf16.mxu0 0
      %1581 = vmatpush1.bf16.msra.mxu0 0
      %1582 = vmatprep.subr.bf16.mxu0 0
      %1583 = vmatpush1.bf16.msra.mxu0 0
      %1584 = vmatprep.subr.bf16.mxu0 0
      %1585 = vmatpush1.bf16.msra.mxu0 0
      %1586 = vmatprep.subr.bf16.mxu0 0
      %1587 = vmatpush1.bf16.msra.mxu0 0
      %1588 = vmatprep.subr.bf16.mxu0 0
      %1589 = vmatpush1.bf16.msra.mxu0 0
      %1590 = vmatprep.subr.bf16.mxu0 0
      %1591 = vmatpush1.bf16.msra.mxu0 0
      %1592 = vmatprep.subr.bf16.mxu0 0
      %1593 = vmatpush1.bf16.msra.mxu0 0
      %1594 = vmatprep.subr.bf16.mxu0 0
      %1595 = vmatpush1.bf16.msra.mxu0 0
      %1596 = vmatprep.subr.bf16.mxu0 0
      %1597 = vmatpush1.bf16.msra.mxu0 0
      %1598 = vmatprep.subr.bf16.mxu0 0
      %1599 = vmatpush1.bf16.msra.mxu0 0
      %1600 = vmatprep.subr.bf16.mxu0 0
      %1601 = vmatpush1.bf16.msra.mxu0 0
      %1602 = vmatprep.mubr.bf16.mxu0 0
      %1603 = vmatmul.mubr.bf16.gmra.mrb[0].mxu0 %v1568
      %v1604 = vpop.f32.mrb[0].mxu0
      %v1605 = vadd.f32 0.0, %v1604
      %v1606 = vpop.f32.mrb[0].mxu0
      %v1607 = vpop.f32.mrb[0].mxu0
      %v1608 = vadd.f32 0.0, %v1607
      %v1609 = vpop.f32.mrb[0].mxu0
      %1610 = vdwg.mxu0
      %1611 = vrot.lane.b32.xlu0 %v1247, 32
      %v1612 = vpop.permute.xlu0 %1611
      %1613 = vrot.lane.b32.xlu0 %v1248, 32
      %v1614 = vpop.permute.xlu0 %1613
      %v1616 = vsel %vm1249, %v1612, 0
      %v1619 = vsel %vm1249, %v1614, 0
      %1621 = vmatprep.subr.bf16.mxu0 0
      %1622 = vmatpush1.bf16.xpose.msra.mxu0 %v1619
      %1623 = vmatprep.subr.bf16.mxu0 0
      %1624 = vmatpush1.bf16.xpose.msra.mxu0 0
      %1625 = vmatprep.subr.bf16.mxu0 0
      %1626 = vmatpush1.bf16.xpose.msra.mxu0 0
      %1627 = vmatprep.subr.bf16.mxu0 0
      %1628 = vmatpush1.bf16.xpose.msra.mxu0 0
      %1629 = vmatprep.subr.bf16.mxu0 0
      %1630 = vmatpush1.bf16.xpose.msra.mxu0 0
      %1631 = vmatprep.subr.bf16.mxu0 0
      %1632 = vmatpush1.bf16.xpose.msra.mxu0 0
      %1633 = vmatprep.subr.bf16.mxu0 0
      %1634 = vmatpush1.bf16.xpose.msra.mxu0 0
      %1635 = vmatprep.subr.bf16.mxu0 0
      %1636 = vmatpush1.bf16.xpose.msra.mxu0 0
      %1637 = vmatprep.subr.bf16.mxu0 0
      %1638 = vmatpush1.bf16.xpose.msra.mxu0 0
      %1639 = vmatprep.subr.bf16.mxu0 0
      %1640 = vmatpush1.bf16.xpose.msra.mxu0 0
      %1641 = vmatprep.subr.bf16.mxu0 0
      %1642 = vmatpush1.bf16.xpose.msra.mxu0 0
      %1643 = vmatprep.subr.bf16.mxu0 0
      %1644 = vmatpush1.bf16.xpose.msra.mxu0 0
      %1645 = vmatprep.subr.bf16.mxu0 0
      %1646 = vmatpush1.bf16.xpose.msra.mxu0 0
      %1647 = vmatprep.subr.bf16.mxu0 0
      %1648 = vmatpush1.bf16.xpose.msra.mxu0 0
      %1649 = vmatprep.subr.bf16.mxu0 0
      %1650 = vmatpush1.bf16.xpose.msra.mxu0 0
      %1651 = vmatprep.subr.bf16.mxu0 0
      %1652 = vmatpush1.bf16.xpose.msra.mxu0 0
      %1653 = vmatprep.mubr.bf16.mxu0 0
      %1654 = vmatmul.mubr.bf16.gmra.mrb[0].mxu0 %v1616
      %v1655 = vpop.f32.mrb[0].mxu0
      %v1656 = vadd.f32 0.0, %v1655
      %v1657 = vpop.f32.mrb[0].mxu0
      %v1658 = vpop.f32.mrb[0].mxu0
      %v1659 = vadd.f32 0.0, %v1658
      %v1660 = vpop.f32.mrb[0].mxu0
      %1661 = vdwg.mxu0
      %v1662 = vsel %vm1297, %v1656, -inf
      %1663 = vmax.xlane.f32.xlu0 %v1662
      %v1664 = vpop.xlane.xlu0 %1663
      %v1665 = vsel %vm1297, %v1659, -inf
      %1666 = vmax.xlane.f32.xlu0 %v1665
      %v1667 = vpop.xlane.xlu0 %1666
      %v1668 = vsub.f32 %v1656, %v1664
      %v1669 = vsub.f32 %v1659, %v1667
      %v1670 = vmul.f32 %v1668, 1.442695
      %v1671 = vpow.pop %v1670
      %v1672 = vmul.f32 %v1669, 1.442695
      %v1673 = vpow.pop %v1672
      %v1674 = vsel %vm1297, %v1671, 0.0
      %1675 = vadd.xlane.f32.xlu0 %v1674
      %v1676 = vpop.xlane.xlu0 %1675
      %v1677 = vsel %vm1297, %v1673, 0.0
      %1678 = vadd.xlane.f32.xlu0 %v1677
      %v1679 = vpop.xlane.xlu0 %1678
      %v1680 = vrcp.pop %v1676
      %v1681 = vrcp.pop %v1679
      %v1682 = vmul.f32 %v1671, %v1680
      %v1683 = vmul.f32 %v1673, %v1681
      %v1684 = vpack.c.bf16 %v1683, %v1682
      %1685 = vrot.lane.b32.xlu0 %v1321, 32
      %v1686 = vpop.permute.xlu0 %1685
      %v1689 = vsel %vm1297, %v1684, 0
      %1691 = vmatprep.subr.bf16.mxu0 0
      %1692 = vmatpush1.bf16.msra.mxu0 %v1686
      %1693 = vmatprep.subr.bf16.mxu0 0
      %1694 = vmatpush1.bf16.msra.mxu0 0
      %1695 = vmatprep.subr.bf16.mxu0 0
      %1696 = vmatpush1.bf16.msra.mxu0 0
      %1697 = vmatprep.subr.bf16.mxu0 0
      %1698 = vmatpush1.bf16.msra.mxu0 0
      %1699 = vmatprep.subr.bf16.mxu0 0
      %1700 = vmatpush1.bf16.msra.mxu0 0
      %1701 = vmatprep.subr.bf16.mxu0 0
      %1702 = vmatpush1.bf16.msra.mxu0 0
      %1703 = vmatprep.subr.bf16.mxu0 0
      %1704 = vmatpush1.bf16.msra.mxu0 0
      %1705 = vmatprep.subr.bf16.mxu0 0
      %1706 = vmatpush1.bf16.msra.mxu0 0
      %1707 = vmatprep.subr.bf16.mxu0 0
      %1708 = vmatpush1.bf16.msra.mxu0 0
      %1709 = vmatprep.subr.bf16.mxu0 0
      %1710 = vmatpush1.bf16.msra.mxu0 0
      %1711 = vmatprep.subr.bf16.mxu0 0
      %1712 = vmatpush1.bf16.msra.mxu0 0
      %1713 = vmatprep.subr.bf16.mxu0 0
      %1714 = vmatpush1.bf16.msra.mxu0 0
      %1715 = vmatprep.subr.bf16.mxu0 0
      %1716 = vmatpush1.bf16.msra.mxu0 0
      %1717 = vmatprep.subr.bf16.mxu0 0
      %1718 = vmatpush1.bf16.msra.mxu0 0
      %1719 = vmatprep.subr.bf16.mxu0 0
      %1720 = vmatpush1.bf16.msra.mxu0 0
      %1721 = vmatprep.subr.bf16.mxu0 0
      %1722 = vmatpush1.bf16.msra.mxu0 0
      %1723 = vmatprep.mubr.bf16.mxu0 0
      %1724 = vmatmul.mubr.bf16.gmra.mrb[0].mxu0 %v1689
      %v1725 = vpop.f32.mrb[0].mxu0
      %v1726 = vadd.f32 0.0, %v1725
      %v1727 = vpop.f32.mrb[0].mxu0
      %v1728 = vpop.f32.mrb[0].mxu0
      %v1729 = vadd.f32 0.0, %v1728
      %v1730 = vpop.f32.mrb[0].mxu0
      %1731 = vdwg.mxu0
      %1734 = vrot.lane.b32.xlu0 %v1484, 32
      %v1735 = vpop.permute.xlu0 %1734
      %1736 = vrot.lane.b32.xlu0 %v1487, 32
      %v1737 = vpop.permute.xlu0 %1736
      %1742 = vrot.lane.b32.xlu0 %v1605, 64
      %v1743 = vpop.permute.xlu0 %1742
      %1744 = vrot.lane.b32.xlu0 %v1608, 64
      %v1745 = vpop.permute.xlu0 %1744
      %1750 = vrot.lane.b32.xlu0 %v1726, 96
      %v1751 = vpop.permute.xlu0 %1750
      %1752 = vrot.lane.b32.xlu0 %v1729, 96
      %v1753 = vpop.permute.xlu0 %1752
      %v1756 = vsel %vm1249, %v1360, %v1735
      %v1757 = vsel %vm1249, %v1363, %v1737
      %v1758 = vsel %vm865, %v1756, %v1743
      %v1759 = vsel %vm865, %v1757, %v1745
      %vm1760 = vcmask 785408
      %v1761 = vsel %vm1760, %v1758, %v1751
      %v1762 = vsel %vm1760, %v1759, %v1753
      %v1763 = vpack.c.bf16 %v1762, %v1761
      %v1764 = vld [vmem:[%s10] sm:$0xf]
      %v1765 = vld [vmem:[%s10 + $0x4] sm:$0xf]
      %v1766 = vld [vmem:[%s10 + $0x8] sm:$0xf]
      %v1767 = vld [vmem:[%s10 + $0xc] sm:$0xf]
      %v1768 = vld [vmem:[%s10 + $0x10] sm:$0xf]
      %v1769 = vld [vmem:[%s10 + $0x14] sm:$0xf]
      %v1770 = vld [vmem:[%s10 + $0x18] sm:$0xf]
      %v1771 = vld [vmem:[%s10 + $0x1c] sm:$0xf]
      %v1772 = vld [vmem:[%s10 + $0x20] sm:$0xf]
      %v1773 = vld [vmem:[%s10 + $0x24] sm:$0xf]
      %v1774 = vld [vmem:[%s10 + $0x28] sm:$0xf]
      %v1775 = vld [vmem:[%s10 + $0x2c] sm:$0xf]
      %v1776 = vld [vmem:[%s10 + $0x30] sm:$0xf]
      %v1777 = vld [vmem:[%s10 + $0x34] sm:$0xf]
      %v1778 = vld [vmem:[%s10 + $0x38] sm:$0xf]
      %v1779 = vld [vmem:[%s10 + $0x3c] sm:$0xf]
      %v1796 = vunpack.c.l.b16 %v1764
      %v1797 = vunpack.c.l.b16 %v1765
      %v1798 = vunpack.c.l.b16 %v1766
      %v1799 = vunpack.c.l.b16 %v1767
      %v1800 = vunpack.c.l.b16 %v1768
      %v1801 = vunpack.c.l.b16 %v1769
      %v1802 = vunpack.c.l.b16 %v1770
      %v1803 = vunpack.c.l.b16 %v1771
      %v1804 = vunpack.c.l.b16 %v1772
      %v1805 = vunpack.c.l.b16 %v1773
      %v1806 = vunpack.c.l.b16 %v1774
      %v1807 = vunpack.c.l.b16 %v1775
      %v1808 = vunpack.c.l.b16 %v1776
      %v1809 = vunpack.c.l.b16 %v1777
      %v1810 = vunpack.c.l.b16 %v1778
      %v1811 = vunpack.c.l.b16 %v1779
      %v1812 = vpack.c.b16 %v1797, %v1796
      %v1813 = vpack.c.b16 %v1799, %v1798
      %v1814 = vpack.c.b16 %v1801, %v1800
      %v1815 = vpack.c.b16 %v1803, %v1802
      %v1816 = vpack.c.b16 %v1805, %v1804
      %v1817 = vpack.c.b16 %v1807, %v1806
      %v1818 = vpack.c.b16 %v1809, %v1808
      %v1819 = vpack.c.b16 %v1811, %v1810
      %1828 = vmatprep.subr.bf16.mxu0 0
      %1829 = vmatpush1.bf16.msra.mxu0 %v1812
      %1830 = vmatprep.subr.bf16.mxu0 0
      %1831 = vmatpush1.bf16.msra.mxu0 %v1813
      %1832 = vmatprep.subr.bf16.mxu0 0
      %1833 = vmatpush1.bf16.msra.mxu0 %v1814
      %1834 = vmatprep.subr.bf16.mxu0 0
      %1835 = vmatpush1.bf16.msra.mxu0 %v1815
      %1836 = vmatprep.subr.bf16.mxu0 0
      %1837 = vmatpush1.bf16.msra.mxu0 %v1816
      %1838 = vmatprep.subr.bf16.mxu0 0
      %1839 = vmatpush1.bf16.msra.mxu0 %v1817
      %1840 = vmatprep.subr.bf16.mxu0 0
      %1841 = vmatpush1.bf16.msra.mxu0 %v1818
      %1842 = vmatprep.subr.bf16.mxu0 0
      %1843 = vmatpush1.bf16.msra.mxu0 %v1819
      %1844 = vmatprep.subr.bf16.mxu0 0
      %1845 = vmatpush1.bf16.msra.mxu0 0
      %1846 = vmatprep.subr.bf16.mxu0 0
      %1847 = vmatpush1.bf16.msra.mxu0 0
      %1848 = vmatprep.subr.bf16.mxu0 0
      %1849 = vmatpush1.bf16.msra.mxu0 0
      %1850 = vmatprep.subr.bf16.mxu0 0
      %1851 = vmatpush1.bf16.msra.mxu0 0
      %1852 = vmatprep.subr.bf16.mxu0 0
      %1853 = vmatpush1.bf16.msra.mxu0 0
      %1854 = vmatprep.subr.bf16.mxu0 0
      %1855 = vmatpush1.bf16.msra.mxu0 0
      %1856 = vmatprep.subr.bf16.mxu0 0
      %1857 = vmatpush1.bf16.msra.mxu0 0
      %1858 = vmatprep.subr.bf16.mxu0 0
      %1859 = vmatpush1.bf16.msra.mxu0 0
      %1860 = vmatprep.mubr.bf16.mxu0 0
      %1861 = vmatmul.mubr.bf16.gmra.mrb[0].mxu0 %v1763
      %v1862 = vpop.f32.mrb[0].mxu0
      %v1863 = vadd.f32 0.0, %v1862
      %v1864 = vpop.f32.mrb[0].mxu0
      %v1865 = vpop.f32.mrb[0].mxu0
      %v1866 = vadd.f32 0.0, %v1865
      %v1867 = vpop.f32.mrb[0].mxu0
      %1868 = vdwg.mxu0
      %v1869 = vadd.f32 %v940, %v1863
      %v1870 = vadd.f32 %v941, %v1866
      %v1871 = vld [vmem:[%s11] sm:$0x1]
      %v1873 = vlaneseq
      %v1874 = vshrl.u32 %v1873, 7
      %v1875 = vsub.s32 0, %v1874
      %v1876 = vrot.slane %v1871, %v1875
      %v1878 = vadd.f32 %v1869, %v1876
      %v1879 = vadd.f32 %v1870, %v1876
      %v1880 = vld [vmem:[%s12] sm:$0x1]
      %v1881 = vld [vmem:[%s13] sm:$0x1]
      %1882 = vadd.xlane.f32.xlu0 %v1878
      %v1883 = vpop.xlane.xlu0 %1882
      %1884 = vadd.xlane.f32.xlu0 %v1879
      %v1885 = vpop.xlane.xlu0 %1884
      %v1886 = vmul.f32 %v1883, %v948
      %v1887 = vmul.f32 %v1885, %v948
      %v1888 = vsub.f32 %v1878, %v1886
      %v1889 = vsub.f32 %v1879, %v1887
      %v1890 = vmul.f32 %v1888, %v1888
      %v1891 = vmul.f32 %v1889, %v1889
      %1892 = vadd.xlane.f32.xlu0 %v1890
      %v1893 = vpop.xlane.xlu0 %1892
      %1894 = vadd.xlane.f32.xlu0 %v1891
      %v1895 = vpop.xlane.xlu0 %1894
      %v1896 = vmul.f32 %v1893, %v948
      %v1897 = vmul.f32 %v1895, %v948
      %v1898 = vadd.f32 %v1896, 1e-06
      %v1899 = vadd.f32 %v1897, 1e-06
      %v1900 = vrsqrt.pop %v1898
      %v1901 = vrsqrt.pop %v1899
      %v1902 = vmul.f32 %v1888, %v1900
      %v1903 = vmul.f32 %v1889, %v1901
      %v1905 = vlaneseq
      %v1906 = vshrl.u32 %v1905, 7
      %v1907 = vsub.s32 0, %v1906
      %v1908 = vrot.slane %v1880, %v1907
      %v1910 = vmul.f32 %v1902, %v1908
      %v1911 = vmul.f32 %v1903, %v1908
      %v1913 = vlaneseq
      %v1914 = vshrl.u32 %v1913, 7
      %v1915 = vsub.s32 0, %v1914
      %v1916 = vrot.slane %v1881, %v1915
      %v1918 = vadd.f32 %v1910, %v1916
      %v1919 = vadd.f32 %v1911, %v1916
      %v1920 = vpack.c.bf16 %v1919, %v1918
      %v1921 = vld [vmem:[%s14] sm:$0xff]
      %v1922 = vld [vmem:[%s14 + $0x8] sm:$0xff]
      %v1923 = vld [vmem:[%s14 + $0x10] sm:$0xff]
      %v1924 = vld [vmem:[%s14 + $0x18] sm:$0xff]
      %v1925 = vld [vmem:[%s14 + $0x20] sm:$0xff]
      %v1926 = vld [vmem:[%s14 + $0x28] sm:$0xff]
      %v1927 = vld [vmem:[%s14 + $0x30] sm:$0xff]
      %v1928 = vld [vmem:[%s14 + $0x38] sm:$0xff]
      %v1929 = vld [vmem:[%s14 + $0x40] sm:$0xff]
      %v1930 = vld [vmem:[%s14 + $0x48] sm:$0xff]
      %v1931 = vld [vmem:[%s14 + $0x50] sm:$0xff]
      %v1932 = vld [vmem:[%s14 + $0x58] sm:$0xff]
      %v1933 = vld [vmem:[%s14 + $0x60] sm:$0xff]
      %v1934 = vld [vmem:[%s14 + $0x68] sm:$0xff]
      %v1935 = vld [vmem:[%s14 + $0x70] sm:$0xff]
      %v1936 = vld [vmem:[%s14 + $0x78] sm:$0xff]
      %v1937 = vld [vmem:[%s15] sm:$0x3]
      %v1939 = vlaneseq
      %v1940 = vshrl.u32 %v1939, 7
      %v1941 = vsub.s32 0, %v1940
      %v1942 = vrot.slane %v1937, %v1941
      %v1943 = vlaneseq
      %v1944 = vshrl.u32 %v1943, 7
      %v1945 = vsub.s32 1, %v1944
      %v1946 = vrot.slane %v1937, %v1945
      %v1965 = vunpack.c.l.b16 %v1921
      %v1966 = vunpack.c.h.b16 %v1921
      %v1967 = vunpack.c.l.b16 %v1922
      %v1968 = vunpack.c.h.b16 %v1922
      %v1969 = vunpack.c.l.b16 %v1923
      %v1970 = vunpack.c.h.b16 %v1923
      %v1971 = vunpack.c.l.b16 %v1924
      %v1972 = vunpack.c.h.b16 %v1924
      %v1973 = vunpack.c.l.b16 %v1925
      %v1974 = vunpack.c.h.b16 %v1925
      %v1975 = vunpack.c.l.b16 %v1926
      %v1976 = vunpack.c.h.b16 %v1926
      %v1977 = vunpack.c.l.b16 %v1927
      %v1978 = vunpack.c.h.b16 %v1927
      %v1979 = vunpack.c.l.b16 %v1928
      %v1980 = vunpack.c.h.b16 %v1928
      %v1981 = vunpack.c.l.b16 %v1929
      %v1982 = vunpack.c.h.b16 %v1929
      %v1983 = vunpack.c.l.b16 %v1930
      %v1984 = vunpack.c.h.b16 %v1930
      %v1985 = vunpack.c.l.b16 %v1931
      %v1986 = vunpack.c.h.b16 %v1931
      %v1987 = vunpack.c.l.b16 %v1932
      %v1988 = vunpack.c.h.b16 %v1932
      %v1989 = vunpack.c.l.b16 %v1933
      %v1990 = vunpack.c.h.b16 %v1933
      %v1991 = vunpack.c.l.b16 %v1934
      %v1992 = vunpack.c.h.b16 %v1934
      %v1993 = vunpack.c.l.b16 %v1935
      %v1994 = vunpack.c.h.b16 %v1935
      %v1995 = vunpack.c.l.b16 %v1936
      %v1996 = vunpack.c.h.b16 %v1936
      %v1997 = vpack.c.b16 %v1967, %v1965
      %v1998 = vpack.c.b16 %v1968, %v1966
      %v1999 = vpack.c.b16 %v1971, %v1969
      %v2000 = vpack.c.b16 %v1972, %v1970
      %v2001 = vpack.c.b16 %v1975, %v1973
      %v2002 = vpack.c.b16 %v1976, %v1974
      %v2003 = vpack.c.b16 %v1979, %v1977
      %v2004 = vpack.c.b16 %v1980, %v1978
      %v2005 = vpack.c.b16 %v1983, %v1981
      %v2006 = vpack.c.b16 %v1984, %v1982
      %v2007 = vpack.c.b16 %v1987, %v1985
      %v2008 = vpack.c.b16 %v1988, %v1986
      %v2009 = vpack.c.b16 %v1991, %v1989
      %v2010 = vpack.c.b16 %v1992, %v1990
      %v2011 = vpack.c.b16 %v1995, %v1993
      %v2012 = vpack.c.b16 %v1996, %v1994
      %2029 = vmatprep.subr.bf16.mxu0 %v1998
      %2030 = vmatpush1.bf16.msra.mxu0 %v1997
      %2031 = vmatprep.subr.bf16.mxu0 %v2000
      %2032 = vmatpush1.bf16.msra.mxu0 %v1999
      %2033 = vmatprep.subr.bf16.mxu0 %v2002
      %2034 = vmatpush1.bf16.msra.mxu0 %v2001
      %2035 = vmatprep.subr.bf16.mxu0 %v2004
      %2036 = vmatpush1.bf16.msra.mxu0 %v2003
      %2037 = vmatprep.subr.bf16.mxu0 %v2006
      %2038 = vmatpush1.bf16.msra.mxu0 %v2005
      %2039 = vmatprep.subr.bf16.mxu0 %v2008
      %2040 = vmatpush1.bf16.msra.mxu0 %v2007
      %2041 = vmatprep.subr.bf16.mxu0 %v2010
      %2042 = vmatpush1.bf16.msra.mxu0 %v2009
      %2043 = vmatprep.subr.bf16.mxu0 %v2012
      %2044 = vmatpush1.bf16.msra.mxu0 %v2011
      %2045 = vmatprep.subr.bf16.mxu0 0
      %2046 = vmatpush1.bf16.msra.mxu0 0
      %2047 = vmatprep.subr.bf16.mxu0 0
      %2048 = vmatpush1.bf16.msra.mxu0 0
      %2049 = vmatprep.subr.bf16.mxu0 0
      %2050 = vmatpush1.bf16.msra.mxu0 0
      %2051 = vmatprep.subr.bf16.mxu0 0
      %2052 = vmatpush1.bf16.msra.mxu0 0
      %2053 = vmatprep.subr.bf16.mxu0 0
      %2054 = vmatpush1.bf16.msra.mxu0 0
      %2055 = vmatprep.subr.bf16.mxu0 0
      %2056 = vmatpush1.bf16.msra.mxu0 0
      %2057 = vmatprep.subr.bf16.mxu0 0
      %2058 = vmatpush1.bf16.msra.mxu0 0
      %2059 = vmatprep.subr.bf16.mxu0 0
      %2060 = vmatpush1.bf16.msra.mxu0 0
      %2061 = vmatprep.mubr.bf16.mxu0 0
      %2062 = vmatmul.mubr.bf16.gmra.mrb[0].mxu0 %v1920
      %v2063 = vpop.f32.mrb[0].mxu0
      %v2064 = vadd.f32 %v1942, %v2063
      %v2065 = vpop.f32.mrb[0].mxu0
      %v2066 = vadd.f32 %v1946, %v2065
      %v2067 = vpop.f32.mrb[0].mxu0
      %v2068 = vadd.f32 %v1942, %v2067
      %v2069 = vpop.f32.mrb[0].mxu0
      %v2070 = vadd.f32 %v1946, %v2069
      %2071 = vdwg.mxu0
      %v2072 = vmax.f32 %v2064, 0.0
      %v2073 = vmax.f32 %v2066, 0.0
      %v2074 = vmax.f32 %v2068, 0.0
      %v2075 = vmax.f32 %v2070, 0.0
      %v2076 = vpack.c.bf16 %v2074, %v2072
      %v2077 = vpack.c.bf16 %v2075, %v2073
      %v2078 = vld [vmem:[%s16] sm:$0xf]
      %v2079 = vld [vmem:[%s16 + $0x4] sm:$0xf]
      %v2080 = vld [vmem:[%s16 + $0x8] sm:$0xf]
      %v2081 = vld [vmem:[%s16 + $0xc] sm:$0xf]
      %v2082 = vld [vmem:[%s16 + $0x10] sm:$0xf]
      %v2083 = vld [vmem:[%s16 + $0x14] sm:$0xf]
      %v2084 = vld [vmem:[%s16 + $0x18] sm:$0xf]
      %v2085 = vld [vmem:[%s16 + $0x1c] sm:$0xf]
      %v2086 = vld [vmem:[%s16 + $0x20] sm:$0xf]
      %v2087 = vld [vmem:[%s16 + $0x24] sm:$0xf]
      %v2088 = vld [vmem:[%s16 + $0x28] sm:$0xf]
      %v2089 = vld [vmem:[%s16 + $0x2c] sm:$0xf]
      %v2090 = vld [vmem:[%s16 + $0x30] sm:$0xf]
      %v2091 = vld [vmem:[%s16 + $0x34] sm:$0xf]
      %v2092 = vld [vmem:[%s16 + $0x38] sm:$0xf]
      %v2093 = vld [vmem:[%s16 + $0x3c] sm:$0xf]
      %v2094 = vld [vmem:[%s16 + $0x40] sm:$0xf]
      %v2095 = vld [vmem:[%s16 + $0x44] sm:$0xf]
      %v2096 = vld [vmem:[%s16 + $0x48] sm:$0xf]
      %v2097 = vld [vmem:[%s16 + $0x4c] sm:$0xf]
      %v2098 = vld [vmem:[%s16 + $0x50] sm:$0xf]
      %v2099 = vld [vmem:[%s16 + $0x54] sm:$0xf]
      %v2100 = vld [vmem:[%s16 + $0x58] sm:$0xf]
      %v2101 = vld [vmem:[%s16 + $0x5c] sm:$0xf]
      %v2102 = vld [vmem:[%s16 + $0x60] sm:$0xf]
      %v2103 = vld [vmem:[%s16 + $0x64] sm:$0xf]
      %v2104 = vld [vmem:[%s16 + $0x68] sm:$0xf]
      %v2105 = vld [vmem:[%s16 + $0x6c] sm:$0xf]
      %v2106 = vld [vmem:[%s16 + $0x70] sm:$0xf]
      %v2107 = vld [vmem:[%s16 + $0x74] sm:$0xf]
      %v2108 = vld [vmem:[%s16 + $0x78] sm:$0xf]
      %v2109 = vld [vmem:[%s16 + $0x7c] sm:$0xf]
      %v2142 = vunpack.c.l.b16 %v2078
      %v2143 = vunpack.c.l.b16 %v2079
      %v2144 = vunpack.c.l.b16 %v2080
      %v2145 = vunpack.c.l.b16 %v2081
      %v2146 = vunpack.c.l.b16 %v2082
      %v2147 = vunpack.c.l.b16 %v2083
      %v2148 = vunpack.c.l.b16 %v2084
      %v2149 = vunpack.c.l.b16 %v2085
      %v2150 = vunpack.c.l.b16 %v2086
      %v2151 = vunpack.c.l.b16 %v2087
      %v2152 = vunpack.c.l.b16 %v2088
      %v2153 = vunpack.c.l.b16 %v2089
      %v2154 = vunpack.c.l.b16 %v2090
      %v2155 = vunpack.c.l.b16 %v2091
      %v2156 = vunpack.c.l.b16 %v2092
      %v2157 = vunpack.c.l.b16 %v2093
      %v2158 = vunpack.c.l.b16 %v2094
      %v2159 = vunpack.c.l.b16 %v2095
      %v2160 = vunpack.c.l.b16 %v2096
      %v2161 = vunpack.c.l.b16 %v2097
      %v2162 = vunpack.c.l.b16 %v2098
      %v2163 = vunpack.c.l.b16 %v2099
      %v2164 = vunpack.c.l.b16 %v2100
      %v2165 = vunpack.c.l.b16 %v2101
      %v2166 = vunpack.c.l.b16 %v2102
      %v2167 = vunpack.c.l.b16 %v2103
      %v2168 = vunpack.c.l.b16 %v2104
      %v2169 = vunpack.c.l.b16 %v2105
      %v2170 = vunpack.c.l.b16 %v2106
      %v2171 = vunpack.c.l.b16 %v2107
      %v2172 = vunpack.c.l.b16 %v2108
      %v2173 = vunpack.c.l.b16 %v2109
      %v2174 = vpack.c.b16 %v2143, %v2142
      %v2175 = vpack.c.b16 %v2145, %v2144
      %v2176 = vpack.c.b16 %v2147, %v2146
      %v2177 = vpack.c.b16 %v2149, %v2148
      %v2178 = vpack.c.b16 %v2151, %v2150
      %v2179 = vpack.c.b16 %v2153, %v2152
      %v2180 = vpack.c.b16 %v2155, %v2154
      %v2181 = vpack.c.b16 %v2157, %v2156
      %v2182 = vpack.c.b16 %v2159, %v2158
      %v2183 = vpack.c.b16 %v2161, %v2160
      %v2184 = vpack.c.b16 %v2163, %v2162
      %v2185 = vpack.c.b16 %v2165, %v2164
      %v2186 = vpack.c.b16 %v2167, %v2166
      %v2187 = vpack.c.b16 %v2169, %v2168
      %v2188 = vpack.c.b16 %v2171, %v2170
      %v2189 = vpack.c.b16 %v2173, %v2172
      %2206 = vmatprep.subr.bf16.mxu0 0
      %2207 = vmatpush1.bf16.msra.mxu0 %v2174
      %2208 = vmatprep.subr.bf16.mxu0 0
      %2209 = vmatpush1.bf16.msra.mxu0 %v2175
      %2210 = vmatprep.subr.bf16.mxu0 0
      %2211 = vmatpush1.bf16.msra.mxu0 %v2176
      %2212 = vmatprep.subr.bf16.mxu0 0
      %2213 = vmatpush1.bf16.msra.mxu0 %v2177
      %2214 = vmatprep.subr.bf16.mxu0 0
      %2215 = vmatpush1.bf16.msra.mxu0 %v2178
      %2216 = vmatprep.subr.bf16.mxu0 0
      %2217 = vmatpush1.bf16.msra.mxu0 %v2179
      %2218 = vmatprep.subr.bf16.mxu0 0
      %2219 = vmatpush1.bf16.msra.mxu0 %v2180
      %2220 = vmatprep.subr.bf16.mxu0 0
      %2221 = vmatpush1.bf16.msra.mxu0 %v2181
      %2222 = vmatprep.subr.bf16.mxu0 0
      %2223 = vmatpush1.bf16.msra.mxu0 %v2182
      %2224 = vmatprep.subr.bf16.mxu0 0
      %2225 = vmatpush1.bf16.msra.mxu0 %v2183
      %2226 = vmatprep.subr.bf16.mxu0 0
      %2227 = vmatpush1.bf16.msra.mxu0 %v2184
      %2228 = vmatprep.subr.bf16.mxu0 0
      %2229 = vmatpush1.bf16.msra.mxu0 %v2185
      %2230 = vmatprep.subr.bf16.mxu0 0
      %2231 = vmatpush1.bf16.msra.mxu0 %v2186
      %2232 = vmatprep.subr.bf16.mxu0 0
      %2233 = vmatpush1.bf16.msra.mxu0 %v2187
      %2234 = vmatprep.subr.bf16.mxu0 0
      %2235 = vmatpush1.bf16.msra.mxu0 %v2188
      %2236 = vmatprep.subr.bf16.mxu0 0
      %2237 = vmatpush1.bf16.msra.mxu0 %v2189
      %2238 = vmatprep.mubr.bf16.mxu0 %v2077
      %2239 = vmatmul.mubr.bf16.gmra.mrb[0].mxu0 %v2076
      %v2240 = vpop.f32.mrb[0].mxu0
      %v2241 = vadd.f32 0.0, %v2240
      %v2242 = vpop.f32.mrb[0].mxu0
      %v2243 = vpop.f32.mrb[0].mxu0
      %v2244 = vadd.f32 0.0, %v2243
      %v2245 = vpop.f32.mrb[0].mxu0
      %2246 = vdwg.mxu0
      %v2247 = vadd.f32 %v1878, %v2241
      %v2248 = vadd.f32 %v1879, %v2244
      %v2249 = vld [vmem:[%s17] sm:$0x1]
      %v2251 = vlaneseq
      %v2252 = vshrl.u32 %v2251, 7
      %v2253 = vsub.s32 0, %v2252
      %v2254 = vrot.slane %v2249, %v2253
      %v2256 = vadd.f32 %v2247, %v2254
      %v2257 = vadd.f32 %v2248, %v2254
      %v2258 = vpack.c.bf16 %v2257, %v2256
      %v2259 = vld [vmem:[%s18] sm:$0xff]
      %v2260 = vld [vmem:[%s18 + $0x8] sm:$0xff]
      %v2261 = vld [vmem:[%s18 + $0x10] sm:$0xff]
      %v2262 = vld [vmem:[%s18 + $0x18] sm:$0xff]
      %v2263 = vld [vmem:[%s18 + $0x20] sm:$0xff]
      %v2264 = vld [vmem:[%s18 + $0x28] sm:$0xff]
      %v2265 = vld [vmem:[%s18 + $0x30] sm:$0xff]
      %v2266 = vld [vmem:[%s18 + $0x38] sm:$0xff]
      %v2267 = vld [vmem:[%s18 + $0x40] sm:$0xff]
      %v2268 = vld [vmem:[%s18 + $0x48] sm:$0xff]
      %v2269 = vld [vmem:[%s18 + $0x50] sm:$0xff]
      %v2270 = vld [vmem:[%s18 + $0x58] sm:$0xff]
      %v2271 = vld [vmem:[%s18 + $0x60] sm:$0xff]
      %v2272 = vld [vmem:[%s18 + $0x68] sm:$0xff]
      %v2273 = vld [vmem:[%s18 + $0x70] sm:$0xff]
      %v2274 = vld [vmem:[%s18 + $0x78] sm:$0xff]
      %v2275 = vld [vmem:[%s19] sm:$0x3]
      %v2277 = vlaneseq
      %v2278 = vshrl.u32 %v2277, 7
      %v2279 = vsub.s32 0, %v2278
      %v2280 = vrot.slane %v2275, %v2279
      %v2281 = vlaneseq
      %v2282 = vshrl.u32 %v2281, 7
      %v2283 = vsub.s32 1, %v2282
      %v2284 = vrot.slane %v2275, %v2283
      %v2303 = vunpack.c.l.b16 %v2259
      %v2304 = vunpack.c.h.b16 %v2259
      %v2305 = vunpack.c.l.b16 %v2260
      %v2306 = vunpack.c.h.b16 %v2260
      %v2307 = vunpack.c.l.b16 %v2261
      %v2308 = vunpack.c.h.b16 %v2261
      %v2309 = vunpack.c.l.b16 %v2262
      %v2310 = vunpack.c.h.b16 %v2262
      %v2311 = vunpack.c.l.b16 %v2263
      %v2312 = vunpack.c.h.b16 %v2263
      %v2313 = vunpack.c.l.b16 %v2264
      %v2314 = vunpack.c.h.b16 %v2264
      %v2315 = vunpack.c.l.b16 %v2265
      %v2316 = vunpack.c.h.b16 %v2265
      %v2317 = vunpack.c.l.b16 %v2266
      %v2318 = vunpack.c.h.b16 %v2266
      %v2319 = vunpack.c.l.b16 %v2267
      %v2320 = vunpack.c.h.b16 %v2267
      %v2321 = vunpack.c.l.b16 %v2268
      %v2322 = vunpack.c.h.b16 %v2268
      %v2323 = vunpack.c.l.b16 %v2269
      %v2324 = vunpack.c.h.b16 %v2269
      %v2325 = vunpack.c.l.b16 %v2270
      %v2326 = vunpack.c.h.b16 %v2270
      %v2327 = vunpack.c.l.b16 %v2271
      %v2328 = vunpack.c.h.b16 %v2271
      %v2329 = vunpack.c.l.b16 %v2272
      %v2330 = vunpack.c.h.b16 %v2272
      %v2331 = vunpack.c.l.b16 %v2273
      %v2332 = vunpack.c.h.b16 %v2273
      %v2333 = vunpack.c.l.b16 %v2274
      %v2334 = vunpack.c.h.b16 %v2274
      %v2335 = vpack.c.b16 %v2305, %v2303
      %v2336 = vpack.c.b16 %v2306, %v2304
      %v2337 = vpack.c.b16 %v2309, %v2307
      %v2338 = vpack.c.b16 %v2310, %v2308
      %v2339 = vpack.c.b16 %v2313, %v2311
      %v2340 = vpack.c.b16 %v2314, %v2312
      %v2341 = vpack.c.b16 %v2317, %v2315
      %v2342 = vpack.c.b16 %v2318, %v2316
      %v2343 = vpack.c.b16 %v2321, %v2319
      %v2344 = vpack.c.b16 %v2322, %v2320
      %v2345 = vpack.c.b16 %v2325, %v2323
      %v2346 = vpack.c.b16 %v2326, %v2324
      %v2347 = vpack.c.b16 %v2329, %v2327
      %v2348 = vpack.c.b16 %v2330, %v2328
      %v2349 = vpack.c.b16 %v2333, %v2331
      %v2350 = vpack.c.b16 %v2334, %v2332
      %2367 = vmatprep.subr.bf16.mxu0 %v2336
      %2368 = vmatpush1.bf16.msra.mxu0 %v2335
      %2369 = vmatprep.subr.bf16.mxu0 %v2338
      %2370 = vmatpush1.bf16.msra.mxu0 %v2337
      %2371 = vmatprep.subr.bf16.mxu0 %v2340
      %2372 = vmatpush1.bf16.msra.mxu0 %v2339
      %2373 = vmatprep.subr.bf16.mxu0 %v2342
      %2374 = vmatpush1.bf16.msra.mxu0 %v2341
      %2375 = vmatprep.subr.bf16.mxu0 %v2344
      %2376 = vmatpush1.bf16.msra.mxu0 %v2343
      %2377 = vmatprep.subr.bf16.mxu0 %v2346
      %2378 = vmatpush1.bf16.msra.mxu0 %v2345
      %2379 = vmatprep.subr.bf16.mxu0 %v2348
      %2380 = vmatpush1.bf16.msra.mxu0 %v2347
      %2381 = vmatprep.subr.bf16.mxu0 %v2350
      %2382 = vmatpush1.bf16.msra.mxu0 %v2349
      %2383 = vmatprep.subr.bf16.mxu0 0
      %2384 = vmatpush1.bf16.msra.mxu0 0
      %2385 = vmatprep.subr.bf16.mxu0 0
      %2386 = vmatpush1.bf16.msra.mxu0 0
      %2387 = vmatprep.subr.bf16.mxu0 0
      %2388 = vmatpush1.bf16.msra.mxu0 0
      %2389 = vmatprep.subr.bf16.mxu0 0
      %2390 = vmatpush1.bf16.msra.mxu0 0
      %2391 = vmatprep.subr.bf16.mxu0 0
      %2392 = vmatpush1.bf16.msra.mxu0 0
      %2393 = vmatprep.subr.bf16.mxu0 0
      %2394 = vmatpush1.bf16.msra.mxu0 0
      %2395 = vmatprep.subr.bf16.mxu0 0
      %2396 = vmatpush1.bf16.msra.mxu0 0
      %2397 = vmatprep.subr.bf16.mxu0 0
      %2398 = vmatpush1.bf16.msra.mxu0 0
      %2399 = vmatprep.mubr.bf16.mxu0 0
      %2400 = vmatmul.mubr.bf16.gmra.mrb[0].mxu0 %v2258
      %v2401 = vpop.f32.mrb[0].mxu0
      %v2402 = vadd.f32 %v2280, %v2401
      %v2403 = vpop.f32.mrb[0].mxu0
      %v2404 = vadd.f32 %v2284, %v2403
      %v2405 = vpop.f32.mrb[0].mxu0
      %v2406 = vadd.f32 %v2280, %v2405
      %v2407 = vpop.f32.mrb[0].mxu0
      %v2408 = vadd.f32 %v2284, %v2407
      %2409 = vdwg.mxu0
      %2410 = vst [vmem:[%s747] sm:$0xff] %v2402
      %2411 = vst [vmem:[%s747 + $0x8] sm:$0xff] %v2404
      %2412 = vst [vmem:[%s747 + $0x10] sm:$0xff] %v2406
      %2413 = vst [vmem:[%s747 + $0x18] sm:$0xff] %v2408
      %v2414 = vpack.c.bf16 %v2406, %v2402
      %v2415 = vpack.c.bf16 %v2408, %v2404
      %v2416 = vld [vmem:[%s20] sm:$0xf]
      %v2417 = vld [vmem:[%s20 + $0x4] sm:$0xf]
      %v2418 = vld [vmem:[%s20 + $0x8] sm:$0xf]
      %v2419 = vld [vmem:[%s20 + $0xc] sm:$0xf]
      %v2420 = vld [vmem:[%s20 + $0x10] sm:$0xf]
      %v2421 = vld [vmem:[%s20 + $0x14] sm:$0xf]
      %v2422 = vld [vmem:[%s20 + $0x18] sm:$0xf]
      %v2423 = vld [vmem:[%s20 + $0x1c] sm:$0xf]
      %v2424 = vld [vmem:[%s20 + $0x20] sm:$0xf]
      %v2425 = vld [vmem:[%s20 + $0x24] sm:$0xf]
      %v2426 = vld [vmem:[%s20 + $0x28] sm:$0xf]
      %v2427 = vld [vmem:[%s20 + $0x2c] sm:$0xf]
      %v2428 = vld [vmem:[%s20 + $0x30] sm:$0xf]
      %v2429 = vld [vmem:[%s20 + $0x34] sm:$0xf]
      %v2430 = vld [vmem:[%s20 + $0x38] sm:$0xf]
      %v2431 = vld [vmem:[%s20 + $0x3c] sm:$0xf]
      %v2432 = vld [vmem:[%s20 + $0x40] sm:$0xf]
      %v2433 = vld [vmem:[%s20 + $0x44] sm:$0xf]
      %v2434 = vld [vmem:[%s20 + $0x48] sm:$0xf]
      %v2435 = vld [vmem:[%s20 + $0x4c] sm:$0xf]
      %v2436 = vld [vmem:[%s20 + $0x50] sm:$0xf]
      %v2437 = vld [vmem:[%s20 + $0x54] sm:$0xf]
      %v2438 = vld [vmem:[%s20 + $0x58] sm:$0xf]
      %v2439 = vld [vmem:[%s20 + $0x5c] sm:$0xf]
      %v2440 = vld [vmem:[%s20 + $0x60] sm:$0xf]
      %v2441 = vld [vmem:[%s20 + $0x64] sm:$0xf]
      %v2442 = vld [vmem:[%s20 + $0x68] sm:$0xf]
      %v2443 = vld [vmem:[%s20 + $0x6c] sm:$0xf]
      %v2444 = vld [vmem:[%s20 + $0x70] sm:$0xf]
      %v2445 = vld [vmem:[%s20 + $0x74] sm:$0xf]
      %v2446 = vld [vmem:[%s20 + $0x78] sm:$0xf]
      %v2447 = vld [vmem:[%s20 + $0x7c] sm:$0xf]
      %v2448 = vld [vmem:[%s21] sm:$0x1]
      %v2450 = vlaneseq
      %v2451 = vshrl.u32 %v2450, 7
      %v2452 = vsub.s32 0, %v2451
      %v2453 = vrot.slane %v2448, %v2452
      %v2487 = vunpack.c.l.b16 %v2416
      %v2488 = vunpack.c.l.b16 %v2417
      %v2489 = vunpack.c.l.b16 %v2418
      %v2490 = vunpack.c.l.b16 %v2419
      %v2491 = vunpack.c.l.b16 %v2420
      %v2492 = vunpack.c.l.b16 %v2421
      %v2493 = vunpack.c.l.b16 %v2422
      %v2494 = vunpack.c.l.b16 %v2423
      %v2495 = vunpack.c.l.b16 %v2424
      %v2496 = vunpack.c.l.b16 %v2425
      %v2497 = vunpack.c.l.b16 %v2426
      %v2498 = vunpack.c.l.b16 %v2427
      %v2499 = vunpack.c.l.b16 %v2428
      %v2500 = vunpack.c.l.b16 %v2429
      %v2501 = vunpack.c.l.b16 %v2430
      %v2502 = vunpack.c.l.b16 %v2431
      %v2503 = vunpack.c.l.b16 %v2432
      %v2504 = vunpack.c.l.b16 %v2433
      %v2505 = vunpack.c.l.b16 %v2434
      %v2506 = vunpack.c.l.b16 %v2435
      %v2507 = vunpack.c.l.b16 %v2436
      %v2508 = vunpack.c.l.b16 %v2437
      %v2509 = vunpack.c.l.b16 %v2438
      %v2510 = vunpack.c.l.b16 %v2439
      %v2511 = vunpack.c.l.b16 %v2440
      %v2512 = vunpack.c.l.b16 %v2441
      %v2513 = vunpack.c.l.b16 %v2442
      %v2514 = vunpack.c.l.b16 %v2443
      %v2515 = vunpack.c.l.b16 %v2444
      %v2516 = vunpack.c.l.b16 %v2445
      %v2517 = vunpack.c.l.b16 %v2446
      %v2518 = vunpack.c.l.b16 %v2447
      %v2519 = vpack.c.b16 %v2488, %v2487
      %v2520 = vpack.c.b16 %v2490, %v2489
      %v2521 = vpack.c.b16 %v2492, %v2491
      %v2522 = vpack.c.b16 %v2494, %v2493
      %v2523 = vpack.c.b16 %v2496, %v2495
      %v2524 = vpack.c.b16 %v2498, %v2497
      %v2525 = vpack.c.b16 %v2500, %v2499
      %v2526 = vpack.c.b16 %v2502, %v2501
      %v2527 = vpack.c.b16 %v2504, %v2503
      %v2528 = vpack.c.b16 %v2506, %v2505
      %v2529 = vpack.c.b16 %v2508, %v2507
      %v2530 = vpack.c.b16 %v2510, %v2509
      %v2531 = vpack.c.b16 %v2512, %v2511
      %v2532 = vpack.c.b16 %v2514, %v2513
      %v2533 = vpack.c.b16 %v2516, %v2515
      %v2534 = vpack.c.b16 %v2518, %v2517
      %2551 = vmatprep.subr.bf16.mxu0 0
      %2552 = vmatpush1.bf16.msra.mxu0 %v2519
      %2553 = vmatprep.subr.bf16.mxu0 0
      %2554 = vmatpush1.bf16.msra.mxu0 %v2520
      %2555 = vmatprep.subr.bf16.mxu0 0
      %2556 = vmatpush1.bf16.msra.mxu0 %v2521
      %2557 = vmatprep.subr.bf16.mxu0 0
      %2558 = vmatpush1.bf16.msra.mxu0 %v2522
      %2559 = vmatprep.subr.bf16.mxu0 0
      %2560 = vmatpush1.bf16.msra.mxu0 %v2523
      %2561 = vmatprep.subr.bf16.mxu0 0
      %2562 = vmatpush1.bf16.msra.mxu0 %v2524
      %2563 = vmatprep.subr.bf16.mxu0 0
      %2564 = vmatpush1.bf16.msra.mxu0 %v2525
      %2565 = vmatprep.subr.bf16.mxu0 0
      %2566 = vmatpush1.bf16.msra.mxu0 %v2526
      %2567 = vmatprep.subr.bf16.mxu0 0
      %2568 = vmatpush1.bf16.msra.mxu0 %v2527
      %2569 = vmatprep.subr.bf16.mxu0 0
      %2570 = vmatpush1.bf16.msra.mxu0 %v2528
      %2571 = vmatprep.subr.bf16.mxu0 0
      %2572 = vmatpush1.bf16.msra.mxu0 %v2529
      %2573 = vmatprep.subr.bf16.mxu0 0
      %2574 = vmatpush1.bf16.msra.mxu0 %v2530
      %2575 = vmatprep.subr.bf16.mxu0 0
      %2576 = vmatpush1.bf16.msra.mxu0 %v2531
      %2577 = vmatprep.subr.bf16.mxu0 0
      %2578 = vmatpush1.bf16.msra.mxu0 %v2532
      %2579 = vmatprep.subr.bf16.mxu0 0
      %2580 = vmatpush1.bf16.msra.mxu0 %v2533
      %2581 = vmatprep.subr.bf16.mxu0 0
      %2582 = vmatpush1.bf16.msra.mxu0 %v2534
      %2583 = vmatprep.mubr.bf16.mxu0 %v2415
      %2584 = vmatmul.mubr.bf16.gmra.mrb[0].mxu0 %v2414
      %v2585 = vpop.f32.mrb[0].mxu0
      %v2586 = vadd.f32 %v2453, %v2585
      %v2587 = vpop.f32.mrb[0].mxu0
      %v2588 = vpop.f32.mrb[0].mxu0
      %v2589 = vadd.f32 %v2453, %v2588
      %v2590 = vpop.f32.mrb[0].mxu0
      %2591 = vdwg.mxu0
      %2592 = vst [vmem:[%s753] sm:$0xff] %v2586
      %2593 = vst [vmem:[%s753 + $0x8] sm:$0xff] %v2589
      %s2594 = smul.u32 2, %s35
      %p2595 = scmp.lt.s32.totalorder %s2594, 3
      %s2596 = scalar_select %p2595, %s2594, 3
      %s2597 = smul.addr %s2596, 2
      %s2598 = smul.addr %s2597, 8
      %s2599 = scalar_lea.vmem %s22, %s2598
      %s2600 = smul.u32 2, %s35
      %p2601 = scmp.lt.s32.totalorder %s2600, 3
      %s2602 = scalar_select %p2601, %s2600, 3
      %s2603 = smul.addr %s2602, 8
      %s2604 = scalar_lea.vmem %s23, %s2603
      // Predicated region
      $region109: #{sam_m2m_forward.2} parent=107 // pred_check
        %p2605 = pneg %p525
      $region110: #{sam_m2m_forward.2} parent=107 // pred_check_branch
        %2607 = sbr.rel (%p2605) target = $region112
      $region111: #{sam_m2m_forward.2} parent=107 // pred_region
        %s2608 = smul.u32 2, %s35
      $region112: #{sam_m2m_forward.2} parent=107 // pred_fallthru
        _
      // Predicated region
      $region113: #{sam_m2m_forward.2} parent=107 // pred_check
        %p2609 = pneg %p551
      $region114: #{sam_m2m_forward.2} parent=107 // pred_check_branch
        %2611 = sbr.rel (%p2609) target = $region116
      $region115: #{sam_m2m_forward.2} parent=107 // pred_region
        %s2612 = smul.u32 2, %s35
      $region116: #{sam_m2m_forward.2} parent=107 // pred_fallthru
        _
    $region108: #{sam_m2m_forward.2} parent=5 // pred_fallthru
      _
    %p2613 = scmp.le.s32.totalorder 2, %s30
    // Predicated region
    $region117: #{sam_m2m_forward.2} parent=5 // pred_check
      %p2614 = pneg %p2613
    $region118: #{sam_m2m_forward.2} parent=5 // pred_check_branch
      %2616 = sbr.rel (%p2614) target = $region120
    $region119: #{sam_m2m_forward.2} parent=5 // pred_region
      %s2617 = ssub.s32 %s30, 2
      // Predicated region
      $region121: #{sam_m2m_forward.2} parent=119 // pred_check
        %p2618 = pneg %p531
      $region122: #{sam_m2m_forward.2} parent=119 // pred_check_branch
        %2620 = sbr.rel (%p2618) target = $region124
      $region123: #{sam_m2m_forward.2} parent=119 // pred_region
        %s2621 = smul.u32 2, %s36
        %p2622 = scmp.lt.s32.totalorder %s2621, 3
        %s2623 = scalar_select %p2622, %s2621, 3
        %s2624 = smul.addr %s2623, 2
        %s2625 = smul.addr %s2624, 8
        %s2626 = scalar_lea.vmem %s22, %s2625
      $region124: #{sam_m2m_forward.2} parent=119 // pred_fallthru
        _
      // Predicated region
      $region125: #{sam_m2m_forward.2} parent=119 // pred_check
        %p2627 = pneg %p557
      $region126: #{sam_m2m_forward.2} parent=119 // pred_check_branch
        %2629 = sbr.rel (%p2627) target = $region128
      $region127: #{sam_m2m_forward.2} parent=119 // pred_region
        %s2630 = smul.u32 2, %s36
        %p2631 = scmp.lt.s32.totalorder %s2630, 3
        %s2632 = scalar_select %p2631, %s2630, 3
        %s2633 = smul.addr %s2632, 8
        %s2634 = scalar_lea.vmem %s23, %s2633
      $region128: #{sam_m2m_forward.2} parent=119 // pred_fallthru
        _
    $region120: #{sam_m2m_forward.2} parent=5 // pred_fallthru
      _
  $region6: #{sam_m2m_forward.2} parent=0 // loop_footer
    %s34 = sadd.s32 1, %s30
  $region7: #{sam_m2m_forward.2} parent=0 // loop_footer_branch
    %29 = sbr.rel target = $region3
  $region8: #{sam_m2m_forward.2} parent=0 // loop_exit
    _

</llo_original>
